<compile_context>
chip_gen: v6e
topology: v6e:2x2x1
jax: 0.10.0
libtpu: 0.0.40
codegen_flags: <defaults>
</compile_context>

<pallas_src>
import math

import jax
import jax.numpy as jnp
from jax.scipy.linalg import block_diag
from jax.experimental import pallas as pl
from jax.experimental.pallas import tpu as pltpu

B = 2                       # batch
L = 9                       # sequence positions (forced by dim2=86 in subModel7)
LP = 16                     # padded sequence length (tile friendly)
D = 16                      # dim1: concat feature width (8 + 4 + 4)
N_SUB = 6                   # six sub-models (ac4c, m1a, m5c, m6a, m7g, psi)
CONV_LEN = L * D            # 144 flattened conv input length
POOL2_LEN = 35              # final conv feature length per channel
FEAT_DIM = D + 2 * POOL2_LEN   # 86 = dim2
H1, H2 = 128, 64
WIDE = N_SUB * POOL2_LEN    # 210: conv slab width (6 sub-model lane blocks)


def mlmodel7_kernel(x1p_ref, xs_ref, cw_ref, ww_ref, vbd_ref, rb_ref,
                    fw1_hbm, hb_ref, fw2_hbm,
                    y_ref, a_ref,
                    fw1_vmem, fw2_vmem, dma_sem):
    f32, bf16 = jnp.float32, jnp.bfloat16

    # Kick off the (late-needed) FC weight DMAs so they overlap conv+attention.
    cp1 = pltpu.make_async_copy(fw1_hbm, fw1_vmem, dma_sem.at[0])
    cp2 = pltpu.make_async_copy(fw2_hbm, fw2_vmem, dma_sem.at[1])
    cp1.start()
    cp2.start()

    # ---------------- conv feature extractor (FeatureExtractor3) ----------------
    # 6 sub-models on lane blocks of 35; stride-4 phase r and batch b packed on
    # sublanes (row = 2*r + b).
    xe = xs_ref[0]                                  # (6, 210)
    xm = xs_ref[1]
    xo = xs_ref[2]
    p1a, p1b = [], []
    for c in range(3):                              # Conv1d(1->3,k=2)+ReLU+MaxPool(2)
        w0 = cw_ref[2 * c]
        w1 = cw_ref[2 * c + 1]
        bc = cw_ref[6 + c]
        ye = jnp.maximum(w0 * xe + w1 * xm + bc, 0.0)
        yo = jnp.maximum(w0 * xm + w1 * xo + bc, 0.0)
        p1 = jnp.maximum(ye, yo)                    # (6, 210): pooled pos 2k + r
        p1a.append(p1[0:4])                         # rows r in {0, 1}
        p1b.append(p1[2:6])                         # rows r in {1, 2}
    p2 = []
    for o in range(2):                              # Conv1d(3->2,k=2)+ReLU+MaxPool(2)
        acc = cw_ref[21 + o]
        for c in range(3):
            acc = acc + cw_ref[9 + 6 * o + 2 * c] * p1a[c] \
                      + cw_ref[9 + 6 * o + 2 * c + 1] * p1b[c]
        y2 = jnp.maximum(acc, 0.0)                  # (4, 210)
        p2.append(jnp.maximum(y2[0:2], y2[2:4]))    # (2, 210), rows = batch

    # per-sub-model conv features, (6, B, 70), bf16 for the MXU
    P = jnp.stack(
        [jnp.concatenate([p2[0][:, POOL2_LEN * m:POOL2_LEN * (m + 1)],
                          p2[1][:, POOL2_LEN * m:POOL2_LEN * (m + 1)]], axis=1)
         for m in range(N_SUB)], axis=0).astype(bf16)

    # ---------------- attention, both batch rows in one pass --------------------
    x1p = x1p_ref[...]                              # (B, 16, 16) f32, rows >= L are 0
    x32 = jnp.concatenate([x1p[0], x1p[1]], axis=0)             # (32, 16)
    h = jnp.tanh(jnp.dot(x32.astype(bf16), ww_ref[...],
                         preferred_element_type=f32) + rb_ref[0:1, :])        # (32, 96)
    s = jnp.dot(h.astype(bf16), vbd_ref[...],
                preferred_element_type=f32) + rb_ref[1:2, 0:N_SUB]            # (32, 6)
    l_idx = jax.lax.broadcasted_iota(jnp.int32, (B * LP, N_SUB), 0) % LP
    s = jnp.where(l_idx < L, s, -1e30)              # mask padded rows

    att_t, m_rows = [], []
    for b in range(B):                              # tiny per-batch tail, unrolled
        sb = s[LP * b:LP * (b + 1)]                 # (16, 6)
        sb = sb - jnp.max(sb, axis=0, keepdims=True)
        eb = jnp.exp(sb)
        ab = eb / jnp.sum(eb, axis=0, keepdims=True)            # (16, 6), 0 on pads
        at = ab.T                                                # (6, 16)
        att_t.append(at)
        # att^T @ x1 kept in f32 (reviewer's numeric concern)
        m_rows.append(jnp.dot(at, x1p[b], preferred_element_type=f32))  # (6, 16)
    a_ref[...] = jnp.stack([att_t[0][:, :L], att_t[1][:, :L]], axis=0)  # (B, 6, 9)
    M = jnp.stack(m_rows, axis=1).astype(bf16)      # (6, B, 16)

    # ---------------- FC head, batched over the 6 sub-models (dense weights) ----
    feat = jnp.concatenate([M, P], axis=2)          # (6, B, 86)
    fb1 = hb_ref[:, 0:1, :]                         # (6, 1, 128)
    fb2 = hb_ref[:, 1:2, 0:H2]                      # (6, 1, 64)
    w3d = hb_ref[:, 2:3, 0:H2]                      # (6, 1, 64)

    cp1.wait()
    z1 = jnp.maximum(
        jnp.einsum('mbf,mfh->mbh', feat, fw1_vmem[...],
                   preferred_element_type=f32) + fb1, 0.0)                    # (6, B, 128)
    cp2.wait()
    z2 = jnp.maximum(
        jnp.einsum('mbh,mhk->mbk', z1.astype(bf16), fw2_vmem[...],
                   preferred_element_type=f32) + fb2, 0.0)                    # (6, B, 64)

    # Softmax(2)[:, 1] == sigmoid(z2 @ (w3[:,1]-w3[:,0]) + (b3[1]-b3[0]))
    logit = jnp.transpose(jnp.sum(z2 * w3d, axis=2)) + rb_ref[2:3, 0:N_SUB]   # (B, 6)
    y_ref[...] = 1.0 / (1.0 + jnp.exp(-logit))                                # one store


def init_params(key):
    ks = jax.random.split(key, 14)

    def u(k, shape, fan_in):
        bound = 1.0 / math.sqrt(fan_in)
        return jax.random.uniform(k, shape, jnp.float32, -bound, bound)

    return dict(
        ww=u(ks[0], (N_SUB, D, D), D),            # attention.W  (stored (in, out))
        bw=u(ks[1], (N_SUB, 1, D), D),
        vw=u(ks[2], (N_SUB, D, 1), D),            # attention.V
        bv=u(ks[3], (N_SUB, 1, 1), D),
        c1w=u(ks[4], (N_SUB, 3, 2), 2),           # Conv1d(1, 3, k=2)
        c1b=u(ks[5], (N_SUB, 3), 2),
        c2w=u(ks[6], (N_SUB, 2, 3, 2), 6),        # Conv1d(3, 2, k=2)
        c2b=u(ks[7], (N_SUB, 2), 6),
        fw1=u(ks[8], (N_SUB, FEAT_DIM, H1), FEAT_DIM),
        fb1=u(ks[9], (N_SUB, 1, H1), FEAT_DIM),
        fw2=u(ks[10], (N_SUB, H1, H2), H1),
        fb2=u(ks[11], (N_SUB, 1, H2), H1),
        fw3=u(ks[12], (N_SUB, H2, 2), H2),
        fb3=u(ks[13], (N_SUB, 1, 2), H2),
    )


def prepare_params(params):
    """One-time packing of all constant weights into kernel-ready slabs."""
    f32, bf16 = jnp.float32, jnp.bfloat16
    rep = lambda v: jnp.repeat(v, POOL2_LEN)        # (6,) -> (210,), one value / lane block

    # conv weights: 23 lane-blocked vectors in one slab
    rows = []
    c1w, c1b = params["c1w"], params["c1b"]
    c2w, c2b = params["c2w"], params["c2b"]
    for c in range(3):
        for t in range(2):
            rows.append(rep(c1w[:, c, t]))          # rows 0..5
    for c in range(3):
        rows.append(rep(c1b[:, c]))                 # rows 6..8
    for o in range(2):
        for c in range(3):
            for t in range(2):
                rows.append(rep(c2w[:, o, c, t]))   # rows 9..20
    for o in range(2):
        rows.append(rep(c2b[:, o]))                 # rows 21..22
    cw_slab = jnp.stack(rows, axis=0).astype(f32)   # (23, 210)

    # attention weights (6 sub-models concatenated / block-diag V, both tiny)
    ww_cat = jnp.concatenate([params["ww"][m] for m in range(N_SUB)],
                             axis=1).astype(bf16)                              # (16, 96)
    vbd = block_diag(*[params["vw"][m] for m in range(N_SUB)]).astype(bf16)    # (96, 6)

    # small row-shaped biases packed together: bw / bv / (b3[1]-b3[0])
    rowbias = jnp.zeros((3, N_SUB * D), f32)                                   # (3, 96)
    rowbias = rowbias.at[0, :].set(params["bw"].reshape(-1))
    rowbias = rowbias.at[1, :N_SUB].set(params["bv"].reshape(-1))
    rowbias = rowbias.at[2, :N_SUB].set(params["fb3"][:, 0, 1] - params["fb3"][:, 0, 0])

    # dense per-sub-model FC weights (no block-diag zeros)
    fw1_stack = params["fw1"].astype(bf16)          # (6, 86, 128)
    fw2_stack = params["fw2"].astype(bf16)          # (6, 128, 64)

    # per-sub-model head constants: fb1 / fb2 / (w3[:,1]-w3[:,0])
    headbias = jnp.zeros((N_SUB, 3, H1), f32)       # (6, 3, 128)
    headbias = headbias.at[:, 0, :].set(params["fb1"][:, 0, :])
    headbias = headbias.at[:, 1, :H2].set(params["fb2"][:, 0, :])
    headbias = headbias.at[:, 2, :H2].set(params["fw3"][:, :, 1] - params["fw3"][:, :, 0])

    return dict(cw_slab=cw_slab, ww_cat=ww_cat, vbd=vbd, rowbias=rowbias,
                fw1_stack=fw1_stack, headbias=headbias, fw2_stack=fw2_stack)


@jax.jit
def ml_model7_forward(prep, seq, stat, bse):
    f32 = jnp.float32

    # ---------------- activation glue (the only per-call wrapper work) ----------
    x1 = jnp.concatenate([seq.astype(f32), stat.astype(f32), bse.astype(f32)],
                         axis=2)                                   # (B, 9, 16)
    x1p = jnp.pad(x1, ((0, 0), (0, LP - L), (0, 0)))               # (B, 16, 16)

    x_flat = x1.reshape(B, CONV_LEN)                               # (B, 144)
    # seven stride-4 views: xs[r][b, k] = x_flat[b, 4k + r], k = 0..34
    xs = [jax.lax.slice(x_flat, (0, r), (B, r + 4 * (POOL2_LEN - 1) + 1), (1, 4))
          for r in range(7)]

    def slab(idxs):
        # (3, B, 35) -> (6, 35) [row = 2*r_idx + b], then 6x lane tile (one block / sub-model)
        g = jnp.stack([xs[r] for r in idxs], axis=0).reshape(3 * B, POOL2_LEN)
        return jnp.tile(g, (1, N_SUB))

    xs_slab = jnp.stack([slab([0, 2, 4]), slab([1, 3, 5]), slab([2, 4, 6])],
                        axis=0)                                    # (3, 6, 210)

    vmem = pl.BlockSpec(memory_space=pltpu.MemorySpace.VMEM)
    hbm = pl.BlockSpec(memory_space=pl.ANY)
    y, a = pl.pallas_call(
        mlmodel7_kernel,
        out_shape=(jax.ShapeDtypeStruct((B, N_SUB), f32),          # Y
                   jax.ShapeDtypeStruct((B, N_SUB, L), f32)),      # A (already transposed)
        in_specs=[vmem, vmem, vmem, vmem, vmem, vmem, hbm, vmem, hbm],
        out_specs=(vmem, vmem),
        scratch_shapes=[pltpu.VMEM((N_SUB, FEAT_DIM, H1), jnp.bfloat16),
                        pltpu.VMEM((N_SUB, H1, H2), jnp.bfloat16),
                        pltpu.SemaphoreType.DMA((2,))],
    )(x1p, xs_slab, prep["cw_slab"], prep["ww_cat"], prep["vbd"], prep["rowbias"],
      prep["fw1_stack"], prep["headbias"], prep["fw2_stack"])
    return y, a


def reference(params, seq, stat, bse):
    """Pure-JAX mirror of mlModel7.forward (eval mode)."""
    x1 = jnp.concatenate([seq, stat, bse], axis=2).astype(jnp.float32)     # (B, L, D)
    x_flat = x1.reshape(B, 1, CONV_LEN)
    ys, atts = [], []
    for m in range(N_SUB):
        h = jnp.tanh(x1 @ params["ww"][m] + params["bw"][m])
        s = h @ params["vw"][m] + params["bv"][m]
        att = jax.nn.softmax(s, axis=1)                                    # (B, L, 1)
        M = jnp.sum(att * x1, axis=1)                                      # (B, D)

        y1 = jax.lax.conv_general_dilated(
            x_flat, params["c1w"][m][:, None, :], (1,), "VALID",
            dimension_numbers=("NCH", "OIH", "NCH")) + params["c1b"][m][None, :, None]
        y1 = jnp.maximum(y1, 0.0)
        p1 = y1[:, :, :142].reshape(B, 3, 71, 2).max(-1)
        y2 = jax.lax.conv_general_dilated(
            p1, params["c2w"][m], (1,), "VALID",
            dimension_numbers=("NCH", "OIH", "NCH")) + params["c2b"][m][None, :, None]
        y2 = jnp.maximum(y2, 0.0)
        p2 = y2.reshape(B, 2, POOL2_LEN, 2).max(-1)
        x2 = p2.reshape(B, -1)

        feat = jnp.concatenate([M, x2], axis=1)                            # (B, 86)
        z = jnp.maximum(feat @ params["fw1"][m] + params["fb1"][m], 0.0)
        z = jnp.maximum(z @ params["fw2"][m] + params["fb2"][m], 0.0)
        logits = z @ params["fw3"][m] + params["fb3"][m]
        probs = jax.nn.softmax(logits, axis=1)
        ys.append(probs[:, 1:2])
        atts.append(jnp.transpose(att, (0, 2, 1)))
    return jnp.concatenate(ys, axis=1), jnp.concatenate(atts, axis=1)


if __name__ == "__main__":
    key = jax.random.PRNGKey(0)
    kp, k1, k2, k3 = jax.random.split(key, 4)
    params = init_params(kp)
    prep = prepare_params(params)      # one-time weight packing (hoisted out of per-call path)
    jax.block_until_ready(prep)

    seq = jax.random.normal(k1, (B, L, 8), jnp.float32)
    stat = jax.random.normal(k2, (B, L, 4), jnp.float32)
    bse = jax.random.normal(k3, (B, L, 4), jnp.float32)

    Y, A = ml_model7_forward(prep, seq, stat, bse)
    jax.block_until_ready((Y, A))

    Y_ref, A_ref = reference(params, seq, stat, bse)
    assert Y.shape == (B, N_SUB) and A.shape == (B, N_SUB, L)
    assert jnp.allclose(Y, Y_ref, atol=1e-2, rtol=1e-2)
    assert jnp.allclose(A, A_ref, atol=1e-2, rtol=1e-2)
    print("KERNEL_OK")
</pallas_src>

<mosaic_0001>
module attributes {stable_mosaic.version = 11 : i64} {
  func.func @mlmodel7_kernel(%arg0: memref<2x16x16xf32, #tpu.memory_space<vmem>>, %arg1: memref<3x6x210xf32, #tpu.memory_space<vmem>>, %arg2: memref<23x210xf32, #tpu.memory_space<vmem>>, %arg3: memref<16x96xbf16, #tpu.memory_space<vmem>>, %arg4: memref<96x6xbf16, #tpu.memory_space<vmem>>, %arg5: memref<3x96xf32, #tpu.memory_space<vmem>>, %arg6: memref<6x86x128xbf16, #tpu.memory_space<any>>, %arg7: memref<6x3x128xf32, #tpu.memory_space<vmem>>, %arg8: memref<6x128x64xbf16, #tpu.memory_space<any>>, %arg9: memref<2x6xf32, #tpu.memory_space<vmem>>, %arg10: memref<2x6x9xf32, #tpu.memory_space<vmem>>, %arg11: memref<6x86x128xbf16, #tpu.memory_space<vmem>>, %arg12: memref<6x128x64xbf16, #tpu.memory_space<vmem>>, %arg13: memref<2x!tpu.dma_semaphore, #tpu.memory_space<semaphore_mem>>) attributes {dimension_semantics = [], scalar_prefetch = 0 : i64, scratch_operands = 3 : i64, tpu.core_type = #tpu.core_type<tc>} {
    %c0_i32 = arith.constant 0 : i32
    %0 = tpu.memref_slice %arg13[%c0_i32] : memref<2x!tpu.dma_semaphore, #tpu.memory_space<semaphore_mem>> -> memref<1x!tpu.dma_semaphore, #tpu.memory_space<semaphore_mem>>
    %1 = tpu.memref_squeeze %0 : memref<1x!tpu.dma_semaphore, #tpu.memory_space<semaphore_mem>> -> memref<!tpu.dma_semaphore, #tpu.memory_space<semaphore_mem>>
    tpu.enqueue_dma source(%arg6 : memref<6x86x128xbf16, #tpu.memory_space<any>>) target(%arg11 : memref<6x86x128xbf16, #tpu.memory_space<vmem>>) target_semaphore(%1 : memref<!tpu.dma_semaphore, #tpu.memory_space<semaphore_mem>>)
    %c1_i32 = arith.constant 1 : i32
    %2 = tpu.memref_slice %arg13[%c1_i32] : memref<2x!tpu.dma_semaphore, #tpu.memory_space<semaphore_mem>> -> memref<1x!tpu.dma_semaphore, #tpu.memory_space<semaphore_mem>>
    %3 = tpu.memref_squeeze %2 : memref<1x!tpu.dma_semaphore, #tpu.memory_space<semaphore_mem>> -> memref<!tpu.dma_semaphore, #tpu.memory_space<semaphore_mem>>
    tpu.enqueue_dma source(%arg8 : memref<6x128x64xbf16, #tpu.memory_space<any>>) target(%arg12 : memref<6x128x64xbf16, #tpu.memory_space<vmem>>) target_semaphore(%3 : memref<!tpu.dma_semaphore, #tpu.memory_space<semaphore_mem>>)
    %c0 = arith.constant 0 : index
    %c0_0 = arith.constant 0 : index
    %c0_1 = arith.constant 0 : index
    %4 = vector.load %arg1[%c0, %c0_0, %c0_1] : memref<3x6x210xf32, #tpu.memory_space<vmem>>, vector<1x6x210xf32>
    %5 = vector.shape_cast %4 : vector<1x6x210xf32> to vector<6x210xf32>
    %c1 = arith.constant 1 : index
    %c0_2 = arith.constant 0 : index
    %c0_3 = arith.constant 0 : index
    %6 = vector.load %arg1[%c1, %c0_2, %c0_3] : memref<3x6x210xf32, #tpu.memory_space<vmem>>, vector<1x6x210xf32>
    %7 = vector.shape_cast %6 : vector<1x6x210xf32> to vector<6x210xf32>
    %c2 = arith.constant 2 : index
    %c0_4 = arith.constant 0 : index
    %c0_5 = arith.constant 0 : index
    %8 = vector.load %arg1[%c2, %c0_4, %c0_5] : memref<3x6x210xf32, #tpu.memory_space<vmem>>, vector<1x6x210xf32>
    %9 = vector.shape_cast %8 : vector<1x6x210xf32> to vector<6x210xf32>
    %c0_6 = arith.constant 0 : index
    %c0_7 = arith.constant 0 : index
    %10 = vector.load %arg2[%c0_6, %c0_7] : memref<23x210xf32, #tpu.memory_space<vmem>>, vector<1x210xf32>
    %11 = vector.shape_cast %10 : vector<1x210xf32> to vector<210xf32>
    %c1_8 = arith.constant 1 : index
    %c0_9 = arith.constant 0 : index
    %12 = vector.load %arg2[%c1_8, %c0_9] : memref<23x210xf32, #tpu.memory_space<vmem>>, vector<1x210xf32>
    %13 = vector.shape_cast %12 : vector<1x210xf32> to vector<210xf32>
    %c6 = arith.constant 6 : index
    %c0_10 = arith.constant 0 : index
    %14 = vector.load %arg2[%c6, %c0_10] : memref<23x210xf32, #tpu.memory_space<vmem>>, vector<1x210xf32>
    %15 = vector.shape_cast %14 : vector<1x210xf32> to vector<210xf32>
    %16 = vector.shape_cast %11 : vector<210xf32> to vector<1x210xf32>
    %17 = vector.broadcast %16 : vector<1x210xf32> to vector<6x210xf32>
    %18 = arith.mulf %17, %5 : vector<6x210xf32>
    %19 = vector.shape_cast %13 : vector<210xf32> to vector<1x210xf32>
    %20 = vector.broadcast %19 : vector<1x210xf32> to vector<6x210xf32>
    %21 = arith.mulf %20, %7 : vector<6x210xf32>
    %22 = arith.addf %18, %21 : vector<6x210xf32>
    %23 = vector.shape_cast %15 : vector<210xf32> to vector<1x210xf32>
    %24 = vector.broadcast %23 : vector<1x210xf32> to vector<6x210xf32>
    %25 = arith.addf %22, %24 : vector<6x210xf32>
    %cst = arith.constant 0.000000e+00 : f32
    %26 = vector.broadcast %cst : f32 to vector<6x210xf32>
    %27 = arith.maximumf %25, %26 : vector<6x210xf32>
    %28 = vector.shape_cast %11 : vector<210xf32> to vector<1x210xf32>
    %29 = vector.broadcast %28 : vector<1x210xf32> to vector<6x210xf32>
    %30 = arith.mulf %29, %7 : vector<6x210xf32>
    %31 = vector.shape_cast %13 : vector<210xf32> to vector<1x210xf32>
    %32 = vector.broadcast %31 : vector<1x210xf32> to vector<6x210xf32>
    %33 = arith.mulf %32, %9 : vector<6x210xf32>
    %34 = arith.addf %30, %33 : vector<6x210xf32>
    %35 = vector.shape_cast %15 : vector<210xf32> to vector<1x210xf32>
    %36 = vector.broadcast %35 : vector<1x210xf32> to vector<6x210xf32>
    %37 = arith.addf %34, %36 : vector<6x210xf32>
    %cst_11 = arith.constant 0.000000e+00 : f32
    %38 = vector.broadcast %cst_11 : f32 to vector<6x210xf32>
    %39 = arith.maximumf %37, %38 : vector<6x210xf32>
    %40 = arith.maximumf %27, %39 : vector<6x210xf32>
    %41 = vector.extract_strided_slice %40 {offsets = [0, 0], sizes = [4, 210], strides = [1, 1]} : vector<6x210xf32> to vector<4x210xf32>
    %42 = vector.extract_strided_slice %40 {offsets = [2, 0], sizes = [4, 210], strides = [1, 1]} : vector<6x210xf32> to vector<4x210xf32>
    %c2_12 = arith.constant 2 : index
    %c0_13 = arith.constant 0 : index
    %43 = vector.load %arg2[%c2_12, %c0_13] : memref<23x210xf32, #tpu.memory_space<vmem>>, vector<1x210xf32>
    %44 = vector.shape_cast %43 : vector<1x210xf32> to vector<210xf32>
    %c3 = arith.constant 3 : index
    %c0_14 = arith.constant 0 : index
    %45 = vector.load %arg2[%c3, %c0_14] : memref<23x210xf32, #tpu.memory_space<vmem>>, vector<1x210xf32>
    %46 = vector.shape_cast %45 : vector<1x210xf32> to vector<210xf32>
    %c7 = arith.constant 7 : index
    %c0_15 = arith.constant 0 : index
    %47 = vector.load %arg2[%c7, %c0_15] : memref<23x210xf32, #tpu.memory_space<vmem>>, vector<1x210xf32>
    %48 = vector.shape_cast %47 : vector<1x210xf32> to vector<210xf32>
    %49 = vector.shape_cast %44 : vector<210xf32> to vector<1x210xf32>
    %50 = vector.broadcast %49 : vector<1x210xf32> to vector<6x210xf32>
    %51 = arith.mulf %50, %5 : vector<6x210xf32>
    %52 = vector.shape_cast %46 : vector<210xf32> to vector<1x210xf32>
    %53 = vector.broadcast %52 : vector<1x210xf32> to vector<6x210xf32>
    %54 = arith.mulf %53, %7 : vector<6x210xf32>
    %55 = arith.addf %51, %54 : vector<6x210xf32>
    %56 = vector.shape_cast %48 : vector<210xf32> to vector<1x210xf32>
    %57 = vector.broadcast %56 : vector<1x210xf32> to vector<6x210xf32>
    %58 = arith.addf %55, %57 : vector<6x210xf32>
    %cst_16 = arith.constant 0.000000e+00 : f32
    %59 = vector.broadcast %cst_16 : f32 to vector<6x210xf32>
    %60 = arith.maximumf %58, %59 : vector<6x210xf32>
    %61 = vector.shape_cast %44 : vector<210xf32> to vector<1x210xf32>
    %62 = vector.broadcast %61 : vector<1x210xf32> to vector<6x210xf32>
    %63 = arith.mulf %62, %7 : vector<6x210xf32>
    %64 = vector.shape_cast %46 : vector<210xf32> to vector<1x210xf32>
    %65 = vector.broadcast %64 : vector<1x210xf32> to vector<6x210xf32>
    %66 = arith.mulf %65, %9 : vector<6x210xf32>
    %67 = arith.addf %63, %66 : vector<6x210xf32>
    %68 = vector.shape_cast %48 : vector<210xf32> to vector<1x210xf32>
    %69 = vector.broadcast %68 : vector<1x210xf32> to vector<6x210xf32>
    %70 = arith.addf %67, %69 : vector<6x210xf32>
    %cst_17 = arith.constant 0.000000e+00 : f32
    %71 = vector.broadcast %cst_17 : f32 to vector<6x210xf32>
    %72 = arith.maximumf %70, %71 : vector<6x210xf32>
    %73 = arith.maximumf %60, %72 : vector<6x210xf32>
    %74 = vector.extract_strided_slice %73 {offsets = [0, 0], sizes = [4, 210], strides = [1, 1]} : vector<6x210xf32> to vector<4x210xf32>
    %75 = vector.extract_strided_slice %73 {offsets = [2, 0], sizes = [4, 210], strides = [1, 1]} : vector<6x210xf32> to vector<4x210xf32>
    %c4 = arith.constant 4 : index
    %c0_18 = arith.constant 0 : index
    %76 = vector.load %arg2[%c4, %c0_18] : memref<23x210xf32, #tpu.memory_space<vmem>>, vector<1x210xf32>
    %77 = vector.shape_cast %76 : vector<1x210xf32> to vector<210xf32>
    %c5 = arith.constant 5 : index
    %c0_19 = arith.constant 0 : index
    %78 = vector.load %arg2[%c5, %c0_19] : memref<23x210xf32, #tpu.memory_space<vmem>>, vector<1x210xf32>
    %79 = vector.shape_cast %78 : vector<1x210xf32> to vector<210xf32>
    %c8 = arith.constant 8 : index
    %c0_20 = arith.constant 0 : index
    %80 = vector.load %arg2[%c8, %c0_20] : memref<23x210xf32, #tpu.memory_space<vmem>>, vector<1x210xf32>
    %81 = vector.shape_cast %80 : vector<1x210xf32> to vector<210xf32>
    %82 = vector.shape_cast %77 : vector<210xf32> to vector<1x210xf32>
    %83 = vector.broadcast %82 : vector<1x210xf32> to vector<6x210xf32>
    %84 = arith.mulf %83, %5 : vector<6x210xf32>
    %85 = vector.shape_cast %79 : vector<210xf32> to vector<1x210xf32>
    %86 = vector.broadcast %85 : vector<1x210xf32> to vector<6x210xf32>
    %87 = arith.mulf %86, %7 : vector<6x210xf32>
    %88 = arith.addf %84, %87 : vector<6x210xf32>
    %89 = vector.shape_cast %81 : vector<210xf32> to vector<1x210xf32>
    %90 = vector.broadcast %89 : vector<1x210xf32> to vector<6x210xf32>
    %91 = arith.addf %88, %90 : vector<6x210xf32>
    %cst_21 = arith.constant 0.000000e+00 : f32
    %92 = vector.broadcast %cst_21 : f32 to vector<6x210xf32>
    %93 = arith.maximumf %91, %92 : vector<6x210xf32>
    %94 = vector.shape_cast %77 : vector<210xf32> to vector<1x210xf32>
    %95 = vector.broadcast %94 : vector<1x210xf32> to vector<6x210xf32>
    %96 = arith.mulf %95, %7 : vector<6x210xf32>
    %97 = vector.shape_cast %79 : vector<210xf32> to vector<1x210xf32>
    %98 = vector.broadcast %97 : vector<1x210xf32> to vector<6x210xf32>
    %99 = arith.mulf %98, %9 : vector<6x210xf32>
    %100 = arith.addf %96, %99 : vector<6x210xf32>
    %101 = vector.shape_cast %81 : vector<210xf32> to vector<1x210xf32>
    %102 = vector.broadcast %101 : vector<1x210xf32> to vector<6x210xf32>
    %103 = arith.addf %100, %102 : vector<6x210xf32>
    %cst_22 = arith.constant 0.000000e+00 : f32
    %104 = vector.broadcast %cst_22 : f32 to vector<6x210xf32>
    %105 = arith.maximumf %103, %104 : vector<6x210xf32>
    %106 = arith.maximumf %93, %105 : vector<6x210xf32>
    %107 = vector.extract_strided_slice %106 {offsets = [0, 0], sizes = [4, 210], strides = [1, 1]} : vector<6x210xf32> to vector<4x210xf32>
    %108 = vector.extract_strided_slice %106 {offsets = [2, 0], sizes = [4, 210], strides = [1, 1]} : vector<6x210xf32> to vector<4x210xf32>
    %c21 = arith.constant 21 : index
    %c0_23 = arith.constant 0 : index
    %109 = vector.load %arg2[%c21, %c0_23] : memref<23x210xf32, #tpu.memory_space<vmem>>, vector<1x210xf32>
    %110 = vector.shape_cast %109 : vector<1x210xf32> to vector<210xf32>
    %c9 = arith.constant 9 : index
    %c0_24 = arith.constant 0 : index
    %111 = vector.load %arg2[%c9, %c0_24] : memref<23x210xf32, #tpu.memory_space<vmem>>, vector<1x210xf32>
    %112 = vector.shape_cast %111 : vector<1x210xf32> to vector<210xf32>
    %113 = vector.shape_cast %112 : vector<210xf32> to vector<1x210xf32>
    %114 = vector.broadcast %113 : vector<1x210xf32> to vector<4x210xf32>
    %115 = arith.mulf %114, %41 : vector<4x210xf32>
    %116 = vector.shape_cast %110 : vector<210xf32> to vector<1x210xf32>
    %117 = vector.broadcast %116 : vector<1x210xf32> to vector<4x210xf32>
    %118 = arith.addf %117, %115 : vector<4x210xf32>
    %c10 = arith.constant 10 : index
    %c0_25 = arith.constant 0 : index
    %119 = vector.load %arg2[%c10, %c0_25] : memref<23x210xf32, #tpu.memory_space<vmem>>, vector<1x210xf32>
    %120 = vector.shape_cast %119 : vector<1x210xf32> to vector<210xf32>
    %121 = vector.shape_cast %120 : vector<210xf32> to vector<1x210xf32>
    %122 = vector.broadcast %121 : vector<1x210xf32> to vector<4x210xf32>
    %123 = arith.mulf %122, %42 : vector<4x210xf32>
    %124 = arith.addf %118, %123 : vector<4x210xf32>
    %c11 = arith.constant 11 : index
    %c0_26 = arith.constant 0 : index
    %125 = vector.load %arg2[%c11, %c0_26] : memref<23x210xf32, #tpu.memory_space<vmem>>, vector<1x210xf32>
    %126 = vector.shape_cast %125 : vector<1x210xf32> to vector<210xf32>
    %127 = vector.shape_cast %126 : vector<210xf32> to vector<1x210xf32>
    %128 = vector.broadcast %127 : vector<1x210xf32> to vector<4x210xf32>
    %129 = arith.mulf %128, %74 : vector<4x210xf32>
    %130 = arith.addf %124, %129 : vector<4x210xf32>
    %c12 = arith.constant 12 : index
    %c0_27 = arith.constant 0 : index
    %131 = vector.load %arg2[%c12, %c0_27] : memref<23x210xf32, #tpu.memory_space<vmem>>, vector<1x210xf32>
    %132 = vector.shape_cast %131 : vector<1x210xf32> to vector<210xf32>
    %133 = vector.shape_cast %132 : vector<210xf32> to vector<1x210xf32>
    %134 = vector.broadcast %133 : vector<1x210xf32> to vector<4x210xf32>
    %135 = arith.mulf %134, %75 : vector<4x210xf32>
    %136 = arith.addf %130, %135 : vector<4x210xf32>
    %c13 = arith.constant 13 : index
    %c0_28 = arith.constant 0 : index
    %137 = vector.load %arg2[%c13, %c0_28] : memref<23x210xf32, #tpu.memory_space<vmem>>, vector<1x210xf32>
    %138 = vector.shape_cast %137 : vector<1x210xf32> to vector<210xf32>
    %139 = vector.shape_cast %138 : vector<210xf32> to vector<1x210xf32>
    %140 = vector.broadcast %139 : vector<1x210xf32> to vector<4x210xf32>
    %141 = arith.mulf %140, %107 : vector<4x210xf32>
    %142 = arith.addf %136, %141 : vector<4x210xf32>
    %c14 = arith.constant 14 : index
    %c0_29 = arith.constant 0 : index
    %143 = vector.load %arg2[%c14, %c0_29] : memref<23x210xf32, #tpu.memory_space<vmem>>, vector<1x210xf32>
    %144 = vector.shape_cast %143 : vector<1x210xf32> to vector<210xf32>
    %145 = vector.shape_cast %144 : vector<210xf32> to vector<1x210xf32>
    %146 = vector.broadcast %145 : vector<1x210xf32> to vector<4x210xf32>
    %147 = arith.mulf %146, %108 : vector<4x210xf32>
    %148 = arith.addf %142, %147 : vector<4x210xf32>
    %cst_30 = arith.constant 0.000000e+00 : f32
    %149 = vector.broadcast %cst_30 : f32 to vector<4x210xf32>
    %150 = arith.maximumf %148, %149 : vector<4x210xf32>
    %151 = vector.extract_strided_slice %150 {offsets = [0, 0], sizes = [2, 210], strides = [1, 1]} : vector<4x210xf32> to vector<2x210xf32>
    %152 = vector.extract_strided_slice %150 {offsets = [2, 0], sizes = [2, 210], strides = [1, 1]} : vector<4x210xf32> to vector<2x210xf32>
    %153 = arith.maximumf %151, %152 : vector<2x210xf32>
    %c22 = arith.constant 22 : index
    %c0_31 = arith.constant 0 : index
    %154 = vector.load %arg2[%c22, %c0_31] : memref<23x210xf32, #tpu.memory_space<vmem>>, vector<1x210xf32>
    %155 = vector.shape_cast %154 : vector<1x210xf32> to vector<210xf32>
    %c15 = arith.constant 15 : index
    %c0_32 = arith.constant 0 : index
    %156 = vector.load %arg2[%c15, %c0_32] : memref<23x210xf32, #tpu.memory_space<vmem>>, vector<1x210xf32>
    %157 = vector.shape_cast %156 : vector<1x210xf32> to vector<210xf32>
    %158 = vector.shape_cast %157 : vector<210xf32> to vector<1x210xf32>
    %159 = vector.broadcast %158 : vector<1x210xf32> to vector<4x210xf32>
    %160 = arith.mulf %159, %41 : vector<4x210xf32>
    %161 = vector.shape_cast %155 : vector<210xf32> to vector<1x210xf32>
    %162 = vector.broadcast %161 : vector<1x210xf32> to vector<4x210xf32>
    %163 = arith.addf %162, %160 : vector<4x210xf32>
    %c16 = arith.constant 16 : index
    %c0_33 = arith.constant 0 : index
    %164 = vector.load %arg2[%c16, %c0_33] : memref<23x210xf32, #tpu.memory_space<vmem>>, vector<1x210xf32>
    %165 = vector.shape_cast %164 : vector<1x210xf32> to vector<210xf32>
    %166 = vector.shape_cast %165 : vector<210xf32> to vector<1x210xf32>
    %167 = vector.broadcast %166 : vector<1x210xf32> to vector<4x210xf32>
    %168 = arith.mulf %167, %42 : vector<4x210xf32>
    %169 = arith.addf %163, %168 : vector<4x210xf32>
    %c17 = arith.constant 17 : index
    %c0_34 = arith.constant 0 : index
    %170 = vector.load %arg2[%c17, %c0_34] : memref<23x210xf32, #tpu.memory_space<vmem>>, vector<1x210xf32>
    %171 = vector.shape_cast %170 : vector<1x210xf32> to vector<210xf32>
    %172 = vector.shape_cast %171 : vector<210xf32> to vector<1x210xf32>
    %173 = vector.broadcast %172 : vector<1x210xf32> to vector<4x210xf32>
    %174 = arith.mulf %173, %74 : vector<4x210xf32>
    %175 = arith.addf %169, %174 : vector<4x210xf32>
    %c18 = arith.constant 18 : index
    %c0_35 = arith.constant 0 : index
    %176 = vector.load %arg2[%c18, %c0_35] : memref<23x210xf32, #tpu.memory_space<vmem>>, vector<1x210xf32>
    %177 = vector.shape_cast %176 : vector<1x210xf32> to vector<210xf32>
    %178 = vector.shape_cast %177 : vector<210xf32> to vector<1x210xf32>
    %179 = vector.broadcast %178 : vector<1x210xf32> to vector<4x210xf32>
    %180 = arith.mulf %179, %75 : vector<4x210xf32>
    %181 = arith.addf %175, %180 : vector<4x210xf32>
    %c19 = arith.constant 19 : index
    %c0_36 = arith.constant 0 : index
    %182 = vector.load %arg2[%c19, %c0_36] : memref<23x210xf32, #tpu.memory_space<vmem>>, vector<1x210xf32>
    %183 = vector.shape_cast %182 : vector<1x210xf32> to vector<210xf32>
    %184 = vector.shape_cast %183 : vector<210xf32> to vector<1x210xf32>
    %185 = vector.broadcast %184 : vector<1x210xf32> to vector<4x210xf32>
    %186 = arith.mulf %185, %107 : vector<4x210xf32>
    %187 = arith.addf %181, %186 : vector<4x210xf32>
    %c20 = arith.constant 20 : index
    %c0_37 = arith.constant 0 : index
    %188 = vector.load %arg2[%c20, %c0_37] : memref<23x210xf32, #tpu.memory_space<vmem>>, vector<1x210xf32>
    %189 = vector.shape_cast %188 : vector<1x210xf32> to vector<210xf32>
    %190 = vector.shape_cast %189 : vector<210xf32> to vector<1x210xf32>
    %191 = vector.broadcast %190 : vector<1x210xf32> to vector<4x210xf32>
    %192 = arith.mulf %191, %108 : vector<4x210xf32>
    %193 = arith.addf %187, %192 : vector<4x210xf32>
    %cst_38 = arith.constant 0.000000e+00 : f32
    %194 = vector.broadcast %cst_38 : f32 to vector<4x210xf32>
    %195 = arith.maximumf %193, %194 : vector<4x210xf32>
    %196 = vector.extract_strided_slice %195 {offsets = [0, 0], sizes = [2, 210], strides = [1, 1]} : vector<4x210xf32> to vector<2x210xf32>
    %197 = vector.extract_strided_slice %195 {offsets = [2, 0], sizes = [2, 210], strides = [1, 1]} : vector<4x210xf32> to vector<2x210xf32>
    %198 = arith.maximumf %196, %197 : vector<2x210xf32>
    %199 = vector.extract_strided_slice %153 {offsets = [0, 0], sizes = [2, 35], strides = [1, 1]} : vector<2x210xf32> to vector<2x35xf32>
    %200 = vector.extract_strided_slice %198 {offsets = [0, 0], sizes = [2, 35], strides = [1, 1]} : vector<2x210xf32> to vector<2x35xf32>
    %201 = tpu.concatenate %199, %200 in 1 : vector<2x35xf32>, vector<2x35xf32> -> vector<2x70xf32>
    %202 = vector.extract_strided_slice %153 {offsets = [0, 35], sizes = [2, 35], strides = [1, 1]} : vector<2x210xf32> to vector<2x35xf32>
    %203 = vector.extract_strided_slice %198 {offsets = [0, 35], sizes = [2, 35], strides = [1, 1]} : vector<2x210xf32> to vector<2x35xf32>
    %204 = tpu.concatenate %202, %203 in 1 : vector<2x35xf32>, vector<2x35xf32> -> vector<2x70xf32>
    %205 = vector.extract_strided_slice %153 {offsets = [0, 70], sizes = [2, 35], strides = [1, 1]} : vector<2x210xf32> to vector<2x35xf32>
    %206 = vector.extract_strided_slice %198 {offsets = [0, 70], sizes = [2, 35], strides = [1, 1]} : vector<2x210xf32> to vector<2x35xf32>
    %207 = tpu.concatenate %205, %206 in 1 : vector<2x35xf32>, vector<2x35xf32> -> vector<2x70xf32>
    %208 = vector.extract_strided_slice %153 {offsets = [0, 105], sizes = [2, 35], strides = [1, 1]} : vector<2x210xf32> to vector<2x35xf32>
    %209 = vector.extract_strided_slice %198 {offsets = [0, 105], sizes = [2, 35], strides = [1, 1]} : vector<2x210xf32> to vector<2x35xf32>
    %210 = tpu.concatenate %208, %209 in 1 : vector<2x35xf32>, vector<2x35xf32> -> vector<2x70xf32>
    %211 = vector.extract_strided_slice %153 {offsets = [0, 140], sizes = [2, 35], strides = [1, 1]} : vector<2x210xf32> to vector<2x35xf32>
    %212 = vector.extract_strided_slice %198 {offsets = [0, 140], sizes = [2, 35], strides = [1, 1]} : vector<2x210xf32> to vector<2x35xf32>
    %213 = tpu.concatenate %211, %212 in 1 : vector<2x35xf32>, vector<2x35xf32> -> vector<2x70xf32>
    %214 = vector.extract_strided_slice %153 {offsets = [0, 175], sizes = [2, 35], strides = [1, 1]} : vector<2x210xf32> to vector<2x35xf32>
    %215 = vector.extract_strided_slice %198 {offsets = [0, 175], sizes = [2, 35], strides = [1, 1]} : vector<2x210xf32> to vector<2x35xf32>
    %216 = tpu.concatenate %214, %215 in 1 : vector<2x35xf32>, vector<2x35xf32> -> vector<2x70xf32>
    %217 = vector.shape_cast %201 : vector<2x70xf32> to vector<1x2x70xf32>
    %218 = vector.shape_cast %204 : vector<2x70xf32> to vector<1x2x70xf32>
    %219 = vector.shape_cast %207 : vector<2x70xf32> to vector<1x2x70xf32>
    %220 = vector.shape_cast %210 : vector<2x70xf32> to vector<1x2x70xf32>
    %221 = vector.shape_cast %213 : vector<2x70xf32> to vector<1x2x70xf32>
    %222 = vector.shape_cast %216 : vector<2x70xf32> to vector<1x2x70xf32>
    %223 = tpu.concatenate %217, %218, %219, %220, %221, %222 in 0 : vector<1x2x70xf32>, vector<1x2x70xf32>, vector<1x2x70xf32>, vector<1x2x70xf32>, vector<1x2x70xf32>, vector<1x2x70xf32> -> vector<6x2x70xf32>
    %224 = arith.truncf %223 : vector<6x2x70xf32> to vector<6x2x70xbf16>
    %c0_39 = arith.constant 0 : index
    %c0_40 = arith.constant 0 : index
    %c0_41 = arith.constant 0 : index
    %225 = vector.load %arg0[%c0_39, %c0_40, %c0_41] : memref<2x16x16xf32, #tpu.memory_space<vmem>>, vector<2x16x16xf32>
    %226 = vector.extract_strided_slice %225 {offsets = [0, 0, 0], sizes = [1, 16, 16], strides = [1, 1, 1]} : vector<2x16x16xf32> to vector<1x16x16xf32>
    %227 = vector.shape_cast %226 : vector<1x16x16xf32> to vector<16x16xf32>
    %228 = vector.extract_strided_slice %225 {offsets = [1, 0, 0], sizes = [1, 16, 16], strides = [1, 1, 1]} : vector<2x16x16xf32> to vector<1x16x16xf32>
    %229 = vector.shape_cast %228 : vector<1x16x16xf32> to vector<16x16xf32>
    %230 = tpu.concatenate %227, %229 in 0 : vector<16x16xf32>, vector<16x16xf32> -> vector<32x16xf32>
    %231 = arith.truncf %230 : vector<32x16xf32> to vector<32x16xbf16>
    %c0_42 = arith.constant 0 : index
    %c0_43 = arith.constant 0 : index
    %232 = vector.load %arg3[%c0_42, %c0_43] : memref<16x96xbf16, #tpu.memory_space<vmem>>, vector<16x96xbf16>
    %cst_44 = arith.constant dense<0.000000e+00> : vector<32x96xf32>
    %233 = tpu.matmul %231, %232, %cst_44 {dimension_numbers = #tpu.dot_dimension_numbers<[1], [0], [0], [1], [0, 0, 1, 1], [], []>} : vector<32x16xbf16>, vector<16x96xbf16>, vector<32x96xf32> -> vector<32x96xf32>
    %c0_45 = arith.constant 0 : index
    %c0_46 = arith.constant 0 : index
    %234 = vector.load %arg5[%c0_45, %c0_46] : memref<3x96xf32, #tpu.memory_space<vmem>>, vector<1x96xf32>
    %235 = vector.broadcast %234 : vector<1x96xf32> to vector<32x96xf32>
    %236 = arith.addf %233, %235 : vector<32x96xf32>
    %237 = math.tanh %236 : vector<32x96xf32>
    %238 = arith.truncf %237 : vector<32x96xf32> to vector<32x96xbf16>
    %c0_47 = arith.constant 0 : index
    %c0_48 = arith.constant 0 : index
    %239 = vector.load %arg4[%c0_47, %c0_48] : memref<96x6xbf16, #tpu.memory_space<vmem>>, vector<96x6xbf16>
    %cst_49 = arith.constant dense<0.000000e+00> : vector<32x6xf32>
    %240 = tpu.matmul %238, %239, %cst_49 {dimension_numbers = #tpu.dot_dimension_numbers<[1], [0], [0], [1], [0, 0, 1, 1], [], []>} : vector<32x96xbf16>, vector<96x6xbf16>, vector<32x6xf32> -> vector<32x6xf32>
    %c1_50 = arith.constant 1 : index
    %c0_51 = arith.constant 0 : index
    %241 = vector.load %arg5[%c1_50, %c0_51] : memref<3x96xf32, #tpu.memory_space<vmem>>, vector<1x6xf32>
    %242 = vector.broadcast %241 : vector<1x6xf32> to vector<32x6xf32>
    %243 = arith.addf %240, %242 : vector<32x6xf32>
    %244 = tpu.iota {dimensions = array<i32: 0>} : vector<32x6xi32>
    %c16_i32 = arith.constant 16 : i32
    %c0_i32_52 = arith.constant 0 : i32
    %245 = arith.cmpi eq, %c16_i32, %c0_i32_52 : i32
    %c1_i32_53 = arith.constant 1 : i32
    %246 = arith.select %245, %c1_i32_53, %c16_i32 : i32
    %247 = vector.broadcast %246 : i32 to vector<32x6xi32>
    %248 = arith.remsi %244, %247 : vector<32x6xi32>
    %c0_i32_54 = arith.constant 0 : i32
    %249 = vector.broadcast %c0_i32_54 : i32 to vector<32x6xi32>
    %250 = arith.cmpi ne, %248, %249 : vector<32x6xi32>
    %c0_i32_55 = arith.constant 0 : i32
    %251 = vector.broadcast %c0_i32_55 : i32 to vector<32x6xi32>
    %252 = arith.cmpi slt, %248, %251 : vector<32x6xi32>
    %c0_i32_56 = arith.constant 0 : i32
    %253 = arith.cmpi slt, %246, %c0_i32_56 : i32
    %254 = vector.broadcast %253 : i1 to vector<32x6xi1>
    %255 = vector.broadcast %254 : vector<32x6xi1> to vector<32x6xi1>
    %256 = arith.xori %252, %255 : vector<32x6xi1>
    %257 = arith.andi %256, %250 : vector<32x6xi1>
    %258 = vector.broadcast %246 : i32 to vector<32x6xi32>
    %259 = arith.addi %248, %258 : vector<32x6xi32>
    %260 = arith.select %257, %259, %248 : vector<32x6xi1>, vector<32x6xi32>
    %c9_i32 = arith.constant 9 : i32
    %261 = vector.broadcast %c9_i32 : i32 to vector<32x6xi32>
    %262 = arith.cmpi slt, %260, %261 : vector<32x6xi32>
    %cst_57 = arith.constant -1.000000e+30 : f32
    %263 = vector.broadcast %cst_57 : f32 to vector<32x6xf32>
    %264 = arith.select %262, %243, %263 : vector<32x6xi1>, vector<32x6xf32>
    %265 = vector.extract_strided_slice %264 {offsets = [0, 0], sizes = [16, 6], strides = [1, 1]} : vector<32x6xf32> to vector<16x6xf32>
    %cst_58 = arith.constant dense<0xFF800000> : vector<6xf32>
    %266 = vector.multi_reduction <maximumf>, %265, %cst_58 [0] : vector<16x6xf32> to vector<6xf32>
    %267 = vector.shape_cast %266 : vector<6xf32> to vector<1x6xf32>
    %268 = vector.broadcast %267 : vector<1x6xf32> to vector<16x6xf32>
    %269 = arith.subf %265, %268 : vector<16x6xf32>
    %270 = math.exp %269 : vector<16x6xf32>
    %cst_59 = arith.constant dense<0.000000e+00> : vector<6xf32>
    %271 = vector.multi_reduction <add>, %270, %cst_59 [0] : vector<16x6xf32> to vector<6xf32>
    %272 = vector.shape_cast %271 : vector<6xf32> to vector<1x6xf32>
    %273 = vector.broadcast %272 : vector<1x6xf32> to vector<16x6xf32>
    %274 = arith.divf %270, %273 : vector<16x6xf32>
    %275 = tpu.transpose %274, [1, 0] : vector<16x6xf32> -> vector<6x16xf32>
    %276 = vector.extract_strided_slice %225 {offsets = [0, 0, 0], sizes = [1, 16, 16], strides = [1, 1, 1]} : vector<2x16x16xf32> to vector<1x16x16xf32>
    %277 = vector.shape_cast %276 : vector<1x16x16xf32> to vector<16x16xf32>
    %cst_60 = arith.constant dense<0.000000e+00> : vector<6x16xf32>
    %278 = tpu.matmul %275, %277, %cst_60 {dimension_numbers = #tpu.dot_dimension_numbers<[1], [0], [0], [1], [0, 0, 1, 1], [], []>} : vector<6x16xf32>, vector<16x16xf32>, vector<6x16xf32> -> vector<6x16xf32>
    %279 = vector.extract_strided_slice %264 {offsets = [16, 0], sizes = [16, 6], strides = [1, 1]} : vector<32x6xf32> to vector<16x6xf32>
    %cst_61 = arith.constant dense<0xFF800000> : vector<6xf32>
    %280 = vector.multi_reduction <maximumf>, %279, %cst_61 [0] : vector<16x6xf32> to vector<6xf32>
    %281 = vector.shape_cast %280 : vector<6xf32> to vector<1x6xf32>
    %282 = vector.broadcast %281 : vector<1x6xf32> to vector<16x6xf32>
    %283 = arith.subf %279, %282 : vector<16x6xf32>
    %284 = math.exp %283 : vector<16x6xf32>
    %cst_62 = arith.constant dense<0.000000e+00> : vector<6xf32>
    %285 = vector.multi_reduction <add>, %284, %cst_62 [0] : vector<16x6xf32> to vector<6xf32>
    %286 = vector.shape_cast %285 : vector<6xf32> to vector<1x6xf32>
    %287 = vector.broadcast %286 : vector<1x6xf32> to vector<16x6xf32>
    %288 = arith.divf %284, %287 : vector<16x6xf32>
    %289 = tpu.transpose %288, [1, 0] : vector<16x6xf32> -> vector<6x16xf32>
    %290 = vector.extract_strided_slice %225 {offsets = [1, 0, 0], sizes = [1, 16, 16], strides = [1, 1, 1]} : vector<2x16x16xf32> to vector<1x16x16xf32>
    %291 = vector.shape_cast %290 : vector<1x16x16xf32> to vector<16x16xf32>
    %cst_63 = arith.constant dense<0.000000e+00> : vector<6x16xf32>
    %292 = tpu.matmul %289, %291, %cst_63 {dimension_numbers = #tpu.dot_dimension_numbers<[1], [0], [0], [1], [0, 0, 1, 1], [], []>} : vector<6x16xf32>, vector<16x16xf32>, vector<6x16xf32> -> vector<6x16xf32>
    %293 = vector.extract_strided_slice %275 {offsets = [0, 0], sizes = [6, 9], strides = [1, 1]} : vector<6x16xf32> to vector<6x9xf32>
    %294 = vector.extract_strided_slice %289 {offsets = [0, 0], sizes = [6, 9], strides = [1, 1]} : vector<6x16xf32> to vector<6x9xf32>
    %295 = vector.shape_cast %293 : vector<6x9xf32> to vector<1x6x9xf32>
    %296 = vector.shape_cast %294 : vector<6x9xf32> to vector<1x6x9xf32>
    %297 = tpu.concatenate %295, %296 in 0 : vector<1x6x9xf32>, vector<1x6x9xf32> -> vector<2x6x9xf32>
    %c0_64 = arith.constant 0 : index
    %c0_65 = arith.constant 0 : index
    %c0_66 = arith.constant 0 : index
    %298 = vector.load %arg10[%c0_64, %c0_65, %c0_66] : memref<2x6x9xf32, #tpu.memory_space<vmem>>, vector<2x6x9xf32>
    tpu.vector_store %arg10[%c0_64, %c0_65, %c0_66], %297 {strides = array<i32>} : memref<2x6x9xf32, #tpu.memory_space<vmem>>, vector<2x6x9xf32>,
    %299 = vector.shape_cast %278 : vector<6x16xf32> to vector<6x1x16xf32>
    %300 = vector.shape_cast %292 : vector<6x16xf32> to vector<6x1x16xf32>
    %301 = tpu.concatenate %299, %300 in 1 : vector<6x1x16xf32>, vector<6x1x16xf32> -> vector<6x2x16xf32>
    %302 = arith.truncf %301 : vector<6x2x16xf32> to vector<6x2x16xbf16>
    %303 = tpu.concatenate %302, %224 in 2 : vector<6x2x16xbf16>, vector<6x2x70xbf16> -> vector<6x2x86xbf16>
    %c0_67 = arith.constant 0 : index
    %c0_68 = arith.constant 0 : index
    %c0_69 = arith.constant 0 : index
    %304 = vector.load %arg7[%c0_67, %c0_68, %c0_69] : memref<6x3x128xf32, #tpu.memory_space<vmem>>, vector<6x1x128xf32>
    %c0_70 = arith.constant 0 : index
    %c1_71 = arith.constant 1 : index
    %c0_72 = arith.constant 0 : index
    %305 = vector.load %arg7[%c0_70, %c1_71, %c0_72] : memref<6x3x128xf32, #tpu.memory_space<vmem>>, vector<6x1x64xf32>
    %c0_73 = arith.constant 0 : index
    %c2_74 = arith.constant 2 : index
    %c0_75 = arith.constant 0 : index
    %306 = vector.load %arg7[%c0_73, %c2_74, %c0_75] : memref<6x3x128xf32, #tpu.memory_space<vmem>>, vector<6x1x64xf32>
    %c0_i32_76 = arith.constant 0 : i32
    %307 = tpu.memref_slice %arg13[%c0_i32_76] : memref<2x!tpu.dma_semaphore, #tpu.memory_space<semaphore_mem>> -> memref<1x!tpu.dma_semaphore, #tpu.memory_space<semaphore_mem>>
    %308 = tpu.memref_squeeze %307 : memref<1x!tpu.dma_semaphore, #tpu.memory_space<semaphore_mem>> -> memref<!tpu.dma_semaphore, #tpu.memory_space<semaphore_mem>>
    tpu.wait_dma2 semaphore(%308 : memref<!tpu.dma_semaphore, #tpu.memory_space<semaphore_mem>>) src(%arg6 : memref<6x86x128xbf16, #tpu.memory_space<any>>) dst(%arg11 : memref<6x86x128xbf16, #tpu.memory_space<vmem>>)
    %c0_77 = arith.constant 0 : index
    %c0_78 = arith.constant 0 : index
    %c0_79 = arith.constant 0 : index
    %309 = vector.load %arg11[%c0_77, %c0_78, %c0_79] : memref<6x86x128xbf16, #tpu.memory_space<vmem>>, vector<6x86x128xbf16>
    "tpu.trace_start"() <{level = 10 : i32, message = "mbf,mfh->mbh"}> : () -> ()
    %cst_80 = arith.constant dense<0.000000e+00> : vector<6x2x128xf32>
    %310 = tpu.matmul %303, %309, %cst_80 {dimension_numbers = #tpu.dot_dimension_numbers<[2], [1], [1], [2], [0, 0, 0, 1, 1, 2], [0], [0]>} : vector<6x2x86xbf16>, vector<6x86x128xbf16>, vector<6x2x128xf32> -> vector<6x2x128xf32>
    "tpu.trace_stop"() : () -> ()
    %311 = vector.broadcast %304 : vector<6x1x128xf32> to vector<6x2x128xf32>
    %312 = arith.addf %310, %311 : vector<6x2x128xf32>
    %cst_81 = arith.constant 0.000000e+00 : f32
    %313 = vector.broadcast %cst_81 : f32 to vector<6x2x128xf32>
    %314 = arith.maximumf %312, %313 : vector<6x2x128xf32>
    %c1_i32_82 = arith.constant 1 : i32
    %315 = tpu.memref_slice %arg13[%c1_i32_82] : memref<2x!tpu.dma_semaphore, #tpu.memory_space<semaphore_mem>> -> memref<1x!tpu.dma_semaphore, #tpu.memory_space<semaphore_mem>>
    %316 = tpu.memref_squeeze %315 : memref<1x!tpu.dma_semaphore, #tpu.memory_space<semaphore_mem>> -> memref<!tpu.dma_semaphore, #tpu.memory_space<semaphore_mem>>
    tpu.wait_dma2 semaphore(%316 : memref<!tpu.dma_semaphore, #tpu.memory_space<semaphore_mem>>) src(%arg8 : memref<6x128x64xbf16, #tpu.memory_space<any>>) dst(%arg12 : memref<6x128x64xbf16, #tpu.memory_space<vmem>>)
    %317 = arith.truncf %314 : vector<6x2x128xf32> to vector<6x2x128xbf16>
    %c0_83 = arith.constant 0 : index
    %c0_84 = arith.constant 0 : index
    %c0_85 = arith.constant 0 : index
    %318 = vector.load %arg12[%c0_83, %c0_84, %c0_85] : memref<6x128x64xbf16, #tpu.memory_space<vmem>>, vector<6x128x64xbf16>
    "tpu.trace_start"() <{level = 10 : i32, message = "mbh,mhk->mbk"}> : () -> ()
    %cst_86 = arith.constant dense<0.000000e+00> : vector<6x2x64xf32>
    %319 = tpu.matmul %317, %318, %cst_86 {dimension_numbers = #tpu.dot_dimension_numbers<[2], [1], [1], [2], [0, 0, 0, 1, 1, 2], [0], [0]>} : vector<6x2x128xbf16>, vector<6x128x64xbf16>, vector<6x2x64xf32> -> vector<6x2x64xf32>
    "tpu.trace_stop"() : () -> ()
    %320 = vector.broadcast %305 : vector<6x1x64xf32> to vector<6x2x64xf32>
    %321 = arith.addf %319, %320 : vector<6x2x64xf32>
    %cst_87 = arith.constant 0.000000e+00 : f32
    %322 = vector.broadcast %cst_87 : f32 to vector<6x2x64xf32>
    %323 = arith.maximumf %321, %322 : vector<6x2x64xf32>
    %324 = vector.broadcast %306 : vector<6x1x64xf32> to vector<6x2x64xf32>
    %325 = arith.mulf %323, %324 : vector<6x2x64xf32>
    %cst_88 = arith.constant dense<0.000000e+00> : vector<6x2xf32>
    %326 = vector.multi_reduction <add>, %325, %cst_88 [2] : vector<6x2x64xf32> to vector<6x2xf32>
    %327 = tpu.transpose %326, [1, 0] : vector<6x2xf32> -> vector<2x6xf32>
    %c2_89 = arith.constant 2 : index
    %c0_90 = arith.constant 0 : index
    %328 = vector.load %arg5[%c2_89, %c0_90] : memref<3x96xf32, #tpu.memory_space<vmem>>, vector<1x6xf32>
    %329 = vector.broadcast %328 : vector<1x6xf32> to vector<2x6xf32>
    %330 = arith.addf %327, %329 : vector<2x6xf32>
    %cst_91 = arith.constant 0.000000e+00 : f32
    %331 = vector.broadcast %cst_91 : f32 to vector<2x6xf32>
    %332 = arith.subf %331, %330 : vector<2x6xf32>
    %333 = math.exp %332 : vector<2x6xf32>
    %cst_92 = arith.constant 1.000000e+00 : f32
    %334 = vector.broadcast %cst_92 : f32 to vector<2x6xf32>
    %335 = arith.addf %334, %333 : vector<2x6xf32>
    %cst_93 = arith.constant 1.000000e+00 : f32
    %336 = vector.broadcast %cst_93 : f32 to vector<2x6xf32>
    %337 = arith.divf %336, %335 : vector<2x6xf32>
    %c0_94 = arith.constant 0 : index
    %c0_95 = arith.constant 0 : index
    %338 = vector.load %arg9[%c0_94, %c0_95] : memref<2x6xf32, #tpu.memory_space<vmem>>, vector<2x6xf32>
    tpu.vector_store %arg9[%c0_94, %c0_95], %337 {strides = array<i32>} : memref<2x6xf32, #tpu.memory_space<vmem>>, vector<2x6xf32>,
    return
  }
}

</mosaic_0001>

<llo_original>
// kernel: ml_model7_forward.1
$region0: #{ml_model7_forward.1}
  #allocation0 [shape = 'u32[]', space=smem, size = 0x4, offset = 0x4, fixed_abs, tag = 'smem constant byte address 0x4 - core index']
  #allocation1 [shape = 'u32[144,128]{1,0:T(1,128)}', space=vmem, size = 0x12000, scoped, tag = 'internal scratch']
  #allocation2 [shape = 'bf16[6,86,128]{2,1,0:T(8,128)(2,1)}', space=vmem, size = 0x21000, scoped, tag = 'scratch operand']
  #allocation3 [shape = 'bf16[6,128,64]{2,1,0:T(8,128)(2,1)}', space=vmem, size = 0x30000, scoped, tag = 'scratch operand']
  #allocation4 [shape = 's32[2]{0}', space=sflag, size = 0x8, scoped, tag = 'scratch operand']
  #allocation7 [shape = 's32[]', space=sflag, size = 0x4, offset = 0, fixed_abs, tag = 'sflag constant byte address 0x0 - dummy sync flag']
  #allocation8 [shape = 's32[]', space=sflag, size = 0x4, offset = 0, fixed_abs, tag = 'sflag constant byte address 0x0 - dummy sync flag']
  %s0 = inlined_call_operand.vmem [shape: f32[2,16,16], index: 0, kind: input, shape index: {}]
  %s1 = inlined_call_operand.vmem [shape: f32[3,6,210], index: 1, kind: input, shape index: {}]
  %s2 = inlined_call_operand.vmem [shape: f32[23,210], index: 2, kind: input, shape index: {}]
  %s3 = inlined_call_operand.vmem [shape: bf16[16,96], index: 3, kind: input, shape index: {}]
  %s4 = inlined_call_operand.vmem [shape: bf16[96,6], index: 4, kind: input, shape index: {}]
  %s5 = inlined_call_operand.vmem [shape: f32[3,96], index: 5, kind: input, shape index: {}]
  %s6 = inlined_call_operand.vmem [shape: bf16[6,86,128], index: 6, kind: input, shape index: {}]
  %s7 = inlined_call_operand.vmem [shape: f32[6,3,128], index: 7, kind: input, shape index: {}]
  %s8 = inlined_call_operand.vmem [shape: bf16[6,128,64], index: 8, kind: input, shape index: {}]
  %s9 = inlined_call_operand.hbm [shape: f32[2,6], index: 9, kind: output, shape index: {0}]
  %s10 = inlined_call_operand.vmem [shape: f32[2,6,9], index: 10, kind: output, shape index: {1}]
  %11 = xla_tuple %s9, %s10
  %s12 = sld [smem:[#allocation0]]
  $region114: #{ml_model7_forward.1} parent=0
    _
  %s14 = ssub.s32 1, %s12
  %s15 = scalar_select 0, %s14, %s12
  $region1: #{ml_model7_forward.1} parent=0
    #allocation5 [shape = 'u8[1024]{0}', space=vmem, size = 0x400, scoped, tag = 'output window, operand 0, single buffered']
    #allocation6 [shape = 's32[1]{0}', space=sflag, size = 0x4, scoped, tag = 'scoped memory for ml_model7_forward.1']
    %16 = vsyncpa [#allocation6], 0
    // Predicated region
    $region2: #{ml_model7_forward.1} parent=1 // pred_check
      _
    $region3: #{ml_model7_forward.1} parent=1 // pred_check_branch
      %18 = sbr.rel (0) target = $region5
    $region4: #{ml_model7_forward.1} parent=1 // pred_region
      _
    $region5: #{ml_model7_forward.1} parent=1 // pred_fallthru
      _
    // Predicated region
    $region6: #{ml_model7_forward.1} parent=1 // pred_check
      _
    $region7: #{ml_model7_forward.1} parent=1 // pred_check_branch
      %20 = sbr.rel (0) target = $region9
    $region8: #{ml_model7_forward.1} parent=1 // pred_region
      _
    $region9: #{ml_model7_forward.1} parent=1 // pred_fallthru
      _
    // Predicated region
    $region10: #{ml_model7_forward.1} parent=1 // pred_check
      _
    $region11: #{ml_model7_forward.1} parent=1 // pred_check_branch
      %22 = sbr.rel (0) target = $region13
    $region12: #{ml_model7_forward.1} parent=1 // pred_region
      _
    $region13: #{ml_model7_forward.1} parent=1 // pred_fallthru
      _
    // Predicated region
    $region14: #{ml_model7_forward.1} parent=1 // pred_check
      _
    $region15: #{ml_model7_forward.1} parent=1 // pred_check_branch
      %24 = sbr.rel (0) target = $region17
    $region16: #{ml_model7_forward.1} parent=1 // pred_region
      _
    $region17: #{ml_model7_forward.1} parent=1 // pred_fallthru
      _
    // Predicated region
    $region18: #{ml_model7_forward.1} parent=1 // pred_check
      _
    $region19: #{ml_model7_forward.1} parent=1 // pred_check_branch
      %26 = sbr.rel (0) target = $region21
    $region20: #{ml_model7_forward.1} parent=1 // pred_region
      _
    $region21: #{ml_model7_forward.1} parent=1 // pred_fallthru
      _
    // Predicated region
    $region22: #{ml_model7_forward.1} parent=1 // pred_check
      _
    $region23: #{ml_model7_forward.1} parent=1 // pred_check_branch
      %28 = sbr.rel (0) target = $region25
    $region24: #{ml_model7_forward.1} parent=1 // pred_region
      _
    $region25: #{ml_model7_forward.1} parent=1 // pred_fallthru
      _
    // Predicated region
    $region26: #{ml_model7_forward.1} parent=1 // pred_check
      _
    $region27: #{ml_model7_forward.1} parent=1 // pred_check_branch
      %30 = sbr.rel (0) target = $region29
    $region28: #{ml_model7_forward.1} parent=1 // pred_region
      _
    $region29: #{ml_model7_forward.1} parent=1 // pred_fallthru
      _
    %p33 = scmp.lt.u32.totalorder 264, 8
    %p34 = pneg %p33
    // Predicated region
    $region30: #{ml_model7_forward.1} parent=1 // pred_check
      _
    $region31: #{ml_model7_forward.1} parent=1 // pred_check_branch
      %36 = sbr.rel (%p33) target = $region33
    $region32: #{ml_model7_forward.1} parent=1 // pred_region
      %s52 = sand.u32 264, 7
      %p53 = scmp.eq.s32.totalorder %s52, 0
      // Predicated region
      $region45: #{ml_model7_forward.1} parent=32 // pred_check
        %p54 = pneg %p53
      $region46: #{ml_model7_forward.1} parent=32 // pred_check_branch
        %56 = sbr.rel (%p54) target = $region48
      $region47: #{ml_model7_forward.1} parent=32 // pred_region
        loop: start=0, step=1, limit=1
        $region49: #{ml_model7_forward.1} parent=47 // loop_pre_header
          _
        $region50: #{ml_model7_forward.1} parent=47 // loop_header
          %s58 = sphi 0, %s62
          %p59 = scmp.ge.s32.totalorder %s58, 1
          %s63 = sphi %s6, %s6
          %s64 = sphi [#allocation2], [#allocation2]
        $region51: #{ml_model7_forward.1} parent=47 // loop_header_branch
          %61 = sbr.rel (%p59) target = $region55
        $region52: #{ml_model7_forward.1} parent=47 // loop_body
          %v65 = vld [vmem:[%s63] sm:$0xff]
          %66 = vst [vmem:[%s64] sm:$0xff] %v65
          %v67 = vld [vmem:[%s63 + $0x8] sm:$0xff]
          %68 = vst [vmem:[%s64 + $0x8] sm:$0xff] %v67
          %v69 = vld [vmem:[%s63 + $0x10] sm:$0xff]
          %70 = vst [vmem:[%s64 + $0x10] sm:$0xff] %v69
          %v71 = vld [vmem:[%s63 + $0x18] sm:$0xff]
          %72 = vst [vmem:[%s64 + $0x18] sm:$0xff] %v71
          %v73 = vld [vmem:[%s63 + $0x20] sm:$0xff]
          %74 = vst [vmem:[%s64 + $0x20] sm:$0xff] %v73
          %v75 = vld [vmem:[%s63 + $0x28] sm:$0xff]
          %76 = vst [vmem:[%s64 + $0x28] sm:$0xff] %v75
          %v77 = vld [vmem:[%s63 + $0x30] sm:$0xff]
          %78 = vst [vmem:[%s64 + $0x30] sm:$0xff] %v77
          %v79 = vld [vmem:[%s63 + $0x38] sm:$0xff]
          %80 = vst [vmem:[%s64 + $0x38] sm:$0xff] %v79
          %v81 = vld [vmem:[%s63 + $0x40] sm:$0xff]
          %82 = vst [vmem:[%s64 + $0x40] sm:$0xff] %v81
          %v83 = vld [vmem:[%s63 + $0x48] sm:$0xff]
          %84 = vst [vmem:[%s64 + $0x48] sm:$0xff] %v83
          %v85 = vld [vmem:[%s63 + $0x50] sm:$0xff]
          %86 = vst [vmem:[%s64 + $0x50] sm:$0xff] %v85
          %v87 = vld [vmem:[%s63 + $0x58] sm:$0xff]
          %88 = vst [vmem:[%s64 + $0x58] sm:$0xff] %v87
          %v89 = vld [vmem:[%s63 + $0x60] sm:$0xff]
          %90 = vst [vmem:[%s64 + $0x60] sm:$0xff] %v89
          %v91 = vld [vmem:[%s63 + $0x68] sm:$0xff]
          %92 = vst [vmem:[%s64 + $0x68] sm:$0xff] %v91
          %v93 = vld [vmem:[%s63 + $0x70] sm:$0xff]
          %94 = vst [vmem:[%s64 + $0x70] sm:$0xff] %v93
          %v95 = vld [vmem:[%s63 + $0x78] sm:$0xff]
          %96 = vst [vmem:[%s64 + $0x78] sm:$0xff] %v95
          %v97 = vld [vmem:[%s63 + $0x80] sm:$0xff]
          %98 = vst [vmem:[%s64 + $0x80] sm:$0xff] %v97
          %v99 = vld [vmem:[%s63 + $0x88] sm:$0xff]
          %100 = vst [vmem:[%s64 + $0x88] sm:$0xff] %v99
          %v101 = vld [vmem:[%s63 + $0x90] sm:$0xff]
          %102 = vst [vmem:[%s64 + $0x90] sm:$0xff] %v101
          %v103 = vld [vmem:[%s63 + $0x98] sm:$0xff]
          %104 = vst [vmem:[%s64 + $0x98] sm:$0xff] %v103
          %v105 = vld [vmem:[%s63 + $0xa0] sm:$0xff]
          %106 = vst [vmem:[%s64 + $0xa0] sm:$0xff] %v105
          %v107 = vld [vmem:[%s63 + $0xa8] sm:$0xff]
          %108 = vst [vmem:[%s64 + $0xa8] sm:$0xff] %v107
          %v109 = vld [vmem:[%s63 + $0xb0] sm:$0xff]
          %110 = vst [vmem:[%s64 + $0xb0] sm:$0xff] %v109
          %v111 = vld [vmem:[%s63 + $0xb8] sm:$0xff]
          %112 = vst [vmem:[%s64 + $0xb8] sm:$0xff] %v111
          %v113 = vld [vmem:[%s63 + $0xc0] sm:$0xff]
          %114 = vst [vmem:[%s64 + $0xc0] sm:$0xff] %v113
          %v115 = vld [vmem:[%s63 + $0xc8] sm:$0xff]
          %116 = vst [vmem:[%s64 + $0xc8] sm:$0xff] %v115
          %v117 = vld [vmem:[%s63 + $0xd0] sm:$0xff]
          %118 = vst [vmem:[%s64 + $0xd0] sm:$0xff] %v117
          %v119 = vld [vmem:[%s63 + $0xd8] sm:$0xff]
          %120 = vst [vmem:[%s64 + $0xd8] sm:$0xff] %v119
          %v121 = vld [vmem:[%s63 + $0xe0] sm:$0xff]
          %122 = vst [vmem:[%s64 + $0xe0] sm:$0xff] %v121
          %v123 = vld [vmem:[%s63 + $0xe8] sm:$0xff]
          %124 = vst [vmem:[%s64 + $0xe8] sm:$0xff] %v123
          %v125 = vld [vmem:[%s63 + $0xf0] sm:$0xff]
          %126 = vst [vmem:[%s64 + $0xf0] sm:$0xff] %v125
          %v127 = vld [vmem:[%s63 + $0xf8] sm:$0xff]
          %128 = vst [vmem:[%s64 + $0xf8] sm:$0xff] %v127
          %v129 = vld [vmem:[%s63 + $0x100] sm:$0xff]
          %130 = vst [vmem:[%s64 + $0x100] sm:$0xff] %v129
        $region53: #{ml_model7_forward.1} parent=47 // loop_footer
          %s62 = sadd.s32 1, %s58
        $region54: #{ml_model7_forward.1} parent=47 // loop_footer_branch
          %57 = sbr.rel target = $region50
        $region55: #{ml_model7_forward.1} parent=47 // loop_exit
          _
      $region48: #{ml_model7_forward.1} parent=32 // pred_fallthru
        _
      %p131 = pneg %p53
      // Predicated region
      $region56: #{ml_model7_forward.1} parent=32 // pred_check
        _
      $region57: #{ml_model7_forward.1} parent=32 // pred_check_branch
        %133 = sbr.rel (%p53) target = $region59
      $region58: #{ml_model7_forward.1} parent=32 // pred_region
        %s134 = sand.u32 264, 7
      $region59: #{ml_model7_forward.1} parent=32 // pred_fallthru
        _
    $region33: #{ml_model7_forward.1} parent=1 // pred_fallthru
      _
    // Predicated region
    $region34: #{ml_model7_forward.1} parent=1 // pred_check
      %p37 = pneg %p33
    $region35: #{ml_model7_forward.1} parent=1 // pred_check_branch
      %39 = sbr.rel (%p37) target = $region37
    $region36: #{ml_model7_forward.1} parent=1 // pred_region
      %s40 = sshll.u32 1, 264
      %s41 = ssub.s32 %s40, 1
      loop: start=0, step=1, limit=1
      $region38: #{ml_model7_forward.1} parent=36 // loop_pre_header
        _
      $region39: #{ml_model7_forward.1} parent=36 // loop_header
        %s43 = sphi 0, %s47
        %p44 = scmp.ge.s32.totalorder %s43, 1
        %s48 = sphi %s6, %s6
        %s49 = sphi [#allocation2], [#allocation2]
      $region40: #{ml_model7_forward.1} parent=36 // loop_header_branch
        %46 = sbr.rel (%p44) target = $region44
      $region41: #{ml_model7_forward.1} parent=36 // loop_body
        %v50 = vld [vmem:[%s48] sm:%s41]
        %51 = vst [vmem:[%s49] sm:%s41] %v50
      $region42: #{ml_model7_forward.1} parent=36 // loop_footer
        %s47 = sadd.s32 1, %s43
      $region43: #{ml_model7_forward.1} parent=36 // loop_footer_branch
        %42 = sbr.rel target = $region39
      $region44: #{ml_model7_forward.1} parent=36 // loop_exit
        _
    $region37: #{ml_model7_forward.1} parent=1 // pred_fallthru
      _
    // Predicated region
    $region60: #{ml_model7_forward.1} parent=1 // pred_check
      _
    $region61: #{ml_model7_forward.1} parent=1 // pred_check_branch
      %137 = sbr.rel (0) target = $region63
    $region62: #{ml_model7_forward.1} parent=1 // pred_region
      %138 = vsyncadd [#allocation4], 4224
    $region63: #{ml_model7_forward.1} parent=1 // pred_fallthru
      _
    %s139 = scalar_lea.sflag [#allocation4], 1
    %p141 = scmp.lt.u32.totalorder 384, 8
    %p142 = pneg %p141
    // Predicated region
    $region64: #{ml_model7_forward.1} parent=1 // pred_check
      _
    $region65: #{ml_model7_forward.1} parent=1 // pred_check_branch
      %144 = sbr.rel (%p141) target = $region67
    $region66: #{ml_model7_forward.1} parent=1 // pred_region
      %s160 = sand.u32 384, 7
      %p161 = scmp.eq.s32.totalorder %s160, 0
      // Predicated region
      $region79: #{ml_model7_forward.1} parent=66 // pred_check
        %p162 = pneg %p161
      $region80: #{ml_model7_forward.1} parent=66 // pred_check_branch
        %164 = sbr.rel (%p162) target = $region82
      $region81: #{ml_model7_forward.1} parent=66 // pred_region
        loop: start=0, step=1, limit=1
        $region83: #{ml_model7_forward.1} parent=81 // loop_pre_header
          _
        $region84: #{ml_model7_forward.1} parent=81 // loop_header
          %s166 = sphi 0, %s170
          %p167 = scmp.ge.s32.totalorder %s166, 1
          %s171 = sphi %s8, %s8
          %s172 = sphi [#allocation3], [#allocation3]
        $region85: #{ml_model7_forward.1} parent=81 // loop_header_branch
          %169 = sbr.rel (%p167) target = $region89
        $region86: #{ml_model7_forward.1} parent=81 // loop_body
          %v173 = vld [vmem:[%s171] sm:$0xff]
          %174 = vst [vmem:[%s172] sm:$0xff] %v173
          %v175 = vld [vmem:[%s171 + $0x8] sm:$0xff]
          %176 = vst [vmem:[%s172 + $0x8] sm:$0xff] %v175
          %v177 = vld [vmem:[%s171 + $0x10] sm:$0xff]
          %178 = vst [vmem:[%s172 + $0x10] sm:$0xff] %v177
          %v179 = vld [vmem:[%s171 + $0x18] sm:$0xff]
          %180 = vst [vmem:[%s172 + $0x18] sm:$0xff] %v179
          %v181 = vld [vmem:[%s171 + $0x20] sm:$0xff]
          %182 = vst [vmem:[%s172 + $0x20] sm:$0xff] %v181
          %v183 = vld [vmem:[%s171 + $0x28] sm:$0xff]
          %184 = vst [vmem:[%s172 + $0x28] sm:$0xff] %v183
          %v185 = vld [vmem:[%s171 + $0x30] sm:$0xff]
          %186 = vst [vmem:[%s172 + $0x30] sm:$0xff] %v185
          %v187 = vld [vmem:[%s171 + $0x38] sm:$0xff]
          %188 = vst [vmem:[%s172 + $0x38] sm:$0xff] %v187
          %v189 = vld [vmem:[%s171 + $0x40] sm:$0xff]
          %190 = vst [vmem:[%s172 + $0x40] sm:$0xff] %v189
          %v191 = vld [vmem:[%s171 + $0x48] sm:$0xff]
          %192 = vst [vmem:[%s172 + $0x48] sm:$0xff] %v191
          %v193 = vld [vmem:[%s171 + $0x50] sm:$0xff]
          %194 = vst [vmem:[%s172 + $0x50] sm:$0xff] %v193
          %v195 = vld [vmem:[%s171 + $0x58] sm:$0xff]
          %196 = vst [vmem:[%s172 + $0x58] sm:$0xff] %v195
          %v197 = vld [vmem:[%s171 + $0x60] sm:$0xff]
          %198 = vst [vmem:[%s172 + $0x60] sm:$0xff] %v197
          %v199 = vld [vmem:[%s171 + $0x68] sm:$0xff]
          %200 = vst [vmem:[%s172 + $0x68] sm:$0xff] %v199
          %v201 = vld [vmem:[%s171 + $0x70] sm:$0xff]
          %202 = vst [vmem:[%s172 + $0x70] sm:$0xff] %v201
          %v203 = vld [vmem:[%s171 + $0x78] sm:$0xff]
          %204 = vst [vmem:[%s172 + $0x78] sm:$0xff] %v203
          %v205 = vld [vmem:[%s171 + $0x80] sm:$0xff]
          %206 = vst [vmem:[%s172 + $0x80] sm:$0xff] %v205
          %v207 = vld [vmem:[%s171 + $0x88] sm:$0xff]
          %208 = vst [vmem:[%s172 + $0x88] sm:$0xff] %v207
          %v209 = vld [vmem:[%s171 + $0x90] sm:$0xff]
          %210 = vst [vmem:[%s172 + $0x90] sm:$0xff] %v209
          %v211 = vld [vmem:[%s171 + $0x98] sm:$0xff]
          %212 = vst [vmem:[%s172 + $0x98] sm:$0xff] %v211
          %v213 = vld [vmem:[%s171 + $0xa0] sm:$0xff]
          %214 = vst [vmem:[%s172 + $0xa0] sm:$0xff] %v213
          %v215 = vld [vmem:[%s171 + $0xa8] sm:$0xff]
          %216 = vst [vmem:[%s172 + $0xa8] sm:$0xff] %v215
          %v217 = vld [vmem:[%s171 + $0xb0] sm:$0xff]
          %218 = vst [vmem:[%s172 + $0xb0] sm:$0xff] %v217
          %v219 = vld [vmem:[%s171 + $0xb8] sm:$0xff]
          %220 = vst [vmem:[%s172 + $0xb8] sm:$0xff] %v219
          %v221 = vld [vmem:[%s171 + $0xc0] sm:$0xff]
          %222 = vst [vmem:[%s172 + $0xc0] sm:$0xff] %v221
          %v223 = vld [vmem:[%s171 + $0xc8] sm:$0xff]
          %224 = vst [vmem:[%s172 + $0xc8] sm:$0xff] %v223
          %v225 = vld [vmem:[%s171 + $0xd0] sm:$0xff]
          %226 = vst [vmem:[%s172 + $0xd0] sm:$0xff] %v225
          %v227 = vld [vmem:[%s171 + $0xd8] sm:$0xff]
          %228 = vst [vmem:[%s172 + $0xd8] sm:$0xff] %v227
          %v229 = vld [vmem:[%s171 + $0xe0] sm:$0xff]
          %230 = vst [vmem:[%s172 + $0xe0] sm:$0xff] %v229
          %v231 = vld [vmem:[%s171 + $0xe8] sm:$0xff]
          %232 = vst [vmem:[%s172 + $0xe8] sm:$0xff] %v231
          %v233 = vld [vmem:[%s171 + $0xf0] sm:$0xff]
          %234 = vst [vmem:[%s172 + $0xf0] sm:$0xff] %v233
          %v235 = vld [vmem:[%s171 + $0xf8] sm:$0xff]
          %236 = vst [vmem:[%s172 + $0xf8] sm:$0xff] %v235
          %v237 = vld [vmem:[%s171 + $0x100] sm:$0xff]
          %238 = vst [vmem:[%s172 + $0x100] sm:$0xff] %v237
          %v239 = vld [vmem:[%s171 + $0x108] sm:$0xff]
          %240 = vst [vmem:[%s172 + $0x108] sm:$0xff] %v239
          %v241 = vld [vmem:[%s171 + $0x110] sm:$0xff]
          %242 = vst [vmem:[%s172 + $0x110] sm:$0xff] %v241
          %v243 = vld [vmem:[%s171 + $0x118] sm:$0xff]
          %244 = vst [vmem:[%s172 + $0x118] sm:$0xff] %v243
          %v245 = vld [vmem:[%s171 + $0x120] sm:$0xff]
          %246 = vst [vmem:[%s172 + $0x120] sm:$0xff] %v245
          %v247 = vld [vmem:[%s171 + $0x128] sm:$0xff]
          %248 = vst [vmem:[%s172 + $0x128] sm:$0xff] %v247
          %v249 = vld [vmem:[%s171 + $0x130] sm:$0xff]
          %250 = vst [vmem:[%s172 + $0x130] sm:$0xff] %v249
          %v251 = vld [vmem:[%s171 + $0x138] sm:$0xff]
          %252 = vst [vmem:[%s172 + $0x138] sm:$0xff] %v251
          %v253 = vld [vmem:[%s171 + $0x140] sm:$0xff]
          %254 = vst [vmem:[%s172 + $0x140] sm:$0xff] %v253
          %v255 = vld [vmem:[%s171 + $0x148] sm:$0xff]
          %256 = vst [vmem:[%s172 + $0x148] sm:$0xff] %v255
          %v257 = vld [vmem:[%s171 + $0x150] sm:$0xff]
          %258 = vst [vmem:[%s172 + $0x150] sm:$0xff] %v257
          %v259 = vld [vmem:[%s171 + $0x158] sm:$0xff]
          %260 = vst [vmem:[%s172 + $0x158] sm:$0xff] %v259
          %v261 = vld [vmem:[%s171 + $0x160] sm:$0xff]
          %262 = vst [vmem:[%s172 + $0x160] sm:$0xff] %v261
          %v263 = vld [vmem:[%s171 + $0x168] sm:$0xff]
          %264 = vst [vmem:[%s172 + $0x168] sm:$0xff] %v263
          %v265 = vld [vmem:[%s171 + $0x170] sm:$0xff]
          %266 = vst [vmem:[%s172 + $0x170] sm:$0xff] %v265
          %v267 = vld [vmem:[%s171 + $0x178] sm:$0xff]
          %268 = vst [vmem:[%s172 + $0x178] sm:$0xff] %v267
        $region87: #{ml_model7_forward.1} parent=81 // loop_footer
          %s170 = sadd.s32 1, %s166
        $region88: #{ml_model7_forward.1} parent=81 // loop_footer_branch
          %165 = sbr.rel target = $region84
        $region89: #{ml_model7_forward.1} parent=81 // loop_exit
          _
      $region82: #{ml_model7_forward.1} parent=66 // pred_fallthru
        _
      %p269 = pneg %p161
      // Predicated region
      $region90: #{ml_model7_forward.1} parent=66 // pred_check
        _
      $region91: #{ml_model7_forward.1} parent=66 // pred_check_branch
        %271 = sbr.rel (%p161) target = $region93
      $region92: #{ml_model7_forward.1} parent=66 // pred_region
        %s272 = sand.u32 384, 7
      $region93: #{ml_model7_forward.1} parent=66 // pred_fallthru
        _
    $region67: #{ml_model7_forward.1} parent=1 // pred_fallthru
      _
    // Predicated region
    $region68: #{ml_model7_forward.1} parent=1 // pred_check
      %p145 = pneg %p141
    $region69: #{ml_model7_forward.1} parent=1 // pred_check_branch
      %147 = sbr.rel (%p145) target = $region71
    $region70: #{ml_model7_forward.1} parent=1 // pred_region
      %s148 = sshll.u32 1, 384
      %s149 = ssub.s32 %s148, 1
      loop: start=0, step=1, limit=1
      $region72: #{ml_model7_forward.1} parent=70 // loop_pre_header
        _
      $region73: #{ml_model7_forward.1} parent=70 // loop_header
        %s151 = sphi 0, %s155
        %p152 = scmp.ge.s32.totalorder %s151, 1
        %s156 = sphi %s8, %s8
        %s157 = sphi [#allocation3], [#allocation3]
      $region74: #{ml_model7_forward.1} parent=70 // loop_header_branch
        %154 = sbr.rel (%p152) target = $region78
      $region75: #{ml_model7_forward.1} parent=70 // loop_body
        %v158 = vld [vmem:[%s156] sm:%s149]
        %159 = vst [vmem:[%s157] sm:%s149] %v158
      $region76: #{ml_model7_forward.1} parent=70 // loop_footer
        %s155 = sadd.s32 1, %s151
      $region77: #{ml_model7_forward.1} parent=70 // loop_footer_branch
        %150 = sbr.rel target = $region73
      $region78: #{ml_model7_forward.1} parent=70 // loop_exit
        _
    $region71: #{ml_model7_forward.1} parent=1 // pred_fallthru
      _
    // Predicated region
    $region94: #{ml_model7_forward.1} parent=1 // pred_check
      _
    $region95: #{ml_model7_forward.1} parent=1 // pred_check_branch
      %275 = sbr.rel (0) target = $region97
    $region96: #{ml_model7_forward.1} parent=1 // pred_region
      %276 = vsyncadd %s139, 6144
    $region97: #{ml_model7_forward.1} parent=1 // pred_fallthru
      _
    %v277 = vld [vmem:[%s1] sm:$0x3f]
    %v278 = vld [vmem:[%s1 + $0x8] sm:$0x3f]
    %s279 = scalar_lea.vmem %s1, 16
    %v280 = vld [vmem:[%s279] sm:$0x3f]
    %v281 = vld [vmem:[%s279 + $0x8] sm:$0x3f]
    %s282 = scalar_lea.vmem %s1, 32
    %v283 = vld [vmem:[%s282] sm:$0x3f]
    %v284 = vld [vmem:[%s282 + $0x8] sm:$0x3f]
    %v285 = vld [vmem:[%s2] ss:$8 sm:$0x3]
    %s286 = scalar_lea.vmem %s2, 1
    %v287 = vld [vmem:[%s286] ss:$8 sm:$0x3]
    %s288 = scalar_lea.vmem %s2, 6
    %v289 = vld [vmem:[%s288] ss:$8 sm:$0x3]
    %v291 = vlaneseq
    %v292 = vshrl.u32 %v291, 7
    %v293 = vsub.s32 0, %v292
    %v294 = vrot.slane %v285, %v293
    %v295 = vlaneseq
    %v296 = vshrl.u32 %v295, 7
    %v297 = vsub.s32 1, %v296
    %v298 = vrot.slane %v285, %v297
    %v301 = vmul.f32 %v294, %v277
    %v302 = vmul.f32 %v298, %v278
    %v304 = vlaneseq
    %v305 = vshrl.u32 %v304, 7
    %v306 = vsub.s32 0, %v305
    %v307 = vrot.slane %v287, %v306
    %v308 = vlaneseq
    %v309 = vshrl.u32 %v308, 7
    %v310 = vsub.s32 1, %v309
    %v311 = vrot.slane %v287, %v310
    %v314 = vmul.f32 %v307, %v280
    %v315 = vmul.f32 %v311, %v281
    %v316 = vadd.f32 %v301, %v314
    %v317 = vadd.f32 %v302, %v315
    %v319 = vlaneseq
    %v320 = vshrl.u32 %v319, 7
    %v321 = vsub.s32 0, %v320
    %v322 = vrot.slane %v289, %v321
    %v323 = vlaneseq
    %v324 = vshrl.u32 %v323, 7
    %v325 = vsub.s32 1, %v324
    %v326 = vrot.slane %v289, %v325
    %v329 = vadd.f32 %v316, %v322
    %v330 = vadd.f32 %v317, %v326
    %v331 = vmax.f32 %v329, 0.0
    %v332 = vmax.f32 %v330, 0.0
    %v333 = vmul.f32 %v294, %v280
    %v334 = vmul.f32 %v298, %v281
    %v335 = vmul.f32 %v307, %v283
    %v336 = vmul.f32 %v311, %v284
    %v337 = vadd.f32 %v333, %v335
    %v338 = vadd.f32 %v334, %v336
    %v339 = vadd.f32 %v337, %v322
    %v340 = vadd.f32 %v338, %v326
    %v341 = vmax.f32 %v339, 0.0
    %v342 = vmax.f32 %v340, 0.0
    %v343 = vmax.f32 %v331, %v341
    %v344 = vmax.f32 %v332, %v342
    %s345 = scalar_lea.vmem %s2, 2
    %v346 = vld [vmem:[%s345] ss:$8 sm:$0x3]
    %s347 = scalar_lea.vmem %s2, 3
    %v348 = vld [vmem:[%s347] ss:$8 sm:$0x3]
    %s349 = scalar_lea.vmem %s2, 7
    %v350 = vld [vmem:[%s349] ss:$8 sm:$0x3]
    %v352 = vlaneseq
    %v353 = vshrl.u32 %v352, 7
    %v354 = vsub.s32 0, %v353
    %v355 = vrot.slane %v346, %v354
    %v356 = vlaneseq
    %v357 = vshrl.u32 %v356, 7
    %v358 = vsub.s32 1, %v357
    %v359 = vrot.slane %v346, %v358
    %v362 = vmul.f32 %v355, %v277
    %v363 = vmul.f32 %v359, %v278
    %v365 = vlaneseq
    %v366 = vshrl.u32 %v365, 7
    %v367 = vsub.s32 0, %v366
    %v368 = vrot.slane %v348, %v367
    %v369 = vlaneseq
    %v370 = vshrl.u32 %v369, 7
    %v371 = vsub.s32 1, %v370
    %v372 = vrot.slane %v348, %v371
    %v375 = vmul.f32 %v368, %v280
    %v376 = vmul.f32 %v372, %v281
    %v377 = vadd.f32 %v362, %v375
    %v378 = vadd.f32 %v363, %v376
    %v380 = vlaneseq
    %v381 = vshrl.u32 %v380, 7
    %v382 = vsub.s32 0, %v381
    %v383 = vrot.slane %v350, %v382
    %v384 = vlaneseq
    %v385 = vshrl.u32 %v384, 7
    %v386 = vsub.s32 1, %v385
    %v387 = vrot.slane %v350, %v386
    %v390 = vadd.f32 %v377, %v383
    %v391 = vadd.f32 %v378, %v387
    %v392 = vmax.f32 %v390, 0.0
    %v393 = vmax.f32 %v391, 0.0
    %v394 = vmul.f32 %v355, %v280
    %v395 = vmul.f32 %v359, %v281
    %v396 = vmul.f32 %v368, %v283
    %v397 = vmul.f32 %v372, %v284
    %v398 = vadd.f32 %v394, %v396
    %v399 = vadd.f32 %v395, %v397
    %v400 = vadd.f32 %v398, %v383
    %v401 = vadd.f32 %v399, %v387
    %v402 = vmax.f32 %v400, 0.0
    %v403 = vmax.f32 %v401, 0.0
    %v404 = vmax.f32 %v392, %v402
    %v405 = vmax.f32 %v393, %v403
    %s406 = scalar_lea.vmem %s2, 4
    %v407 = vld [vmem:[%s406] ss:$8 sm:$0x3]
    %s408 = scalar_lea.vmem %s2, 5
    %v409 = vld [vmem:[%s408] ss:$8 sm:$0x3]
    %s410 = scalar_lea.vmem %s2, 16
    %v411 = vld [vmem:[%s410] ss:$8 sm:$0x3]
    %v413 = vlaneseq
    %v414 = vshrl.u32 %v413, 7
    %v415 = vsub.s32 0, %v414
    %v416 = vrot.slane %v407, %v415
    %v417 = vlaneseq
    %v418 = vshrl.u32 %v417, 7
    %v419 = vsub.s32 1, %v418
    %v420 = vrot.slane %v407, %v419
    %v423 = vmul.f32 %v416, %v277
    %v424 = vmul.f32 %v420, %v278
    %v426 = vlaneseq
    %v427 = vshrl.u32 %v426, 7
    %v428 = vsub.s32 0, %v427
    %v429 = vrot.slane %v409, %v428
    %v430 = vlaneseq
    %v431 = vshrl.u32 %v430, 7
    %v432 = vsub.s32 1, %v431
    %v433 = vrot.slane %v409, %v432
    %v436 = vmul.f32 %v429, %v280
    %v437 = vmul.f32 %v433, %v281
    %v438 = vadd.f32 %v423, %v436
    %v439 = vadd.f32 %v424, %v437
    %v441 = vlaneseq
    %v442 = vshrl.u32 %v441, 7
    %v443 = vsub.s32 0, %v442
    %v444 = vrot.slane %v411, %v443
    %v445 = vlaneseq
    %v446 = vshrl.u32 %v445, 7
    %v447 = vsub.s32 1, %v446
    %v448 = vrot.slane %v411, %v447
    %v451 = vadd.f32 %v438, %v444
    %v452 = vadd.f32 %v439, %v448
    %v453 = vmax.f32 %v451, 0.0
    %v454 = vmax.f32 %v452, 0.0
    %v455 = vmul.f32 %v416, %v280
    %v456 = vmul.f32 %v420, %v281
    %v457 = vmul.f32 %v429, %v283
    %v458 = vmul.f32 %v433, %v284
    %v459 = vadd.f32 %v455, %v457
    %v460 = vadd.f32 %v456, %v458
    %v461 = vadd.f32 %v459, %v444
    %v462 = vadd.f32 %v460, %v448
    %v463 = vmax.f32 %v461, 0.0
    %v464 = vmax.f32 %v462, 0.0
    %v465 = vmax.f32 %v453, %v463
    %v466 = vmax.f32 %v454, %v464
    %s467 = scalar_lea.vmem %s2, 37
    %v468 = vld [vmem:[%s467] ss:$8 sm:$0x3]
    %s469 = scalar_lea.vmem %s2, 17
    %v470 = vld [vmem:[%s469] ss:$8 sm:$0x3]
    %v472 = vlaneseq
    %v473 = vshrl.u32 %v472, 7
    %v474 = vsub.s32 0, %v473
    %v475 = vrot.slane %v470, %v474
    %v476 = vlaneseq
    %v477 = vshrl.u32 %v476, 7
    %v478 = vsub.s32 1, %v477
    %v479 = vrot.slane %v470, %v478
    %v482 = vmul.f32 %v475, %v343
    %v483 = vmul.f32 %v479, %v344
    %v485 = vlaneseq
    %v486 = vshrl.u32 %v485, 7
    %v487 = vsub.s32 0, %v486
    %v488 = vrot.slane %v468, %v487
    %v489 = vlaneseq
    %v490 = vshrl.u32 %v489, 7
    %v491 = vsub.s32 1, %v490
    %v492 = vrot.slane %v468, %v491
    %v495 = vadd.f32 %v488, %v482
    %v496 = vadd.f32 %v492, %v483
    %s497 = scalar_lea.vmem %s2, 18
    %v498 = vld [vmem:[%s497] ss:$8 sm:$0x3]
    %v500 = vlaneseq
    %v501 = vshrl.u32 %v500, 7
    %v502 = vsub.s32 0, %v501
    %v503 = vrot.slane %v498, %v502
    %v504 = vlaneseq
    %v505 = vshrl.u32 %v504, 7
    %v506 = vsub.s32 1, %v505
    %v507 = vrot.slane %v498, %v506
    %v510 = vmul.f32 %v503, %v343
    %v511 = vmul.f32 %v507, %v344
    %v514 = vrot.slane %v510, 2
    %v515 = vrot.slane %v511, 2
    %v518 = vadd.f32 %v495, %v514
    %v519 = vadd.f32 %v496, %v515
    %s520 = scalar_lea.vmem %s2, 19
    %v521 = vld [vmem:[%s520] ss:$8 sm:$0x3]
    %v523 = vlaneseq
    %v524 = vshrl.u32 %v523, 7
    %v525 = vsub.s32 0, %v524
    %v526 = vrot.slane %v521, %v525
    %v527 = vlaneseq
    %v528 = vshrl.u32 %v527, 7
    %v529 = vsub.s32 1, %v528
    %v530 = vrot.slane %v521, %v529
    %v533 = vmul.f32 %v526, %v404
    %v534 = vmul.f32 %v530, %v405
    %v535 = vadd.f32 %v518, %v533
    %v536 = vadd.f32 %v519, %v534
    %s537 = scalar_lea.vmem %s2, 20
    %v538 = vld [vmem:[%s537] ss:$8 sm:$0x3]
    %v540 = vlaneseq
    %v541 = vshrl.u32 %v540, 7
    %v542 = vsub.s32 0, %v541
    %v543 = vrot.slane %v538, %v542
    %v544 = vlaneseq
    %v545 = vshrl.u32 %v544, 7
    %v546 = vsub.s32 1, %v545
    %v547 = vrot.slane %v538, %v546
    %v550 = vmul.f32 %v543, %v404
    %v551 = vmul.f32 %v547, %v405
    %v554 = vrot.slane %v550, 2
    %v555 = vrot.slane %v551, 2
    %v558 = vadd.f32 %v535, %v554
    %v559 = vadd.f32 %v536, %v555
    %s560 = scalar_lea.vmem %s2, 21
    %v561 = vld [vmem:[%s560] ss:$8 sm:$0x3]
    %v563 = vlaneseq
    %v564 = vshrl.u32 %v563, 7
    %v565 = vsub.s32 0, %v564
    %v566 = vrot.slane %v561, %v565
    %v567 = vlaneseq
    %v568 = vshrl.u32 %v567, 7
    %v569 = vsub.s32 1, %v568
    %v570 = vrot.slane %v561, %v569
    %v573 = vmul.f32 %v566, %v465
    %v574 = vmul.f32 %v570, %v466
    %v575 = vadd.f32 %v558, %v573
    %v576 = vadd.f32 %v559, %v574
    %s577 = scalar_lea.vmem %s2, 22
    %v578 = vld [vmem:[%s577] ss:$8 sm:$0x3]
    %v580 = vlaneseq
    %v581 = vshrl.u32 %v580, 7
    %v582 = vsub.s32 0, %v581
    %v583 = vrot.slane %v578, %v582
    %v584 = vlaneseq
    %v585 = vshrl.u32 %v584, 7
    %v586 = vsub.s32 1, %v585
    %v587 = vrot.slane %v578, %v586
    %v590 = vmul.f32 %v583, %v465
    %v591 = vmul.f32 %v587, %v466
    %v594 = vrot.slane %v590, 2
    %v595 = vrot.slane %v591, 2
    %v598 = vadd.f32 %v575, %v594
    %v599 = vadd.f32 %v576, %v595
    %v600 = vmax.f32 %v598, 0.0
    %v601 = vmax.f32 %v599, 0.0
    %v604 = vrot.slane %v600, 2
    %v605 = vrot.slane %v601, 2
    %v608 = vmax.f32 %v600, %v604
    %v609 = vmax.f32 %v601, %v605
    %s610 = scalar_lea.vmem %s2, 38
    %v611 = vld [vmem:[%s610] ss:$8 sm:$0x3]
    %s612 = scalar_lea.vmem %s2, 23
    %v613 = vld [vmem:[%s612] ss:$8 sm:$0x3]
    %v615 = vlaneseq
    %v616 = vshrl.u32 %v615, 7
    %v617 = vsub.s32 0, %v616
    %v618 = vrot.slane %v613, %v617
    %v619 = vlaneseq
    %v620 = vshrl.u32 %v619, 7
    %v621 = vsub.s32 1, %v620
    %v622 = vrot.slane %v613, %v621
    %v625 = vmul.f32 %v618, %v343
    %v626 = vmul.f32 %v622, %v344
    %v628 = vlaneseq
    %v629 = vshrl.u32 %v628, 7
    %v630 = vsub.s32 0, %v629
    %v631 = vrot.slane %v611, %v630
    %v632 = vlaneseq
    %v633 = vshrl.u32 %v632, 7
    %v634 = vsub.s32 1, %v633
    %v635 = vrot.slane %v611, %v634
    %v638 = vadd.f32 %v631, %v625
    %v639 = vadd.f32 %v635, %v626
    %s640 = scalar_lea.vmem %s2, 32
    %v641 = vld [vmem:[%s640] ss:$8 sm:$0x3]
    %v643 = vlaneseq
    %v644 = vshrl.u32 %v643, 7
    %v645 = vsub.s32 0, %v644
    %v646 = vrot.slane %v641, %v645
    %v647 = vlaneseq
    %v648 = vshrl.u32 %v647, 7
    %v649 = vsub.s32 1, %v648
    %v650 = vrot.slane %v641, %v649
    %v653 = vmul.f32 %v646, %v343
    %v654 = vmul.f32 %v650, %v344
    %v657 = vrot.slane %v653, 2
    %v658 = vrot.slane %v654, 2
    %v661 = vadd.f32 %v638, %v657
    %v662 = vadd.f32 %v639, %v658
    %s663 = scalar_lea.vmem %s2, 33
    %v664 = vld [vmem:[%s663] ss:$8 sm:$0x3]
    %v666 = vlaneseq
    %v667 = vshrl.u32 %v666, 7
    %v668 = vsub.s32 0, %v667
    %v669 = vrot.slane %v664, %v668
    %v670 = vlaneseq
    %v671 = vshrl.u32 %v670, 7
    %v672 = vsub.s32 1, %v671
    %v673 = vrot.slane %v664, %v672
    %v676 = vmul.f32 %v669, %v404
    %v677 = vmul.f32 %v673, %v405
    %v678 = vadd.f32 %v661, %v676
    %v679 = vadd.f32 %v662, %v677
    %s680 = scalar_lea.vmem %s2, 34
    %v681 = vld [vmem:[%s680] ss:$8 sm:$0x3]
    %v683 = vlaneseq
    %v684 = vshrl.u32 %v683, 7
    %v685 = vsub.s32 0, %v684
    %v686 = vrot.slane %v681, %v685
    %v687 = vlaneseq
    %v688 = vshrl.u32 %v687, 7
    %v689 = vsub.s32 1, %v688
    %v690 = vrot.slane %v681, %v689
    %v693 = vmul.f32 %v686, %v404
    %v694 = vmul.f32 %v690, %v405
    %v697 = vrot.slane %v693, 2
    %v698 = vrot.slane %v694, 2
    %v701 = vadd.f32 %v678, %v697
    %v702 = vadd.f32 %v679, %v698
    %s703 = scalar_lea.vmem %s2, 35
    %v704 = vld [vmem:[%s703] ss:$8 sm:$0x3]
    %v706 = vlaneseq
    %v707 = vshrl.u32 %v706, 7
    %v708 = vsub.s32 0, %v707
    %v709 = vrot.slane %v704, %v708
    %v710 = vlaneseq
    %v711 = vshrl.u32 %v710, 7
    %v712 = vsub.s32 1, %v711
    %v713 = vrot.slane %v704, %v712
    %v716 = vmul.f32 %v709, %v465
    %v717 = vmul.f32 %v713, %v466
    %v718 = vadd.f32 %v701, %v716
    %v719 = vadd.f32 %v702, %v717
    %s720 = scalar_lea.vmem %s2, 36
    %v721 = vld [vmem:[%s720] ss:$8 sm:$0x3]
    %v723 = vlaneseq
    %v724 = vshrl.u32 %v723, 7
    %v725 = vsub.s32 0, %v724
    %v726 = vrot.slane %v721, %v725
    %v727 = vlaneseq
    %v728 = vshrl.u32 %v727, 7
    %v729 = vsub.s32 1, %v728
    %v730 = vrot.slane %v721, %v729
    %v733 = vmul.f32 %v726, %v465
    %v734 = vmul.f32 %v730, %v466
    %v737 = vrot.slane %v733, 2
    %v738 = vrot.slane %v734, 2
    %v741 = vadd.f32 %v718, %v737
    %v742 = vadd.f32 %v719, %v738
    %v743 = vmax.f32 %v741, 0.0
    %v744 = vmax.f32 %v742, 0.0
    %v747 = vrot.slane %v743, 2
    %v748 = vrot.slane %v744, 2
    %v751 = vmax.f32 %v743, %v747
    %v752 = vmax.f32 %v744, %v748
    %754 = vrot.lane.b32.xlu0 %v751, 35
    %v755 = vpop.permute.xlu0 %754
    %vm757 = vcmask 285696
    %v758 = vsel %vm757, %v608, %v755
    %760 = vrot.lane.b32.xlu0 %v608, 93
    %v761 = vpop.permute.xlu0 %760
    %v763 = vsel %vm757, %v761, %v751
    %764 = vrot.lane.b32.xlu0 %v608, 58
    %v765 = vpop.permute.xlu0 %764
    %767 = vrot.lane.b32.xlu0 %v751, 93
    %v768 = vpop.permute.xlu0 %767
    %v770 = vsel %vm757, %v765, %v768
    %772 = vrot.lane.b32.xlu0 %v608, 23
    %v773 = vpop.permute.xlu0 %772
    %774 = vrot.lane.b32.xlu0 %v609, 23
    %v775 = vpop.permute.xlu0 %774
    %vm776 = vcmask 187392
    %v777 = vsel %vm776, %v773, %v775
    %780 = vrot.lane.b32.xlu0 %v751, 58
    %v781 = vpop.permute.xlu0 %780
    %782 = vrot.lane.b32.xlu0 %v752, 58
    %v783 = vpop.permute.xlu0 %782
    %vm784 = vcmask 474112
    %v785 = vsel %vm784, %v781, %v783
    %v787 = vsel %vm757, %v777, %v785
    %788 = vrot.lane.b32.xlu0 %v609, 116
    %v789 = vpop.permute.xlu0 %788
    %791 = vrot.lane.b32.xlu0 %v752, 23
    %v792 = vpop.permute.xlu0 %791
    %v794 = vsel %vm757, %v789, %v792
    %795 = vrot.lane.b32.xlu0 %v609, 81
    %v796 = vpop.permute.xlu0 %795
    %798 = vrot.lane.b32.xlu0 %v752, 116
    %v799 = vpop.permute.xlu0 %798
    %v801 = vsel %vm757, %v796, %v799
    %v802 = vpack.c.bf16 %v758, %v758
    %v803 = vpack.c.bf16 %v763, %v763
    %v804 = vpack.c.bf16 %v770, %v770
    %v805 = vpack.c.bf16 %v787, %v787
    %v806 = vpack.c.bf16 %v794, %v794
    %v807 = vpack.c.bf16 %v801, %v801
    %v808 = vld [vmem:[%s0] sm:$0xff]
    %v809 = vld [vmem:[%s0 + $0x8] sm:$0xff]
    %v810 = vld [vmem:[%s0 + $0x10] sm:$0xff]
    %v811 = vld [vmem:[%s0 + $0x18] sm:$0xff]
    %v812 = vpack.c.bf16 %v809, %v808
    %v813 = vpack.c.bf16 %v811, %v810
    %v814 = vld [vmem:[%s3] sm:$0xf]
    %v815 = vld [vmem:[%s3 + $0x4] sm:$0xf]
    %v816 = vld [vmem:[%s5] sm:$0x1]
    %v817 = vlaneseq
    %v818 = vshrl.u32 %v817, 7
    %v819 = vsub.s32 0, %v818
    %v820 = vrot.slane %v816, %v819
    %v823 = vunpack.c.l.b16 %v814
    %v824 = vunpack.c.l.b16 %v815
    %v825 = vpack.c.b16 %v824, %v823
    %vm827 = vcmask 130048
    %v829 = vsel %vm827, %v812, 0
    %v832 = vsel %vm827, %v813, 0
    %834 = vmatprep.subr.bf16.mxu0 0
    %835 = vmatpush1.bf16.msra.mxu0 0
    %836 = vmatprep.subr.bf16.mxu0 0
    %837 = vmatpush1.bf16.msra.mxu0 0
    %838 = vmatprep.subr.bf16.mxu0 0
    %839 = vmatpush1.bf16.msra.mxu0 0
    %840 = vmatprep.subr.bf16.mxu0 0
    %841 = vmatpush1.bf16.msra.mxu0 0
    %842 = vmatprep.subr.bf16.mxu0 0
    %843 = vmatpush1.bf16.msra.mxu0 0
    %844 = vmatprep.subr.bf16.mxu0 0
    %845 = vmatpush1.bf16.msra.mxu0 0
    %846 = vmatprep.subr.bf16.mxu0 0
    %847 = vmatpush1.bf16.msra.mxu0 0
    %848 = vmatprep.subr.bf16.mxu0 0
    %849 = vmatpush1.bf16.msra.mxu0 %v825
    %850 = vmatprep.subr.bf16.mxu0 0
    %851 = vmatpush2.bf16.msra.mxu0 0
    %852 = vmatprep.subr.bf16.mxu0 0
    %853 = vmatpush2.bf16.msra.mxu0 0
    %854 = vmatprep.subr.bf16.mxu0 0
    %855 = vmatpush2.bf16.msra.mxu0 0
    %856 = vmatprep.subr.bf16.mxu0 0
    %857 = vmatpush2.bf16.msra.mxu0 0
    %858 = vmatprep.subr.bf16.mxu0 0
    %859 = vmatpush2.bf16.msra.mxu0 0
    %860 = vmatprep.subr.bf16.mxu0 0
    %861 = vmatpush2.bf16.msra.mxu0 0
    %862 = vmatprep.subr.bf16.mxu0 0
    %863 = vmatpush2.bf16.msra.mxu0 0
    %864 = vmatprep.subr.bf16.mxu0 0
    %865 = vmatpush2.bf16.msra.mxu0 0
    %866 = vmatprep.mubr.bf16.mxu0 0
    %867 = vmatmul.mubr.bf16.gmra.mxu0 %v829
    %v868 = vpop.f32.mrf.mxu0
    %v869 = vadd.f32 %v820, %v868
    %v870 = vpop.f32.mrf.mxu0
    %v871 = vpop.f32.mrf.mxu0
    %v872 = vadd.f32 %v820, %v871
    %v873 = vpop.f32.mrf.mxu0
    %874 = vmatprep.mubr.bf16.mxu0 0
    %875 = vmatmul.mubr.bf16.gmra.mxu0 %v832
    %v876 = vpop.f32.mrf.mxu0
    %v877 = vadd.f32 %v820, %v876
    %v878 = vpop.f32.mrf.mxu0
    %v879 = vpop.f32.mrf.mxu0
    %v880 = vadd.f32 %v820, %v879
    %v881 = vpop.f32.mrf.mxu0
    %882 = vdwg.mxu0
    %v883 = vtanh.pop %v869
    %v884 = vtanh.pop %v872
    %v885 = vtanh.pop %v877
    %v886 = vtanh.pop %v880
    %v887 = vpack.c.bf16 %v884, %v883
    %v888 = vpack.c.bf16 %v886, %v885
    %v889 = vld [vmem:[%s4] sm:$0xf]
    %v890 = vld [vmem:[%s4 + $0x4] sm:$0xf]
    %v891 = vld [vmem:[%s4 + $0x8] sm:$0xf]
    %v892 = vld [vmem:[%s4 + $0xc] sm:$0xf]
    %v893 = vld [vmem:[%s4 + $0x10] sm:$0xf]
    %v894 = vld [vmem:[%s4 + $0x14] sm:$0xf]
    %v895 = vld [vmem:[%s4 + $0x18] sm:$0xf]
    %v896 = vld [vmem:[%s4 + $0x1c] sm:$0xf]
    %v897 = vld [vmem:[%s4 + $0x20] sm:$0xf]
    %v898 = vld [vmem:[%s4 + $0x24] sm:$0xf]
    %v899 = vld [vmem:[%s4 + $0x28] sm:$0xf]
    %v900 = vld [vmem:[%s4 + $0x2c] sm:$0xf]
    %v901 = vld [vmem:[%s5 + $0x1] sm:$0x1]
    %v902 = vlaneseq
    %v903 = vshrl.u32 %v902, 7
    %v904 = vsub.s32 0, %v903
    %v905 = vrot.slane %v901, %v904
    %v918 = vunpack.c.l.b16 %v889
    %v919 = vunpack.c.l.b16 %v890
    %v920 = vunpack.c.l.b16 %v891
    %v921 = vunpack.c.l.b16 %v892
    %v922 = vunpack.c.l.b16 %v893
    %v923 = vunpack.c.l.b16 %v894
    %v924 = vunpack.c.l.b16 %v895
    %v925 = vunpack.c.l.b16 %v896
    %v926 = vunpack.c.l.b16 %v897
    %v927 = vunpack.c.l.b16 %v898
    %v928 = vunpack.c.l.b16 %v899
    %v929 = vunpack.c.l.b16 %v900
    %v930 = vpack.c.b16 %v919, %v918
    %v931 = vpack.c.b16 %v921, %v920
    %v932 = vpack.c.b16 %v923, %v922
    %v933 = vpack.c.b16 %v925, %v924
    %v934 = vpack.c.b16 %v927, %v926
    %v935 = vpack.c.b16 %v929, %v928
    %vm942 = vcmask 785408
    %v944 = vsel %vm942, %v887, 0
    %v947 = vsel %vm942, %v888, 0
    %949 = vmatprep.subr.bf16.mxu0 0
    %950 = vmatpush1.bf16.msra.mxu0 0
    %951 = vmatprep.subr.bf16.mxu0 0
    %952 = vmatpush1.bf16.msra.mxu0 0
    %953 = vmatprep.subr.bf16.mxu0 0
    %954 = vmatpush1.bf16.msra.mxu0 %v935
    %955 = vmatprep.subr.bf16.mxu0 0
    %956 = vmatpush1.bf16.msra.mxu0 %v934
    %957 = vmatprep.subr.bf16.mxu0 0
    %958 = vmatpush1.bf16.msra.mxu0 %v933
    %959 = vmatprep.subr.bf16.mxu0 0
    %960 = vmatpush1.bf16.msra.mxu0 %v932
    %961 = vmatprep.subr.bf16.mxu0 0
    %962 = vmatpush1.bf16.msra.mxu0 %v931
    %963 = vmatprep.subr.bf16.mxu0 0
    %964 = vmatpush1.bf16.msra.mxu0 %v930
    %965 = vmatprep.subr.bf16.mxu0 0
    %966 = vmatpush2.bf16.msra.mxu0 0
    %967 = vmatprep.subr.bf16.mxu0 0
    %968 = vmatpush2.bf16.msra.mxu0 0
    %969 = vmatprep.subr.bf16.mxu0 0
    %970 = vmatpush2.bf16.msra.mxu0 0
    %971 = vmatprep.subr.bf16.mxu0 0
    %972 = vmatpush2.bf16.msra.mxu0 0
    %973 = vmatprep.subr.bf16.mxu0 0
    %974 = vmatpush2.bf16.msra.mxu0 0
    %975 = vmatprep.subr.bf16.mxu0 0
    %976 = vmatpush2.bf16.msra.mxu0 0
    %977 = vmatprep.subr.bf16.mxu0 0
    %978 = vmatpush2.bf16.msra.mxu0 0
    %979 = vmatprep.subr.bf16.mxu0 0
    %980 = vmatpush2.bf16.msra.mxu0 0
    %981 = vmatprep.mubr.bf16.mxu0 0
    %982 = vmatmul.mubr.bf16.gmra.mxu0 %v944
    %v983 = vpop.f32.mrf.mxu0
    %v984 = vadd.f32 %v905, %v983
    %v985 = vpop.f32.mrf.mxu0
    %v986 = vpop.f32.mrf.mxu0
    %v987 = vadd.f32 %v905, %v986
    %v988 = vpop.f32.mrf.mxu0
    %989 = vmatprep.mubr.bf16.mxu0 0
    %990 = vmatmul.mubr.bf16.gmra.mxu0 %v947
    %v991 = vpop.f32.mrf.mxu0
    %v992 = vadd.f32 %v905, %v991
    %v993 = vpop.f32.mrf.mxu0
    %v994 = vpop.f32.mrf.mxu0
    %v995 = vadd.f32 %v905, %v994
    %v996 = vpop.f32.mrf.mxu0
    %997 = vdwg.mxu0
    %v998 = vlaneseq
    %v999 = vshrl.u32 %v998, 7
    %v1000 = vadd.s32 %v999, 8
    %v1001 = vadd.s32 %v999, 16
    %v1002 = vadd.s32 %v999, 24
    %vm1003 = vcmp.lt.s32.totalorder %v999, 0
    %v1004 = vsub.s32 0, %v999
    %v1005 = vsel %vm1003, %v1004, %v999
    %v1006 = vshrl.u32 %v1005, 4
    %v1007 = vand.u32 %v1005, 15
    %v1008 = vsub.s32 0, %v1007
    %v1009 = vsel %vm1003, %v1008, %v1007
    %vm1010 = vcmp.lt.s32.totalorder %v1000, 0
    %v1011 = vsub.s32 0, %v1000
    %v1012 = vsel %vm1010, %v1011, %v1000
    %v1013 = vshrl.u32 %v1012, 4
    %v1014 = vand.u32 %v1012, 15
    %v1015 = vsub.s32 0, %v1014
    %v1016 = vsel %vm1010, %v1015, %v1014
    %vm1017 = vcmp.lt.s32.totalorder %v1001, 0
    %v1018 = vsub.s32 0, %v1001
    %v1019 = vsel %vm1017, %v1018, %v1001
    %v1020 = vshrl.u32 %v1019, 4
    %v1021 = vand.u32 %v1019, 15
    %v1022 = vsub.s32 0, %v1021
    %v1023 = vsel %vm1017, %v1022, %v1021
    %vm1024 = vcmp.lt.s32.totalorder %v1002, 0
    %v1025 = vsub.s32 0, %v1002
    %v1026 = vsel %vm1024, %v1025, %v1002
    %v1027 = vshrl.u32 %v1026, 4
    %v1028 = vand.u32 %v1026, 15
    %v1029 = vsub.s32 0, %v1028
    %v1030 = vsel %vm1024, %v1029, %v1028
    %vm1031 = vcmp.ne.s32.totalorder %v1009, 0
    %vm1032 = vcmp.ne.s32.totalorder %v1016, 0
    %vm1033 = vcmp.ne.s32.totalorder %v1023, 0
    %vm1034 = vcmp.ne.s32.totalorder %v1030, 0
    %vm1035 = vcmp.lt.s32.totalorder %v1009, 0
    %vm1036 = vcmp.lt.s32.totalorder %v1016, 0
    %vm1037 = vcmp.lt.s32.totalorder %v1023, 0
    %vm1038 = vcmp.lt.s32.totalorder %v1030, 0
    %vm1039 = vmand %vm1035, %vm1031
    %vm1040 = vmand %vm1036, %vm1032
    %vm1041 = vmand %vm1037, %vm1033
    %vm1042 = vmand %vm1038, %vm1034
    %v1043 = vadd.s32 %v1009, 16
    %v1044 = vadd.s32 %v1016, 16
    %v1045 = vadd.s32 %v1023, 16
    %v1046 = vadd.s32 %v1030, 16
    %v1047 = vsel %vm1039, %v1043, %v1009
    %v1048 = vsel %vm1040, %v1044, %v1016
    %v1049 = vsel %vm1041, %v1045, %v1023
    %v1050 = vsel %vm1042, %v1046, %v1030
    %vm1051 = vcmp.lt.s32.totalorder %v1047, 9
    %vm1052 = vcmp.lt.s32.totalorder %v1048, 9
    %vm1053 = vcmp.lt.s32.totalorder %v1049, 9
    %vm1054 = vcmp.lt.s32.totalorder %v1050, 9
    %v1055 = vsel %vm1051, %v984, -1e+30
    %v1056 = vsel %vm1052, %v987, -1e+30
    %v1057 = vsel %vm1053, %v992, -1e+30
    %v1058 = vsel %vm1054, %v995, -1e+30
    %vm1059 = vcmask 48128
    %v1060 = vsel %vm1059, %v1055, -inf
    %v1061 = vsel %vm1059, %v1056, -inf
    %v1062 = vmax.f32 %v1060, %v1061
    %v1063 = vrot.slane %v1062, 4
    %v1064 = vmax.f32 %v1062, %v1063
    %v1065 = vrot.slane %v1064, 2
    %v1066 = vmax.f32 %v1064, %v1065
    %v1067 = vrot.slane %v1066, 1
    %v1068 = vmax.f32 %v1066, %v1067
    %v1069 = vsub.f32 %v1055, %v1068
    %v1070 = vsub.f32 %v1056, %v1068
    %v1071 = vmul.f32 %v1069, 1.442695
    %v1072 = vpow.pop %v1071
    %v1073 = vmul.f32 %v1070, 1.442695
    %v1074 = vpow.pop %v1073
    %v1075 = vsel %vm1059, %v1072, 0.0
    %v1076 = vsel %vm1059, %v1074, 0.0
    %v1077 = vadd.f32 %v1075, %v1076
    %v1078 = vrot.slane %v1077, 4
    %v1079 = vadd.f32 %v1077, %v1078
    %v1080 = vrot.slane %v1079, 2
    %v1081 = vadd.f32 %v1079, %v1080
    %v1082 = vrot.slane %v1081, 1
    %v1083 = vadd.f32 %v1081, %v1082
    %v1084 = vrcp.pop %v1083
    %v1085 = vmul.f32 %v1072, %v1084
    %v1086 = vmul.f32 %v1074, %v1084
    %1087 = vxpose.xlu0.b32.start [1/16] %v1085, 128
    %1088 = vxpose.xlu0.b32.cont [2/16] %v1086, 128
    %1089 = vxpose.xlu0.b32.cont [3/16] 0.0, 128
    %1090 = vxpose.xlu0.b32.cont [4/16] 0.0, 128
    %1091 = vxpose.xlu0.b32.cont [5/16] 0.0, 128
    %1092 = vxpose.xlu0.b32.cont [6/16] 0.0, 128
    %1093 = vxpose.xlu0.b32.cont [7/16] 0.0, 128
    %1094 = vxpose.xlu0.b32.cont [8/16] 0.0, 128
    %1095 = vxpose.xlu0.b32.cont [9/16] 0.0, 128
    %1096 = vxpose.xlu0.b32.cont [10/16] 0.0, 128
    %1097 = vxpose.xlu0.b32.cont [11/16] 0.0, 128
    %1098 = vxpose.xlu0.b32.cont [12/16] 0.0, 128
    %1099 = vxpose.xlu0.b32.cont [13/16] 0.0, 128
    %1100 = vxpose.xlu0.b32.cont [14/16] 0.0, 128
    %1101 = vxpose.xlu0.b32.cont [15/16] 0.0, 128
    %1102 = vxpose.xlu0.b32.end [16/16] 0.0, 128
    %v1103 = vpop.trf.xlu0
    %v1104 = vpop.trf.xlu0
    %v1105 = vpop.trf.xlu0
    %v1106 = vpop.trf.xlu0
    %v1107 = vpop.trf.xlu0
    %v1108 = vpop.trf.xlu0
    %v1109 = vpop.trf.xlu0
    %v1110 = vpop.trf.xlu0
    %v1111 = vpop.trf.xlu0
    %v1112 = vpop.trf.xlu0
    %v1113 = vpop.trf.xlu0
    %v1114 = vpop.trf.xlu0
    %v1115 = vpop.trf.xlu0
    %v1116 = vpop.trf.xlu0
    %v1117 = vpop.trf.xlu0
    %v1118 = vpop.trf.xlu0
    %v1120 = vsel %vm827, %v1103, 0
    %1122 = vmatprep.subr.mxu0 0.0
    %1123 = vmatpush1.msra.mxu0 0.0
    %1124 = vmatprep.subr.mxu0 0.0
    %1125 = vmatpush1.msra.mxu0 0.0
    %1126 = vmatprep.subr.mxu0 0.0
    %1127 = vmatpush1.msra.mxu0 0.0
    %1128 = vmatprep.subr.mxu0 0.0
    %1129 = vmatpush1.msra.mxu0 0.0
    %1130 = vmatprep.subr.mxu0 0.0
    %1131 = vmatpush1.msra.mxu0 0.0
    %1132 = vmatprep.subr.mxu0 0.0
    %1133 = vmatpush1.msra.mxu0 0.0
    %1134 = vmatprep.subr.mxu0 0.0
    %1135 = vmatpush1.msra.mxu0 0.0
    %1136 = vmatprep.subr.mxu0 0.0
    %1137 = vmatpush1.msra.mxu0 0.0
    %1138 = vmatprep.subr.mxu0 0.0
    %1139 = vmatpush1.msra.mxu0 0.0
    %1140 = vmatprep.subr.mxu0 0.0
    %1141 = vmatpush1.msra.mxu0 0.0
    %1142 = vmatprep.subr.mxu0 0.0
    %1143 = vmatpush1.msra.mxu0 0.0
    %1144 = vmatprep.subr.mxu0 0.0
    %1145 = vmatpush1.msra.mxu0 0.0
    %1146 = vmatprep.subr.mxu0 0.0
    %1147 = vmatpush1.msra.mxu0 0.0
    %1148 = vmatprep.subr.mxu0 0.0
    %1149 = vmatpush1.msra.mxu0 0.0
    %1150 = vmatprep.subr.mxu0 0.0
    %1151 = vmatpush1.msra.mxu0 %v809
    %1152 = vmatprep.subr.mxu0 0.0
    %1153 = vmatpush1.msra.mxu0 %v808
    %1154 = vmatprep.subr.mxu0 0.0
    %1155 = vmatpush2.msra.mxu0 0.0
    %1156 = vmatprep.subr.mxu0 0.0
    %1157 = vmatpush2.msra.mxu0 0.0
    %1158 = vmatprep.subr.mxu0 0.0
    %1159 = vmatpush2.msra.mxu0 0.0
    %1160 = vmatprep.subr.mxu0 0.0
    %1161 = vmatpush2.msra.mxu0 0.0
    %1162 = vmatprep.subr.mxu0 0.0
    %1163 = vmatpush2.msra.mxu0 0.0
    %1164 = vmatprep.subr.mxu0 0.0
    %1165 = vmatpush2.msra.mxu0 0.0
    %1166 = vmatprep.subr.mxu0 0.0
    %1167 = vmatpush2.msra.mxu0 0.0
    %1168 = vmatprep.subr.mxu0 0.0
    %1169 = vmatpush2.msra.mxu0 0.0
    %1170 = vmatprep.subr.mxu0 0.0
    %1171 = vmatpush2.msra.mxu0 0.0
    %1172 = vmatprep.subr.mxu0 0.0
    %1173 = vmatpush2.msra.mxu0 0.0
    %1174 = vmatprep.subr.mxu0 0.0
    %1175 = vmatpush2.msra.mxu0 0.0
    %1176 = vmatprep.subr.mxu0 0.0
    %1177 = vmatpush2.msra.mxu0 0.0
    %1178 = vmatprep.subr.mxu0 0.0
    %1179 = vmatpush2.msra.mxu0 0.0
    %1180 = vmatprep.subr.mxu0 0.0
    %1181 = vmatpush2.msra.mxu0 0.0
    %1182 = vmatprep.subr.mxu0 0.0
    %1183 = vmatpush2.msra.mxu0 0.0
    %1184 = vmatprep.subr.mxu0 0.0
    %1185 = vmatpush2.msra.mxu0 0.0
    %1186 = vmatprep.mubr.f32.mxu0 0.0
    %1187 = vmatmul.mubr.f32.gmra.mxu0 %v1120
    %v1188 = vpop.f32.mrf.mxu0
    %v1189 = vadd.f32 0.0, %v1188
    %v1190 = vpop.f32.mrf.mxu0
    %1191 = vdwg.mxu0
    %v1192 = vsel %vm1059, %v1057, -inf
    %v1193 = vsel %vm1059, %v1058, -inf
    %v1194 = vmax.f32 %v1192, %v1193
    %v1195 = vrot.slane %v1194, 4
    %v1196 = vmax.f32 %v1194, %v1195
    %v1197 = vrot.slane %v1196, 2
    %v1198 = vmax.f32 %v1196, %v1197
    %v1199 = vrot.slane %v1198, 1
    %v1200 = vmax.f32 %v1198, %v1199
    %v1201 = vsub.f32 %v1057, %v1200
    %v1202 = vsub.f32 %v1058, %v1200
    %v1203 = vmul.f32 %v1201, 1.442695
    %v1204 = vpow.pop %v1203
    %v1205 = vmul.f32 %v1202, 1.442695
    %v1206 = vpow.pop %v1205
    %v1207 = vsel %vm1059, %v1204, 0.0
    %v1208 = vsel %vm1059, %v1206, 0.0
    %v1209 = vadd.f32 %v1207, %v1208
    %v1210 = vrot.slane %v1209, 4
    %v1211 = vadd.f32 %v1209, %v1210
    %v1212 = vrot.slane %v1211, 2
    %v1213 = vadd.f32 %v1211, %v1212
    %v1214 = vrot.slane %v1213, 1
    %v1215 = vadd.f32 %v1213, %v1214
    %v1216 = vrcp.pop %v1215
    %v1217 = vmul.f32 %v1204, %v1216
    %v1218 = vmul.f32 %v1206, %v1216
    %1219 = vxpose.xlu0.b32.start [1/16] %v1217, 128
    %1220 = vxpose.xlu0.b32.cont [2/16] %v1218, 128
    %1221 = vxpose.xlu0.b32.cont [3/16] 0.0, 128
    %1222 = vxpose.xlu0.b32.cont [4/16] 0.0, 128
    %1223 = vxpose.xlu0.b32.cont [5/16] 0.0, 128
    %1224 = vxpose.xlu0.b32.cont [6/16] 0.0, 128
    %1225 = vxpose.xlu0.b32.cont [7/16] 0.0, 128
    %1226 = vxpose.xlu0.b32.cont [8/16] 0.0, 128
    %1227 = vxpose.xlu0.b32.cont [9/16] 0.0, 128
    %1228 = vxpose.xlu0.b32.cont [10/16] 0.0, 128
    %1229 = vxpose.xlu0.b32.cont [11/16] 0.0, 128
    %1230 = vxpose.xlu0.b32.cont [12/16] 0.0, 128
    %1231 = vxpose.xlu0.b32.cont [13/16] 0.0, 128
    %1232 = vxpose.xlu0.b32.cont [14/16] 0.0, 128
    %1233 = vxpose.xlu0.b32.cont [15/16] 0.0, 128
    %1234 = vxpose.xlu0.b32.end [16/16] 0.0, 128
    %v1235 = vpop.trf.xlu0
    %v1236 = vpop.trf.xlu0
    %v1237 = vpop.trf.xlu0
    %v1238 = vpop.trf.xlu0
    %v1239 = vpop.trf.xlu0
    %v1240 = vpop.trf.xlu0
    %v1241 = vpop.trf.xlu0
    %v1242 = vpop.trf.xlu0
    %v1243 = vpop.trf.xlu0
    %v1244 = vpop.trf.xlu0
    %v1245 = vpop.trf.xlu0
    %v1246 = vpop.trf.xlu0
    %v1247 = vpop.trf.xlu0
    %v1248 = vpop.trf.xlu0
    %v1249 = vpop.trf.xlu0
    %v1250 = vpop.trf.xlu0
    %v1252 = vsel %vm827, %v1235, 0
    %1254 = vmatprep.subr.mxu0 0.0
    %1255 = vmatpush1.msra.mxu0 0.0
    %1256 = vmatprep.subr.mxu0 0.0
    %1257 = vmatpush1.msra.mxu0 0.0
    %1258 = vmatprep.subr.mxu0 0.0
    %1259 = vmatpush1.msra.mxu0 0.0
    %1260 = vmatprep.subr.mxu0 0.0
    %1261 = vmatpush1.msra.mxu0 0.0
    %1262 = vmatprep.subr.mxu0 0.0
    %1263 = vmatpush1.msra.mxu0 0.0
    %1264 = vmatprep.subr.mxu0 0.0
    %1265 = vmatpush1.msra.mxu0 0.0
    %1266 = vmatprep.subr.mxu0 0.0
    %1267 = vmatpush1.msra.mxu0 0.0
    %1268 = vmatprep.subr.mxu0 0.0
    %1269 = vmatpush1.msra.mxu0 0.0
    %1270 = vmatprep.subr.mxu0 0.0
    %1271 = vmatpush1.msra.mxu0 0.0
    %1272 = vmatprep.subr.mxu0 0.0
    %1273 = vmatpush1.msra.mxu0 0.0
    %1274 = vmatprep.subr.mxu0 0.0
    %1275 = vmatpush1.msra.mxu0 0.0
    %1276 = vmatprep.subr.mxu0 0.0
    %1277 = vmatpush1.msra.mxu0 0.0
    %1278 = vmatprep.subr.mxu0 0.0
    %1279 = vmatpush1.msra.mxu0 0.0
    %1280 = vmatprep.subr.mxu0 0.0
    %1281 = vmatpush1.msra.mxu0 0.0
    %1282 = vmatprep.subr.mxu0 0.0
    %1283 = vmatpush1.msra.mxu0 %v811
    %1284 = vmatprep.subr.mxu0 0.0
    %1285 = vmatpush1.msra.mxu0 %v810
    %1286 = vmatprep.subr.mxu0 0.0
    %1287 = vmatpush2.msra.mxu0 0.0
    %1288 = vmatprep.subr.mxu0 0.0
    %1289 = vmatpush2.msra.mxu0 0.0
    %1290 = vmatprep.subr.mxu0 0.0
    %1291 = vmatpush2.msra.mxu0 0.0
    %1292 = vmatprep.subr.mxu0 0.0
    %1293 = vmatpush2.msra.mxu0 0.0
    %1294 = vmatprep.subr.mxu0 0.0
    %1295 = vmatpush2.msra.mxu0 0.0
    %1296 = vmatprep.subr.mxu0 0.0
    %1297 = vmatpush2.msra.mxu0 0.0
    %1298 = vmatprep.subr.mxu0 0.0
    %1299 = vmatpush2.msra.mxu0 0.0
    %1300 = vmatprep.subr.mxu0 0.0
    %1301 = vmatpush2.msra.mxu0 0.0
    %1302 = vmatprep.subr.mxu0 0.0
    %1303 = vmatpush2.msra.mxu0 0.0
    %1304 = vmatprep.subr.mxu0 0.0
    %1305 = vmatpush2.msra.mxu0 0.0
    %1306 = vmatprep.subr.mxu0 0.0
    %1307 = vmatpush2.msra.mxu0 0.0
    %1308 = vmatprep.subr.mxu0 0.0
    %1309 = vmatpush2.msra.mxu0 0.0
    %1310 = vmatprep.subr.mxu0 0.0
    %1311 = vmatpush2.msra.mxu0 0.0
    %1312 = vmatprep.subr.mxu0 0.0
    %1313 = vmatpush2.msra.mxu0 0.0
    %1314 = vmatprep.subr.mxu0 0.0
    %1315 = vmatpush2.msra.mxu0 0.0
    %1316 = vmatprep.subr.mxu0 0.0
    %1317 = vmatpush2.msra.mxu0 0.0
    %1318 = vmatprep.mubr.f32.mxu0 0.0
    %1319 = vmatmul.mubr.f32.gmra.mxu0 %v1252
    %v1320 = vpop.f32.mrf.mxu0
    %v1321 = vadd.f32 0.0, %v1320
    %v1322 = vpop.f32.mrf.mxu0
    %1323 = vdwg.mxu0
    %vm1324 = vcmask 70656
    %1325 = vst.msk [vmem:[%s10] sm:$0x3f] %vm1324, %v1103
    %1326 = vst.msk [vmem:[%s10 + $0x8] sm:$0x3f] %vm1324, %v1235
    %v1328 = vcombine.high %v1189, %v1189
    %v1330 = vunpack.c.l.s4 1966171168
    %v1331 = vunpack.c.0.s8 %v1330
    %v1332 = vlaneseq
    %v1333 = vshrl.u32 %v1332, 7
    %v1334 = vsub.s32 %v1331, %v1333
    %v1335 = vrot.slane %v1189, %v1334
    %v1337 = vunpack.c.l.s4 1966171168
    %v1338 = vunpack.c.0.s8 %v1337
    %v1339 = vlaneseq
    %v1340 = vshrl.u32 %v1339, 7
    %v1341 = vsub.s32 %v1338, %v1340
    %v1342 = vrot.slane %v1328, %v1341
    %v1343 = vcombine.high %v1335, %v1335
    %v1344 = vcombine.high %v1342, %v1342
    %v1346 = vunpack.c.l.s4 1966171168
    %v1347 = vunpack.c.0.s8 %v1346
    %v1348 = vlaneseq
    %v1349 = vshrl.u32 %v1348, 7
    %v1350 = vsub.s32 %v1347, %v1349
    %v1351 = vrot.slane %v1335, %v1350
    %v1353 = vunpack.c.l.s4 1966171168
    %v1354 = vunpack.c.0.s8 %v1353
    %v1355 = vlaneseq
    %v1356 = vshrl.u32 %v1355, 7
    %v1357 = vsub.s32 %v1354, %v1356
    %v1358 = vrot.slane %v1342, %v1357
    %v1360 = vunpack.c.l.s4 1966171168
    %v1361 = vunpack.c.0.s8 %v1360
    %v1362 = vlaneseq
    %v1363 = vshrl.u32 %v1362, 7
    %v1364 = vsub.s32 %v1361, %v1363
    %v1365 = vrot.slane %v1343, %v1364
    %v1367 = vunpack.c.l.s4 1966171168
    %v1368 = vunpack.c.0.s8 %v1367
    %v1369 = vlaneseq
    %v1370 = vshrl.u32 %v1369, 7
    %v1371 = vsub.s32 %v1368, %v1370
    %v1372 = vrot.slane %v1344, %v1371
    %v1373 = vcombine.high %v1351, %v1351
    %v1374 = vcombine.high %v1365, %v1365
    %v1382 = vcombine.high %v1321, %v1321
    %v1384 = vunpack.c.l.s4 1966171168
    %v1385 = vunpack.c.0.s8 %v1384
    %v1386 = vlaneseq
    %v1387 = vshrl.u32 %v1386, 7
    %v1388 = vsub.s32 %v1385, %v1387
    %v1389 = vrot.slane %v1321, %v1388
    %v1391 = vunpack.c.l.s4 1966171168
    %v1392 = vunpack.c.0.s8 %v1391
    %v1393 = vlaneseq
    %v1394 = vshrl.u32 %v1393, 7
    %v1395 = vsub.s32 %v1392, %v1394
    %v1396 = vrot.slane %v1382, %v1395
    %v1397 = vcombine.high %v1389, %v1389
    %v1398 = vcombine.high %v1396, %v1396
    %v1400 = vunpack.c.l.s4 1966171168
    %v1401 = vunpack.c.0.s8 %v1400
    %v1402 = vlaneseq
    %v1403 = vshrl.u32 %v1402, 7
    %v1404 = vsub.s32 %v1401, %v1403
    %v1405 = vrot.slane %v1389, %v1404
    %v1407 = vunpack.c.l.s4 1966171168
    %v1408 = vunpack.c.0.s8 %v1407
    %v1409 = vlaneseq
    %v1410 = vshrl.u32 %v1409, 7
    %v1411 = vsub.s32 %v1408, %v1410
    %v1412 = vrot.slane %v1396, %v1411
    %v1414 = vunpack.c.l.s4 1966171168
    %v1415 = vunpack.c.0.s8 %v1414
    %v1416 = vlaneseq
    %v1417 = vshrl.u32 %v1416, 7
    %v1418 = vsub.s32 %v1415, %v1417
    %v1419 = vrot.slane %v1397, %v1418
    %v1421 = vunpack.c.l.s4 1966171168
    %v1422 = vunpack.c.0.s8 %v1421
    %v1423 = vlaneseq
    %v1424 = vshrl.u32 %v1423, 7
    %v1425 = vsub.s32 %v1422, %v1424
    %v1426 = vrot.slane %v1398, %v1425
    %v1427 = vcombine.high %v1405, %v1405
    %v1428 = vcombine.high %v1419, %v1419
    %v1429 = vlaneseq
    %v1430 = vshrl.u32 %v1429, 7
    %v1431 = vsub.s32 0, %v1430
    %v1432 = vrot.slane %v1405, %v1431
    %v1433 = vlaneseq
    %v1434 = vshrl.u32 %v1433, 7
    %v1435 = vsub.s32 0, %v1434
    %v1436 = vrot.slane %v1419, %v1435
    %v1437 = vlaneseq
    %v1438 = vshrl.u32 %v1437, 7
    %v1439 = vsub.s32 0, %v1438
    %v1440 = vrot.slane %v1427, %v1439
    %v1441 = vlaneseq
    %v1442 = vshrl.u32 %v1441, 7
    %v1443 = vsub.s32 0, %v1442
    %v1444 = vrot.slane %v1428, %v1443
    %v1445 = vlaneseq
    %v1446 = vshrl.u32 %v1445, 7
    %v1447 = vsub.s32 0, %v1446
    %v1448 = vrot.slane %v1412, %v1447
    %v1449 = vlaneseq
    %v1450 = vshrl.u32 %v1449, 7
    %v1451 = vsub.s32 0, %v1450
    %v1452 = vrot.slane %v1426, %v1451
    %vm1459 = vcmask 1040384
    %v1460 = vsel %vm1459, %v1351, %v1432
    %v1461 = vsel %vm1459, %v1365, %v1436
    %v1462 = vsel %vm1459, %v1373, %v1440
    %v1463 = vsel %vm1459, %v1374, %v1444
    %v1464 = vsel %vm1459, %v1358, %v1448
    %v1465 = vsel %vm1459, %v1372, %v1452
    %v1466 = vpack.c.bf16 %v1460, %v1460
    %v1467 = vpack.c.bf16 %v1461, %v1461
    %v1468 = vpack.c.bf16 %v1462, %v1462
    %v1469 = vpack.c.bf16 %v1463, %v1463
    %v1470 = vpack.c.bf16 %v1464, %v1464
    %v1471 = vpack.c.bf16 %v1465, %v1465
    %1478 = vrot.lane.b32.xlu0 %v802, 16
    %v1479 = vpop.permute.xlu0 %1478
    %1480 = vrot.lane.b32.xlu0 %v803, 16
    %v1481 = vpop.permute.xlu0 %1480
    %1482 = vrot.lane.b32.xlu0 %v804, 16
    %v1483 = vpop.permute.xlu0 %1482
    %1484 = vrot.lane.b32.xlu0 %v805, 16
    %v1485 = vpop.permute.xlu0 %1484
    %1486 = vrot.lane.b32.xlu0 %v806, 16
    %v1487 = vpop.permute.xlu0 %1486
    %1488 = vrot.lane.b32.xlu0 %v807, 16
    %v1489 = vpop.permute.xlu0 %1488
    %v1492 = vsel %vm827, %v1466, %v1479
    %v1495 = vsel %vm827, %v1467, %v1481
    %v1498 = vsel %vm827, %v1468, %v1483
    %v1501 = vsel %vm827, %v1469, %v1485
    %v1504 = vsel %vm827, %v1470, %v1487
    %v1507 = vsel %vm827, %v1471, %v1489
    %v1508 = vld [vmem:[%s7] sm:$0x1]
    %v1509 = vld [vmem:[%s7 + $0x4] sm:$0x1]
    %v1510 = vld [vmem:[%s7 + $0x8] sm:$0x1]
    %v1511 = vld [vmem:[%s7 + $0xc] sm:$0x1]
    %v1512 = vld [vmem:[%s7 + $0x10] sm:$0x1]
    %v1513 = vld [vmem:[%s7 + $0x14] sm:$0x1]
    %v1514 = vld [vmem:[%s7 + $0x1] sm:$0x1]
    %v1515 = vld [vmem:[%s7 + $0x5] sm:$0x1]
    %v1516 = vld [vmem:[%s7 + $0x9] sm:$0x1]
    %v1517 = vld [vmem:[%s7 + $0xd] sm:$0x1]
    %v1518 = vld [vmem:[%s7 + $0x11] sm:$0x1]
    %v1519 = vld [vmem:[%s7 + $0x15] sm:$0x1]
    %v1520 = vld [vmem:[%s7 + $0x2] sm:$0x1]
    %v1521 = vld [vmem:[%s7 + $0x6] sm:$0x1]
    %v1522 = vld [vmem:[%s7 + $0xa] sm:$0x1]
    %v1523 = vld [vmem:[%s7 + $0xe] sm:$0x1]
    %v1524 = vld [vmem:[%s7 + $0x12] sm:$0x1]
    %v1525 = vld [vmem:[%s7 + $0x16] sm:$0x1]
    %s1526 = smul.u32 4, 6
    %s1527 = smul.u32 %s1526, 11
    %s1528 = smul.u32 %s1527, 1
    %s1529 = sshll.u32 %s1528, 4
    %1530 = dma.done [#allocation4], %s1529
    %v1531 = vld [vmem:[#allocation2] sm:$0xf]
    %v1532 = vld [vmem:[#allocation2 + $0x4] sm:$0xf]
    %v1533 = vld [vmem:[#allocation2 + $0x8] sm:$0xf]
    %v1534 = vld [vmem:[#allocation2 + $0xc] sm:$0xf]
    %v1535 = vld [vmem:[#allocation2 + $0x10] sm:$0xf]
    %v1536 = vld [vmem:[#allocation2 + $0x14] sm:$0xf]
    %v1537 = vld [vmem:[#allocation2 + $0x18] sm:$0xf]
    %v1538 = vld [vmem:[#allocation2 + $0x1c] sm:$0xf]
    %v1539 = vld [vmem:[#allocation2 + $0x20] sm:$0xf]
    %v1540 = vld [vmem:[#allocation2 + $0x24] sm:$0xf]
    %v1541 = vld [vmem:[#allocation2 + $0x28] sm:$0x7]
    %v1542 = vld [vmem:[#allocation2 + $0x2c] sm:$0xf]
    %v1543 = vld [vmem:[#allocation2 + $0x30] sm:$0xf]
    %v1544 = vld [vmem:[#allocation2 + $0x34] sm:$0xf]
    %v1545 = vld [vmem:[#allocation2 + $0x38] sm:$0xf]
    %v1546 = vld [vmem:[#allocation2 + $0x3c] sm:$0xf]
    %v1547 = vld [vmem:[#allocation2 + $0x40] sm:$0xf]
    %v1548 = vld [vmem:[#allocation2 + $0x44] sm:$0xf]
    %v1549 = vld [vmem:[#allocation2 + $0x48] sm:$0xf]
    %v1550 = vld [vmem:[#allocation2 + $0x4c] sm:$0xf]
    %v1551 = vld [vmem:[#allocation2 + $0x50] sm:$0xf]
    %v1552 = vld [vmem:[#allocation2 + $0x54] sm:$0x7]
    %v1553 = vld [vmem:[#allocation2 + $0x58] sm:$0xf]
    %v1554 = vld [vmem:[#allocation2 + $0x5c] sm:$0xf]
    %v1555 = vld [vmem:[#allocation2 + $0x60] sm:$0xf]
    %v1556 = vld [vmem:[#allocation2 + $0x64] sm:$0xf]
    %v1557 = vld [vmem:[#allocation2 + $0x68] sm:$0xf]
    %v1558 = vld [vmem:[#allocation2 + $0x6c] sm:$0xf]
    %v1559 = vld [vmem:[#allocation2 + $0x70] sm:$0xf]
    %v1560 = vld [vmem:[#allocation2 + $0x74] sm:$0xf]
    %v1561 = vld [vmem:[#allocation2 + $0x78] sm:$0xf]
    %v1562 = vld [vmem:[#allocation2 + $0x7c] sm:$0xf]
    %v1563 = vld [vmem:[#allocation2 + $0x80] sm:$0x7]
    %v1564 = vld [vmem:[#allocation2 + $0x84] sm:$0xf]
    %v1565 = vld [vmem:[#allocation2 + $0x88] sm:$0xf]
    %v1566 = vld [vmem:[#allocation2 + $0x8c] sm:$0xf]
    %v1567 = vld [vmem:[#allocation2 + $0x90] sm:$0xf]
    %v1568 = vld [vmem:[#allocation2 + $0x94] sm:$0xf]
    %v1569 = vld [vmem:[#allocation2 + $0x98] sm:$0xf]
    %v1570 = vld [vmem:[#allocation2 + $0x9c] sm:$0xf]
    %v1571 = vld [vmem:[#allocation2 + $0xa0] sm:$0xf]
    %v1572 = vld [vmem:[#allocation2 + $0xa4] sm:$0xf]
    %v1573 = vld [vmem:[#allocation2 + $0xa8] sm:$0xf]
    %v1574 = vld [vmem:[#allocation2 + $0xac] sm:$0x7]
    %v1575 = vld [vmem:[#allocation2 + $0xb0] sm:$0xf]
    %v1576 = vld [vmem:[#allocation2 + $0xb4] sm:$0xf]
    %v1577 = vld [vmem:[#allocation2 + $0xb8] sm:$0xf]
    %v1578 = vld [vmem:[#allocation2 + $0xbc] sm:$0xf]
    %v1579 = vld [vmem:[#allocation2 + $0xc0] sm:$0xf]
    %v1580 = vld [vmem:[#allocation2 + $0xc4] sm:$0xf]
    %v1581 = vld [vmem:[#allocation2 + $0xc8] sm:$0xf]
    %v1582 = vld [vmem:[#allocation2 + $0xcc] sm:$0xf]
    %v1583 = vld [vmem:[#allocation2 + $0xd0] sm:$0xf]
    %v1584 = vld [vmem:[#allocation2 + $0xd4] sm:$0xf]
    %v1585 = vld [vmem:[#allocation2 + $0xd8] sm:$0x7]
    %v1586 = vld [vmem:[#allocation2 + $0xdc] sm:$0xf]
    %v1587 = vld [vmem:[#allocation2 + $0xe0] sm:$0xf]
    %v1588 = vld [vmem:[#allocation2 + $0xe4] sm:$0xf]
    %v1589 = vld [vmem:[#allocation2 + $0xe8] sm:$0xf]
    %v1590 = vld [vmem:[#allocation2 + $0xec] sm:$0xf]
    %v1591 = vld [vmem:[#allocation2 + $0xf0] sm:$0xf]
    %v1592 = vld [vmem:[#allocation2 + $0xf4] sm:$0xf]
    %v1593 = vld [vmem:[#allocation2 + $0xf8] sm:$0xf]
    %v1594 = vld [vmem:[#allocation2 + $0xfc] sm:$0xf]
    %v1595 = vld [vmem:[#allocation2 + $0x100] sm:$0xf]
    %v1596 = vld [vmem:[#allocation2 + $0x104] sm:$0x7]
    %v1597 = vlaneseq
    %v1598 = vshrl.u32 %v1597, 7
    %v1599 = vsub.s32 0, %v1598
    %v1600 = vrot.slane %v1508, %v1599
    %v1601 = vlaneseq
    %v1602 = vshrl.u32 %v1601, 7
    %v1603 = vsub.s32 0, %v1602
    %v1604 = vrot.slane %v1509, %v1603
    %v1605 = vlaneseq
    %v1606 = vshrl.u32 %v1605, 7
    %v1607 = vsub.s32 0, %v1606
    %v1608 = vrot.slane %v1510, %v1607
    %v1609 = vlaneseq
    %v1610 = vshrl.u32 %v1609, 7
    %v1611 = vsub.s32 0, %v1610
    %v1612 = vrot.slane %v1511, %v1611
    %v1613 = vlaneseq
    %v1614 = vshrl.u32 %v1613, 7
    %v1615 = vsub.s32 0, %v1614
    %v1616 = vrot.slane %v1512, %v1615
    %v1617 = vlaneseq
    %v1618 = vshrl.u32 %v1617, 7
    %v1619 = vsub.s32 0, %v1618
    %v1620 = vrot.slane %v1513, %v1619
    %v1632 = vunpack.c.l.b16 %v1531
    %v1633 = vunpack.c.l.b16 %v1532
    %v1634 = vunpack.c.l.b16 %v1533
    %v1635 = vunpack.c.l.b16 %v1534
    %v1636 = vunpack.c.l.b16 %v1535
    %v1637 = vunpack.c.l.b16 %v1536
    %v1638 = vunpack.c.l.b16 %v1537
    %v1639 = vunpack.c.l.b16 %v1538
    %v1640 = vunpack.c.l.b16 %v1539
    %v1641 = vunpack.c.l.b16 %v1540
    %v1642 = vunpack.c.l.b16 %v1541
    %v1643 = vpack.c.b16 %v1633, %v1632
    %v1644 = vpack.c.b16 %v1635, %v1634
    %v1645 = vpack.c.b16 %v1637, %v1636
    %v1646 = vpack.c.b16 %v1639, %v1638
    %v1647 = vpack.c.b16 %v1641, %v1640
    %v1648 = vpack.c.b16 %v1642, %v1642
    %vm1654 = vcmask 703488
    %v1655 = vsel %vm1654, %v1492, 0
    %vm1657 = vcmask 1042432
    %v1659 = vsel %vm1657, %v1648, 0
    %1661 = vmatprep.subr.bf16.mxu0 0
    %1662 = vmatpush1.bf16.msra.mxu0 0
    %1663 = vmatprep.subr.bf16.mxu0 0
    %1664 = vmatpush1.bf16.msra.mxu0 0
    %1665 = vmatprep.subr.bf16.mxu0 0
    %1666 = vmatpush1.bf16.msra.mxu0 %v1659
    %1667 = vmatprep.subr.bf16.mxu0 0
    %1668 = vmatpush1.bf16.msra.mxu0 %v1647
    %1669 = vmatprep.subr.bf16.mxu0 0
    %1670 = vmatpush1.bf16.msra.mxu0 %v1646
    %1671 = vmatprep.subr.bf16.mxu0 0
    %1672 = vmatpush1.bf16.msra.mxu0 %v1645
    %1673 = vmatprep.subr.bf16.mxu0 0
    %1674 = vmatpush1.bf16.msra.mxu0 %v1644
    %1675 = vmatprep.subr.bf16.mxu0 0
    %1676 = vmatpush1.bf16.msra.mxu0 %v1643
    %1677 = vmatprep.subr.bf16.mxu0 0
    %1678 = vmatpush2.bf16.msra.mxu0 0
    %1679 = vmatprep.subr.bf16.mxu0 0
    %1680 = vmatpush2.bf16.msra.mxu0 0
    %1681 = vmatprep.subr.bf16.mxu0 0
    %1682 = vmatpush2.bf16.msra.mxu0 0
    %1683 = vmatprep.subr.bf16.mxu0 0
    %1684 = vmatpush2.bf16.msra.mxu0 0
    %1685 = vmatprep.subr.bf16.mxu0 0
    %1686 = vmatpush2.bf16.msra.mxu0 0
    %1687 = vmatprep.subr.bf16.mxu0 0
    %1688 = vmatpush2.bf16.msra.mxu0 0
    %1689 = vmatprep.subr.bf16.mxu0 0
    %1690 = vmatpush2.bf16.msra.mxu0 0
    %1691 = vmatprep.subr.bf16.mxu0 0
    %1692 = vmatpush2.bf16.msra.mxu0 0
    %1693 = vmatprep.mubr.bf16.mxu0 0
    %1694 = vmatmul.mubr.bf16.gmra.mxu0 %v1655
    %v1695 = vpop.f32.mrf.mxu0
    %v1696 = vadd.f32 %v1600, %v1695
    %v1697 = vpop.f32.mrf.mxu0
    %v1698 = vpop.f32.mrf.mxu0
    %v1699 = vpop.f32.mrf.mxu0
    %1700 = vdwg.mxu0
    %v1712 = vunpack.c.l.b16 %v1542
    %v1713 = vunpack.c.l.b16 %v1543
    %v1714 = vunpack.c.l.b16 %v1544
    %v1715 = vunpack.c.l.b16 %v1545
    %v1716 = vunpack.c.l.b16 %v1546
    %v1717 = vunpack.c.l.b16 %v1547
    %v1718 = vunpack.c.l.b16 %v1548
    %v1719 = vunpack.c.l.b16 %v1549
    %v1720 = vunpack.c.l.b16 %v1550
    %v1721 = vunpack.c.l.b16 %v1551
    %v1722 = vunpack.c.l.b16 %v1552
    %v1723 = vpack.c.b16 %v1713, %v1712
    %v1724 = vpack.c.b16 %v1715, %v1714
    %v1725 = vpack.c.b16 %v1717, %v1716
    %v1726 = vpack.c.b16 %v1719, %v1718
    %v1727 = vpack.c.b16 %v1721, %v1720
    %v1728 = vpack.c.b16 %v1722, %v1722
    %v1734 = vsel %vm1654, %v1495, 0
    %v1737 = vsel %vm1657, %v1728, 0
    %1739 = vmatprep.subr.bf16.mxu0 0
    %1740 = vmatpush1.bf16.msra.mxu0 0
    %1741 = vmatprep.subr.bf16.mxu0 0
    %1742 = vmatpush1.bf16.msra.mxu0 0
    %1743 = vmatprep.subr.bf16.mxu0 0
    %1744 = vmatpush1.bf16.msra.mxu0 %v1737
    %1745 = vmatprep.subr.bf16.mxu0 0
    %1746 = vmatpush1.bf16.msra.mxu0 %v1727
    %1747 = vmatprep.subr.bf16.mxu0 0
    %1748 = vmatpush1.bf16.msra.mxu0 %v1726
    %1749 = vmatprep.subr.bf16.mxu0 0
    %1750 = vmatpush1.bf16.msra.mxu0 %v1725
    %1751 = vmatprep.subr.bf16.mxu0 0
    %1752 = vmatpush1.bf16.msra.mxu0 %v1724
    %1753 = vmatprep.subr.bf16.mxu0 0
    %1754 = vmatpush1.bf16.msra.mxu0 %v1723
    %1755 = vmatprep.subr.bf16.mxu0 0
    %1756 = vmatpush2.bf16.msra.mxu0 0
    %1757 = vmatprep.subr.bf16.mxu0 0
    %1758 = vmatpush2.bf16.msra.mxu0 0
    %1759 = vmatprep.subr.bf16.mxu0 0
    %1760 = vmatpush2.bf16.msra.mxu0 0
    %1761 = vmatprep.subr.bf16.mxu0 0
    %1762 = vmatpush2.bf16.msra.mxu0 0
    %1763 = vmatprep.subr.bf16.mxu0 0
    %1764 = vmatpush2.bf16.msra.mxu0 0
    %1765 = vmatprep.subr.bf16.mxu0 0
    %1766 = vmatpush2.bf16.msra.mxu0 0
    %1767 = vmatprep.subr.bf16.mxu0 0
    %1768 = vmatpush2.bf16.msra.mxu0 0
    %1769 = vmatprep.subr.bf16.mxu0 0
    %1770 = vmatpush2.bf16.msra.mxu0 0
    %1771 = vmatprep.mubr.bf16.mxu0 0
    %1772 = vmatmul.mubr.bf16.gmra.mxu0 %v1734
    %v1773 = vpop.f32.mrf.mxu0
    %v1774 = vadd.f32 %v1604, %v1773
    %v1775 = vpop.f32.mrf.mxu0
    %v1776 = vpop.f32.mrf.mxu0
    %v1777 = vpop.f32.mrf.mxu0
    %1778 = vdwg.mxu0
    %v1790 = vunpack.c.l.b16 %v1553
    %v1791 = vunpack.c.l.b16 %v1554
    %v1792 = vunpack.c.l.b16 %v1555
    %v1793 = vunpack.c.l.b16 %v1556
    %v1794 = vunpack.c.l.b16 %v1557
    %v1795 = vunpack.c.l.b16 %v1558
    %v1796 = vunpack.c.l.b16 %v1559
    %v1797 = vunpack.c.l.b16 %v1560
    %v1798 = vunpack.c.l.b16 %v1561
    %v1799 = vunpack.c.l.b16 %v1562
    %v1800 = vunpack.c.l.b16 %v1563
    %v1801 = vpack.c.b16 %v1791, %v1790
    %v1802 = vpack.c.b16 %v1793, %v1792
    %v1803 = vpack.c.b16 %v1795, %v1794
    %v1804 = vpack.c.b16 %v1797, %v1796
    %v1805 = vpack.c.b16 %v1799, %v1798
    %v1806 = vpack.c.b16 %v1800, %v1800
    %v1812 = vsel %vm1654, %v1498, 0
    %v1815 = vsel %vm1657, %v1806, 0
    %1817 = vmatprep.subr.bf16.mxu0 0
    %1818 = vmatpush1.bf16.msra.mxu0 0
    %1819 = vmatprep.subr.bf16.mxu0 0
    %1820 = vmatpush1.bf16.msra.mxu0 0
    %1821 = vmatprep.subr.bf16.mxu0 0
    %1822 = vmatpush1.bf16.msra.mxu0 %v1815
    %1823 = vmatprep.subr.bf16.mxu0 0
    %1824 = vmatpush1.bf16.msra.mxu0 %v1805
    %1825 = vmatprep.subr.bf16.mxu0 0
    %1826 = vmatpush1.bf16.msra.mxu0 %v1804
    %1827 = vmatprep.subr.bf16.mxu0 0
    %1828 = vmatpush1.bf16.msra.mxu0 %v1803
    %1829 = vmatprep.subr.bf16.mxu0 0
    %1830 = vmatpush1.bf16.msra.mxu0 %v1802
    %1831 = vmatprep.subr.bf16.mxu0 0
    %1832 = vmatpush1.bf16.msra.mxu0 %v1801
    %1833 = vmatprep.subr.bf16.mxu0 0
    %1834 = vmatpush2.bf16.msra.mxu0 0
    %1835 = vmatprep.subr.bf16.mxu0 0
    %1836 = vmatpush2.bf16.msra.mxu0 0
    %1837 = vmatprep.subr.bf16.mxu0 0
    %1838 = vmatpush2.bf16.msra.mxu0 0
    %1839 = vmatprep.subr.bf16.mxu0 0
    %1840 = vmatpush2.bf16.msra.mxu0 0
    %1841 = vmatprep.subr.bf16.mxu0 0
    %1842 = vmatpush2.bf16.msra.mxu0 0
    %1843 = vmatprep.subr.bf16.mxu0 0
    %1844 = vmatpush2.bf16.msra.mxu0 0
    %1845 = vmatprep.subr.bf16.mxu0 0
    %1846 = vmatpush2.bf16.msra.mxu0 0
    %1847 = vmatprep.subr.bf16.mxu0 0
    %1848 = vmatpush2.bf16.msra.mxu0 0
    %1849 = vmatprep.mubr.bf16.mxu0 0
    %1850 = vmatmul.mubr.bf16.gmra.mxu0 %v1812
    %v1851 = vpop.f32.mrf.mxu0
    %v1852 = vadd.f32 %v1608, %v1851
    %v1853 = vpop.f32.mrf.mxu0
    %v1854 = vpop.f32.mrf.mxu0
    %v1855 = vpop.f32.mrf.mxu0
    %1856 = vdwg.mxu0
    %v1868 = vunpack.c.l.b16 %v1564
    %v1869 = vunpack.c.l.b16 %v1565
    %v1870 = vunpack.c.l.b16 %v1566
    %v1871 = vunpack.c.l.b16 %v1567
    %v1872 = vunpack.c.l.b16 %v1568
    %v1873 = vunpack.c.l.b16 %v1569
    %v1874 = vunpack.c.l.b16 %v1570
    %v1875 = vunpack.c.l.b16 %v1571
    %v1876 = vunpack.c.l.b16 %v1572
    %v1877 = vunpack.c.l.b16 %v1573
    %v1878 = vunpack.c.l.b16 %v1574
    %v1879 = vpack.c.b16 %v1869, %v1868
    %v1880 = vpack.c.b16 %v1871, %v1870
    %v1881 = vpack.c.b16 %v1873, %v1872
    %v1882 = vpack.c.b16 %v1875, %v1874
    %v1883 = vpack.c.b16 %v1877, %v1876
    %v1884 = vpack.c.b16 %v1878, %v1878
    %v1890 = vsel %vm1654, %v1501, 0
    %v1893 = vsel %vm1657, %v1884, 0
    %1895 = vmatprep.subr.bf16.mxu0 0
    %1896 = vmatpush1.bf16.msra.mxu0 0
    %1897 = vmatprep.subr.bf16.mxu0 0
    %1898 = vmatpush1.bf16.msra.mxu0 0
    %1899 = vmatprep.subr.bf16.mxu0 0
    %1900 = vmatpush1.bf16.msra.mxu0 %v1893
    %1901 = vmatprep.subr.bf16.mxu0 0
    %1902 = vmatpush1.bf16.msra.mxu0 %v1883
    %1903 = vmatprep.subr.bf16.mxu0 0
    %1904 = vmatpush1.bf16.msra.mxu0 %v1882
    %1905 = vmatprep.subr.bf16.mxu0 0
    %1906 = vmatpush1.bf16.msra.mxu0 %v1881
    %1907 = vmatprep.subr.bf16.mxu0 0
    %1908 = vmatpush1.bf16.msra.mxu0 %v1880
    %1909 = vmatprep.subr.bf16.mxu0 0
    %1910 = vmatpush1.bf16.msra.mxu0 %v1879
    %1911 = vmatprep.subr.bf16.mxu0 0
    %1912 = vmatpush2.bf16.msra.mxu0 0
    %1913 = vmatprep.subr.bf16.mxu0 0
    %1914 = vmatpush2.bf16.msra.mxu0 0
    %1915 = vmatprep.subr.bf16.mxu0 0
    %1916 = vmatpush2.bf16.msra.mxu0 0
    %1917 = vmatprep.subr.bf16.mxu0 0
    %1918 = vmatpush2.bf16.msra.mxu0 0
    %1919 = vmatprep.subr.bf16.mxu0 0
    %1920 = vmatpush2.bf16.msra.mxu0 0
    %1921 = vmatprep.subr.bf16.mxu0 0
    %1922 = vmatpush2.bf16.msra.mxu0 0
    %1923 = vmatprep.subr.bf16.mxu0 0
    %1924 = vmatpush2.bf16.msra.mxu0 0
    %1925 = vmatprep.subr.bf16.mxu0 0
    %1926 = vmatpush2.bf16.msra.mxu0 0
    %1927 = vmatprep.mubr.bf16.mxu0 0
    %1928 = vmatmul.mubr.bf16.gmra.mxu0 %v1890
    %v1929 = vpop.f32.mrf.mxu0
    %v1930 = vadd.f32 %v1612, %v1929
    %v1931 = vpop.f32.mrf.mxu0
    %v1932 = vpop.f32.mrf.mxu0
    %v1933 = vpop.f32.mrf.mxu0
    %1934 = vdwg.mxu0
    %v1946 = vunpack.c.l.b16 %v1575
    %v1947 = vunpack.c.l.b16 %v1576
    %v1948 = vunpack.c.l.b16 %v1577
    %v1949 = vunpack.c.l.b16 %v1578
    %v1950 = vunpack.c.l.b16 %v1579
    %v1951 = vunpack.c.l.b16 %v1580
    %v1952 = vunpack.c.l.b16 %v1581
    %v1953 = vunpack.c.l.b16 %v1582
    %v1954 = vunpack.c.l.b16 %v1583
    %v1955 = vunpack.c.l.b16 %v1584
    %v1956 = vunpack.c.l.b16 %v1585
    %v1957 = vpack.c.b16 %v1947, %v1946
    %v1958 = vpack.c.b16 %v1949, %v1948
    %v1959 = vpack.c.b16 %v1951, %v1950
    %v1960 = vpack.c.b16 %v1953, %v1952
    %v1961 = vpack.c.b16 %v1955, %v1954
    %v1962 = vpack.c.b16 %v1956, %v1956
    %v1968 = vsel %vm1654, %v1504, 0
    %v1971 = vsel %vm1657, %v1962, 0
    %1973 = vmatprep.subr.bf16.mxu0 0
    %1974 = vmatpush1.bf16.msra.mxu0 0
    %1975 = vmatprep.subr.bf16.mxu0 0
    %1976 = vmatpush1.bf16.msra.mxu0 0
    %1977 = vmatprep.subr.bf16.mxu0 0
    %1978 = vmatpush1.bf16.msra.mxu0 %v1971
    %1979 = vmatprep.subr.bf16.mxu0 0
    %1980 = vmatpush1.bf16.msra.mxu0 %v1961
    %1981 = vmatprep.subr.bf16.mxu0 0
    %1982 = vmatpush1.bf16.msra.mxu0 %v1960
    %1983 = vmatprep.subr.bf16.mxu0 0
    %1984 = vmatpush1.bf16.msra.mxu0 %v1959
    %1985 = vmatprep.subr.bf16.mxu0 0
    %1986 = vmatpush1.bf16.msra.mxu0 %v1958
    %1987 = vmatprep.subr.bf16.mxu0 0
    %1988 = vmatpush1.bf16.msra.mxu0 %v1957
    %1989 = vmatprep.subr.bf16.mxu0 0
    %1990 = vmatpush2.bf16.msra.mxu0 0
    %1991 = vmatprep.subr.bf16.mxu0 0
    %1992 = vmatpush2.bf16.msra.mxu0 0
    %1993 = vmatprep.subr.bf16.mxu0 0
    %1994 = vmatpush2.bf16.msra.mxu0 0
    %1995 = vmatprep.subr.bf16.mxu0 0
    %1996 = vmatpush2.bf16.msra.mxu0 0
    %1997 = vmatprep.subr.bf16.mxu0 0
    %1998 = vmatpush2.bf16.msra.mxu0 0
    %1999 = vmatprep.subr.bf16.mxu0 0
    %2000 = vmatpush2.bf16.msra.mxu0 0
    %2001 = vmatprep.subr.bf16.mxu0 0
    %2002 = vmatpush2.bf16.msra.mxu0 0
    %2003 = vmatprep.subr.bf16.mxu0 0
    %2004 = vmatpush2.bf16.msra.mxu0 0
    %2005 = vmatprep.mubr.bf16.mxu0 0
    %2006 = vmatmul.mubr.bf16.gmra.mxu0 %v1968
    %v2007 = vpop.f32.mrf.mxu0
    %v2008 = vadd.f32 %v1616, %v2007
    %v2009 = vpop.f32.mrf.mxu0
    %v2010 = vpop.f32.mrf.mxu0
    %v2011 = vpop.f32.mrf.mxu0
    %2012 = vdwg.mxu0
    %v2024 = vunpack.c.l.b16 %v1586
    %v2025 = vunpack.c.l.b16 %v1587
    %v2026 = vunpack.c.l.b16 %v1588
    %v2027 = vunpack.c.l.b16 %v1589
    %v2028 = vunpack.c.l.b16 %v1590
    %v2029 = vunpack.c.l.b16 %v1591
    %v2030 = vunpack.c.l.b16 %v1592
    %v2031 = vunpack.c.l.b16 %v1593
    %v2032 = vunpack.c.l.b16 %v1594
    %v2033 = vunpack.c.l.b16 %v1595
    %v2034 = vunpack.c.l.b16 %v1596
    %v2035 = vpack.c.b16 %v2025, %v2024
    %v2036 = vpack.c.b16 %v2027, %v2026
    %v2037 = vpack.c.b16 %v2029, %v2028
    %v2038 = vpack.c.b16 %v2031, %v2030
    %v2039 = vpack.c.b16 %v2033, %v2032
    %v2040 = vpack.c.b16 %v2034, %v2034
    %v2046 = vsel %vm1654, %v1507, 0
    %v2049 = vsel %vm1657, %v2040, 0
    %2051 = vmatprep.subr.bf16.mxu0 0
    %2052 = vmatpush1.bf16.msra.mxu0 0
    %2053 = vmatprep.subr.bf16.mxu0 0
    %2054 = vmatpush1.bf16.msra.mxu0 0
    %2055 = vmatprep.subr.bf16.mxu0 0
    %2056 = vmatpush1.bf16.msra.mxu0 %v2049
    %2057 = vmatprep.subr.bf16.mxu0 0
    %2058 = vmatpush1.bf16.msra.mxu0 %v2039
    %2059 = vmatprep.subr.bf16.mxu0 0
    %2060 = vmatpush1.bf16.msra.mxu0 %v2038
    %2061 = vmatprep.subr.bf16.mxu0 0
    %2062 = vmatpush1.bf16.msra.mxu0 %v2037
    %2063 = vmatprep.subr.bf16.mxu0 0
    %2064 = vmatpush1.bf16.msra.mxu0 %v2036
    %2065 = vmatprep.subr.bf16.mxu0 0
    %2066 = vmatpush1.bf16.msra.mxu0 %v2035
    %2067 = vmatprep.subr.bf16.mxu0 0
    %2068 = vmatpush2.bf16.msra.mxu0 0
    %2069 = vmatprep.subr.bf16.mxu0 0
    %2070 = vmatpush2.bf16.msra.mxu0 0
    %2071 = vmatprep.subr.bf16.mxu0 0
    %2072 = vmatpush2.bf16.msra.mxu0 0
    %2073 = vmatprep.subr.bf16.mxu0 0
    %2074 = vmatpush2.bf16.msra.mxu0 0
    %2075 = vmatprep.subr.bf16.mxu0 0
    %2076 = vmatpush2.bf16.msra.mxu0 0
    %2077 = vmatprep.subr.bf16.mxu0 0
    %2078 = vmatpush2.bf16.msra.mxu0 0
    %2079 = vmatprep.subr.bf16.mxu0 0
    %2080 = vmatpush2.bf16.msra.mxu0 0
    %2081 = vmatprep.subr.bf16.mxu0 0
    %2082 = vmatpush2.bf16.msra.mxu0 0
    %2083 = vmatprep.mubr.bf16.mxu0 0
    %2084 = vmatmul.mubr.bf16.gmra.mxu0 %v2046
    %v2085 = vpop.f32.mrf.mxu0
    %v2086 = vadd.f32 %v1620, %v2085
    %v2087 = vpop.f32.mrf.mxu0
    %v2088 = vpop.f32.mrf.mxu0
    %v2089 = vpop.f32.mrf.mxu0
    %2090 = vdwg.mxu0
    %v2091 = vmax.f32 %v1696, 0.0
    %v2092 = vmax.f32 %v1774, 0.0
    %v2093 = vmax.f32 %v1852, 0.0
    %v2094 = vmax.f32 %v1930, 0.0
    %v2095 = vmax.f32 %v2008, 0.0
    %v2096 = vmax.f32 %v2086, 0.0
    %s2097 = smul.u32 %s1526, 16
    %s2098 = smul.u32 %s2097, 1
    %s2099 = sshll.u32 %s2098, 4
    %2100 = dma.done %s139, %s2099
    %v2101 = vpack.c.bf16 %v2091, %v2091
    %v2102 = vpack.c.bf16 %v2092, %v2092
    %v2103 = vpack.c.bf16 %v2093, %v2093
    %v2104 = vpack.c.bf16 %v2094, %v2094
    %v2105 = vpack.c.bf16 %v2095, %v2095
    %v2106 = vpack.c.bf16 %v2096, %v2096
    %v2107 = vld [vmem:[#allocation3] sm:$0xf]
    %v2108 = vld [vmem:[#allocation3 + $0x4] sm:$0xf]
    %v2109 = vld [vmem:[#allocation3 + $0x8] sm:$0xf]
    %v2110 = vld [vmem:[#allocation3 + $0xc] sm:$0xf]
    %v2111 = vld [vmem:[#allocation3 + $0x10] sm:$0xf]
    %v2112 = vld [vmem:[#allocation3 + $0x14] sm:$0xf]
    %v2113 = vld [vmem:[#allocation3 + $0x18] sm:$0xf]
    %v2114 = vld [vmem:[#allocation3 + $0x1c] sm:$0xf]
    %v2115 = vld [vmem:[#allocation3 + $0x20] sm:$0xf]
    %v2116 = vld [vmem:[#allocation3 + $0x24] sm:$0xf]
    %v2117 = vld [vmem:[#allocation3 + $0x28] sm:$0xf]
    %v2118 = vld [vmem:[#allocation3 + $0x2c] sm:$0xf]
    %v2119 = vld [vmem:[#allocation3 + $0x30] sm:$0xf]
    %v2120 = vld [vmem:[#allocation3 + $0x34] sm:$0xf]
    %v2121 = vld [vmem:[#allocation3 + $0x38] sm:$0xf]
    %v2122 = vld [vmem:[#allocation3 + $0x3c] sm:$0xf]
    %v2123 = vld [vmem:[#allocation3 + $0x40] sm:$0xf]
    %v2124 = vld [vmem:[#allocation3 + $0x44] sm:$0xf]
    %v2125 = vld [vmem:[#allocation3 + $0x48] sm:$0xf]
    %v2126 = vld [vmem:[#allocation3 + $0x4c] sm:$0xf]
    %v2127 = vld [vmem:[#allocation3 + $0x50] sm:$0xf]
    %v2128 = vld [vmem:[#allocation3 + $0x54] sm:$0xf]
    %v2129 = vld [vmem:[#allocation3 + $0x58] sm:$0xf]
    %v2130 = vld [vmem:[#allocation3 + $0x5c] sm:$0xf]
    %v2131 = vld [vmem:[#allocation3 + $0x60] sm:$0xf]
    %v2132 = vld [vmem:[#allocation3 + $0x64] sm:$0xf]
    %v2133 = vld [vmem:[#allocation3 + $0x68] sm:$0xf]
    %v2134 = vld [vmem:[#allocation3 + $0x6c] sm:$0xf]
    %v2135 = vld [vmem:[#allocation3 + $0x70] sm:$0xf]
    %v2136 = vld [vmem:[#allocation3 + $0x74] sm:$0xf]
    %v2137 = vld [vmem:[#allocation3 + $0x78] sm:$0xf]
    %v2138 = vld [vmem:[#allocation3 + $0x7c] sm:$0xf]
    %v2139 = vld [vmem:[#allocation3 + $0x80] sm:$0xf]
    %v2140 = vld [vmem:[#allocation3 + $0x84] sm:$0xf]
    %v2141 = vld [vmem:[#allocation3 + $0x88] sm:$0xf]
    %v2142 = vld [vmem:[#allocation3 + $0x8c] sm:$0xf]
    %v2143 = vld [vmem:[#allocation3 + $0x90] sm:$0xf]
    %v2144 = vld [vmem:[#allocation3 + $0x94] sm:$0xf]
    %v2145 = vld [vmem:[#allocation3 + $0x98] sm:$0xf]
    %v2146 = vld [vmem:[#allocation3 + $0x9c] sm:$0xf]
    %v2147 = vld [vmem:[#allocation3 + $0xa0] sm:$0xf]
    %v2148 = vld [vmem:[#allocation3 + $0xa4] sm:$0xf]
    %v2149 = vld [vmem:[#allocation3 + $0xa8] sm:$0xf]
    %v2150 = vld [vmem:[#allocation3 + $0xac] sm:$0xf]
    %v2151 = vld [vmem:[#allocation3 + $0xb0] sm:$0xf]
    %v2152 = vld [vmem:[#allocation3 + $0xb4] sm:$0xf]
    %v2153 = vld [vmem:[#allocation3 + $0xb8] sm:$0xf]
    %v2154 = vld [vmem:[#allocation3 + $0xbc] sm:$0xf]
    %v2155 = vld [vmem:[#allocation3 + $0xc0] sm:$0xf]
    %v2156 = vld [vmem:[#allocation3 + $0xc4] sm:$0xf]
    %v2157 = vld [vmem:[#allocation3 + $0xc8] sm:$0xf]
    %v2158 = vld [vmem:[#allocation3 + $0xcc] sm:$0xf]
    %v2159 = vld [vmem:[#allocation3 + $0xd0] sm:$0xf]
    %v2160 = vld [vmem:[#allocation3 + $0xd4] sm:$0xf]
    %v2161 = vld [vmem:[#allocation3 + $0xd8] sm:$0xf]
    %v2162 = vld [vmem:[#allocation3 + $0xdc] sm:$0xf]
    %v2163 = vld [vmem:[#allocation3 + $0xe0] sm:$0xf]
    %v2164 = vld [vmem:[#allocation3 + $0xe4] sm:$0xf]
    %v2165 = vld [vmem:[#allocation3 + $0xe8] sm:$0xf]
    %v2166 = vld [vmem:[#allocation3 + $0xec] sm:$0xf]
    %v2167 = vld [vmem:[#allocation3 + $0xf0] sm:$0xf]
    %v2168 = vld [vmem:[#allocation3 + $0xf4] sm:$0xf]
    %v2169 = vld [vmem:[#allocation3 + $0xf8] sm:$0xf]
    %v2170 = vld [vmem:[#allocation3 + $0xfc] sm:$0xf]
    %v2171 = vld [vmem:[#allocation3 + $0x100] sm:$0xf]
    %v2172 = vld [vmem:[#allocation3 + $0x104] sm:$0xf]
    %v2173 = vld [vmem:[#allocation3 + $0x108] sm:$0xf]
    %v2174 = vld [vmem:[#allocation3 + $0x10c] sm:$0xf]
    %v2175 = vld [vmem:[#allocation3 + $0x110] sm:$0xf]
    %v2176 = vld [vmem:[#allocation3 + $0x114] sm:$0xf]
    %v2177 = vld [vmem:[#allocation3 + $0x118] sm:$0xf]
    %v2178 = vld [vmem:[#allocation3 + $0x11c] sm:$0xf]
    %v2179 = vld [vmem:[#allocation3 + $0x120] sm:$0xf]
    %v2180 = vld [vmem:[#allocation3 + $0x124] sm:$0xf]
    %v2181 = vld [vmem:[#allocation3 + $0x128] sm:$0xf]
    %v2182 = vld [vmem:[#allocation3 + $0x12c] sm:$0xf]
    %v2183 = vld [vmem:[#allocation3 + $0x130] sm:$0xf]
    %v2184 = vld [vmem:[#allocation3 + $0x134] sm:$0xf]
    %v2185 = vld [vmem:[#allocation3 + $0x138] sm:$0xf]
    %v2186 = vld [vmem:[#allocation3 + $0x13c] sm:$0xf]
    %v2187 = vld [vmem:[#allocation3 + $0x140] sm:$0xf]
    %v2188 = vld [vmem:[#allocation3 + $0x144] sm:$0xf]
    %v2189 = vld [vmem:[#allocation3 + $0x148] sm:$0xf]
    %v2190 = vld [vmem:[#allocation3 + $0x14c] sm:$0xf]
    %v2191 = vld [vmem:[#allocation3 + $0x150] sm:$0xf]
    %v2192 = vld [vmem:[#allocation3 + $0x154] sm:$0xf]
    %v2193 = vld [vmem:[#allocation3 + $0x158] sm:$0xf]
    %v2194 = vld [vmem:[#allocation3 + $0x15c] sm:$0xf]
    %v2195 = vld [vmem:[#allocation3 + $0x160] sm:$0xf]
    %v2196 = vld [vmem:[#allocation3 + $0x164] sm:$0xf]
    %v2197 = vld [vmem:[#allocation3 + $0x168] sm:$0xf]
    %v2198 = vld [vmem:[#allocation3 + $0x16c] sm:$0xf]
    %v2199 = vld [vmem:[#allocation3 + $0x170] sm:$0xf]
    %v2200 = vld [vmem:[#allocation3 + $0x174] sm:$0xf]
    %v2201 = vld [vmem:[#allocation3 + $0x178] sm:$0xf]
    %v2202 = vld [vmem:[#allocation3 + $0x17c] sm:$0xf]
    %v2203 = vlaneseq
    %v2204 = vshrl.u32 %v2203, 7
    %v2205 = vsub.s32 0, %v2204
    %v2206 = vrot.slane %v1514, %v2205
    %v2207 = vlaneseq
    %v2208 = vshrl.u32 %v2207, 7
    %v2209 = vsub.s32 0, %v2208
    %v2210 = vrot.slane %v1515, %v2209
    %v2211 = vlaneseq
    %v2212 = vshrl.u32 %v2211, 7
    %v2213 = vsub.s32 0, %v2212
    %v2214 = vrot.slane %v1516, %v2213
    %v2215 = vlaneseq
    %v2216 = vshrl.u32 %v2215, 7
    %v2217 = vsub.s32 0, %v2216
    %v2218 = vrot.slane %v1517, %v2217
    %v2219 = vlaneseq
    %v2220 = vshrl.u32 %v2219, 7
    %v2221 = vsub.s32 0, %v2220
    %v2222 = vrot.slane %v1518, %v2221
    %v2223 = vlaneseq
    %v2224 = vshrl.u32 %v2223, 7
    %v2225 = vsub.s32 0, %v2224
    %v2226 = vrot.slane %v1519, %v2225
    %v2243 = vunpack.c.l.b16 %v2107
    %v2244 = vunpack.c.l.b16 %v2108
    %v2245 = vunpack.c.l.b16 %v2109
    %v2246 = vunpack.c.l.b16 %v2110
    %v2247 = vunpack.c.l.b16 %v2111
    %v2248 = vunpack.c.l.b16 %v2112
    %v2249 = vunpack.c.l.b16 %v2113
    %v2250 = vunpack.c.l.b16 %v2114
    %v2251 = vunpack.c.l.b16 %v2115
    %v2252 = vunpack.c.l.b16 %v2116
    %v2253 = vunpack.c.l.b16 %v2117
    %v2254 = vunpack.c.l.b16 %v2118
    %v2255 = vunpack.c.l.b16 %v2119
    %v2256 = vunpack.c.l.b16 %v2120
    %v2257 = vunpack.c.l.b16 %v2121
    %v2258 = vunpack.c.l.b16 %v2122
    %v2259 = vpack.c.b16 %v2244, %v2243
    %v2260 = vpack.c.b16 %v2246, %v2245
    %v2261 = vpack.c.b16 %v2248, %v2247
    %v2262 = vpack.c.b16 %v2250, %v2249
    %v2263 = vpack.c.b16 %v2252, %v2251
    %v2264 = vpack.c.b16 %v2254, %v2253
    %v2265 = vpack.c.b16 %v2256, %v2255
    %v2266 = vpack.c.b16 %v2258, %v2257
    %2275 = vmatprep.subr.bf16.mxu0 0
    %2276 = vmatpush1.bf16.msra.mxu0 %v2266
    %2277 = vmatprep.subr.bf16.mxu0 0
    %2278 = vmatpush1.bf16.msra.mxu0 %v2265
    %2279 = vmatprep.subr.bf16.mxu0 0
    %2280 = vmatpush1.bf16.msra.mxu0 %v2264
    %2281 = vmatprep.subr.bf16.mxu0 0
    %2282 = vmatpush1.bf16.msra.mxu0 %v2263
    %2283 = vmatprep.subr.bf16.mxu0 0
    %2284 = vmatpush1.bf16.msra.mxu0 %v2262
    %2285 = vmatprep.subr.bf16.mxu0 0
    %2286 = vmatpush1.bf16.msra.mxu0 %v2261
    %2287 = vmatprep.subr.bf16.mxu0 0
    %2288 = vmatpush1.bf16.msra.mxu0 %v2260
    %2289 = vmatprep.subr.bf16.mxu0 0
    %2290 = vmatpush1.bf16.msra.mxu0 %v2259
    %2291 = vmatprep.subr.bf16.mxu0 0
    %2292 = vmatpush2.bf16.msra.mxu0 0
    %2293 = vmatprep.subr.bf16.mxu0 0
    %2294 = vmatpush2.bf16.msra.mxu0 0
    %2295 = vmatprep.subr.bf16.mxu0 0
    %2296 = vmatpush2.bf16.msra.mxu0 0
    %2297 = vmatprep.subr.bf16.mxu0 0
    %2298 = vmatpush2.bf16.msra.mxu0 0
    %2299 = vmatprep.subr.bf16.mxu0 0
    %2300 = vmatpush2.bf16.msra.mxu0 0
    %2301 = vmatprep.subr.bf16.mxu0 0
    %2302 = vmatpush2.bf16.msra.mxu0 0
    %2303 = vmatprep.subr.bf16.mxu0 0
    %2304 = vmatpush2.bf16.msra.mxu0 0
    %2305 = vmatprep.subr.bf16.mxu0 0
    %2306 = vmatpush2.bf16.msra.mxu0 0
    %2307 = vmatprep.mubr.bf16.mxu0 0
    %2308 = vmatmul.mubr.bf16.gmra.mxu0 %v2101
    %v2309 = vpop.f32.mrf.mxu0
    %v2310 = vadd.f32 %v2206, %v2309
    %v2311 = vpop.f32.mrf.mxu0
    %v2312 = vpop.f32.mrf.mxu0
    %v2313 = vpop.f32.mrf.mxu0
    %2314 = vdwg.mxu0
    %v2331 = vunpack.c.l.b16 %v2123
    %v2332 = vunpack.c.l.b16 %v2124
    %v2333 = vunpack.c.l.b16 %v2125
    %v2334 = vunpack.c.l.b16 %v2126
    %v2335 = vunpack.c.l.b16 %v2127
    %v2336 = vunpack.c.l.b16 %v2128
    %v2337 = vunpack.c.l.b16 %v2129
    %v2338 = vunpack.c.l.b16 %v2130
    %v2339 = vunpack.c.l.b16 %v2131
    %v2340 = vunpack.c.l.b16 %v2132
    %v2341 = vunpack.c.l.b16 %v2133
    %v2342 = vunpack.c.l.b16 %v2134
    %v2343 = vunpack.c.l.b16 %v2135
    %v2344 = vunpack.c.l.b16 %v2136
    %v2345 = vunpack.c.l.b16 %v2137
    %v2346 = vunpack.c.l.b16 %v2138
    %v2347 = vpack.c.b16 %v2332, %v2331
    %v2348 = vpack.c.b16 %v2334, %v2333
    %v2349 = vpack.c.b16 %v2336, %v2335
    %v2350 = vpack.c.b16 %v2338, %v2337
    %v2351 = vpack.c.b16 %v2340, %v2339
    %v2352 = vpack.c.b16 %v2342, %v2341
    %v2353 = vpack.c.b16 %v2344, %v2343
    %v2354 = vpack.c.b16 %v2346, %v2345
    %2363 = vmatprep.subr.bf16.mxu0 0
    %2364 = vmatpush1.bf16.msra.mxu0 %v2354
    %2365 = vmatprep.subr.bf16.mxu0 0
    %2366 = vmatpush1.bf16.msra.mxu0 %v2353
    %2367 = vmatprep.subr.bf16.mxu0 0
    %2368 = vmatpush1.bf16.msra.mxu0 %v2352
    %2369 = vmatprep.subr.bf16.mxu0 0
    %2370 = vmatpush1.bf16.msra.mxu0 %v2351
    %2371 = vmatprep.subr.bf16.mxu0 0
    %2372 = vmatpush1.bf16.msra.mxu0 %v2350
    %2373 = vmatprep.subr.bf16.mxu0 0
    %2374 = vmatpush1.bf16.msra.mxu0 %v2349
    %2375 = vmatprep.subr.bf16.mxu0 0
    %2376 = vmatpush1.bf16.msra.mxu0 %v2348
    %2377 = vmatprep.subr.bf16.mxu0 0
    %2378 = vmatpush1.bf16.msra.mxu0 %v2347
    %2379 = vmatprep.subr.bf16.mxu0 0
    %2380 = vmatpush2.bf16.msra.mxu0 0
    %2381 = vmatprep.subr.bf16.mxu0 0
    %2382 = vmatpush2.bf16.msra.mxu0 0
    %2383 = vmatprep.subr.bf16.mxu0 0
    %2384 = vmatpush2.bf16.msra.mxu0 0
    %2385 = vmatprep.subr.bf16.mxu0 0
    %2386 = vmatpush2.bf16.msra.mxu0 0
    %2387 = vmatprep.subr.bf16.mxu0 0
    %2388 = vmatpush2.bf16.msra.mxu0 0
    %2389 = vmatprep.subr.bf16.mxu0 0
    %2390 = vmatpush2.bf16.msra.mxu0 0
    %2391 = vmatprep.subr.bf16.mxu0 0
    %2392 = vmatpush2.bf16.msra.mxu0 0
    %2393 = vmatprep.subr.bf16.mxu0 0
    %2394 = vmatpush2.bf16.msra.mxu0 0
    %2395 = vmatprep.mubr.bf16.mxu0 0
    %2396 = vmatmul.mubr.bf16.gmra.mxu0 %v2102
    %v2397 = vpop.f32.mrf.mxu0
    %v2398 = vadd.f32 %v2210, %v2397
    %v2399 = vpop.f32.mrf.mxu0
    %v2400 = vpop.f32.mrf.mxu0
    %v2401 = vpop.f32.mrf.mxu0
    %2402 = vdwg.mxu0
    %v2419 = vunpack.c.l.b16 %v2139
    %v2420 = vunpack.c.l.b16 %v2140
    %v2421 = vunpack.c.l.b16 %v2141
    %v2422 = vunpack.c.l.b16 %v2142
    %v2423 = vunpack.c.l.b16 %v2143
    %v2424 = vunpack.c.l.b16 %v2144
    %v2425 = vunpack.c.l.b16 %v2145
    %v2426 = vunpack.c.l.b16 %v2146
    %v2427 = vunpack.c.l.b16 %v2147
    %v2428 = vunpack.c.l.b16 %v2148
    %v2429 = vunpack.c.l.b16 %v2149
    %v2430 = vunpack.c.l.b16 %v2150
    %v2431 = vunpack.c.l.b16 %v2151
    %v2432 = vunpack.c.l.b16 %v2152
    %v2433 = vunpack.c.l.b16 %v2153
    %v2434 = vunpack.c.l.b16 %v2154
    %v2435 = vpack.c.b16 %v2420, %v2419
    %v2436 = vpack.c.b16 %v2422, %v2421
    %v2437 = vpack.c.b16 %v2424, %v2423
    %v2438 = vpack.c.b16 %v2426, %v2425
    %v2439 = vpack.c.b16 %v2428, %v2427
    %v2440 = vpack.c.b16 %v2430, %v2429
    %v2441 = vpack.c.b16 %v2432, %v2431
    %v2442 = vpack.c.b16 %v2434, %v2433
    %2451 = vmatprep.subr.bf16.mxu0 0
    %2452 = vmatpush1.bf16.msra.mxu0 %v2442
    %2453 = vmatprep.subr.bf16.mxu0 0
    %2454 = vmatpush1.bf16.msra.mxu0 %v2441
    %2455 = vmatprep.subr.bf16.mxu0 0
    %2456 = vmatpush1.bf16.msra.mxu0 %v2440
    %2457 = vmatprep.subr.bf16.mxu0 0
    %2458 = vmatpush1.bf16.msra.mxu0 %v2439
    %2459 = vmatprep.subr.bf16.mxu0 0
    %2460 = vmatpush1.bf16.msra.mxu0 %v2438
    %2461 = vmatprep.subr.bf16.mxu0 0
    %2462 = vmatpush1.bf16.msra.mxu0 %v2437
    %2463 = vmatprep.subr.bf16.mxu0 0
    %2464 = vmatpush1.bf16.msra.mxu0 %v2436
    %2465 = vmatprep.subr.bf16.mxu0 0
    %2466 = vmatpush1.bf16.msra.mxu0 %v2435
    %2467 = vmatprep.subr.bf16.mxu0 0
    %2468 = vmatpush2.bf16.msra.mxu0 0
    %2469 = vmatprep.subr.bf16.mxu0 0
    %2470 = vmatpush2.bf16.msra.mxu0 0
    %2471 = vmatprep.subr.bf16.mxu0 0
    %2472 = vmatpush2.bf16.msra.mxu0 0
    %2473 = vmatprep.subr.bf16.mxu0 0
    %2474 = vmatpush2.bf16.msra.mxu0 0
    %2475 = vmatprep.subr.bf16.mxu0 0
    %2476 = vmatpush2.bf16.msra.mxu0 0
    %2477 = vmatprep.subr.bf16.mxu0 0
    %2478 = vmatpush2.bf16.msra.mxu0 0
    %2479 = vmatprep.subr.bf16.mxu0 0
    %2480 = vmatpush2.bf16.msra.mxu0 0
    %2481 = vmatprep.subr.bf16.mxu0 0
    %2482 = vmatpush2.bf16.msra.mxu0 0
    %2483 = vmatprep.mubr.bf16.mxu0 0
    %2484 = vmatmul.mubr.bf16.gmra.mxu0 %v2103
    %v2485 = vpop.f32.mrf.mxu0
    %v2486 = vadd.f32 %v2214, %v2485
    %v2487 = vpop.f32.mrf.mxu0
    %v2488 = vpop.f32.mrf.mxu0
    %v2489 = vpop.f32.mrf.mxu0
    %2490 = vdwg.mxu0
    %v2507 = vunpack.c.l.b16 %v2155
    %v2508 = vunpack.c.l.b16 %v2156
    %v2509 = vunpack.c.l.b16 %v2157
    %v2510 = vunpack.c.l.b16 %v2158
    %v2511 = vunpack.c.l.b16 %v2159
    %v2512 = vunpack.c.l.b16 %v2160
    %v2513 = vunpack.c.l.b16 %v2161
    %v2514 = vunpack.c.l.b16 %v2162
    %v2515 = vunpack.c.l.b16 %v2163
    %v2516 = vunpack.c.l.b16 %v2164
    %v2517 = vunpack.c.l.b16 %v2165
    %v2518 = vunpack.c.l.b16 %v2166
    %v2519 = vunpack.c.l.b16 %v2167
    %v2520 = vunpack.c.l.b16 %v2168
    %v2521 = vunpack.c.l.b16 %v2169
    %v2522 = vunpack.c.l.b16 %v2170
    %v2523 = vpack.c.b16 %v2508, %v2507
    %v2524 = vpack.c.b16 %v2510, %v2509
    %v2525 = vpack.c.b16 %v2512, %v2511
    %v2526 = vpack.c.b16 %v2514, %v2513
    %v2527 = vpack.c.b16 %v2516, %v2515
    %v2528 = vpack.c.b16 %v2518, %v2517
    %v2529 = vpack.c.b16 %v2520, %v2519
    %v2530 = vpack.c.b16 %v2522, %v2521
    %2539 = vmatprep.subr.bf16.mxu0 0
    %2540 = vmatpush1.bf16.msra.mxu0 %v2530
    %2541 = vmatprep.subr.bf16.mxu0 0
    %2542 = vmatpush1.bf16.msra.mxu0 %v2529
    %2543 = vmatprep.subr.bf16.mxu0 0
    %2544 = vmatpush1.bf16.msra.mxu0 %v2528
    %2545 = vmatprep.subr.bf16.mxu0 0
    %2546 = vmatpush1.bf16.msra.mxu0 %v2527
    %2547 = vmatprep.subr.bf16.mxu0 0
    %2548 = vmatpush1.bf16.msra.mxu0 %v2526
    %2549 = vmatprep.subr.bf16.mxu0 0
    %2550 = vmatpush1.bf16.msra.mxu0 %v2525
    %2551 = vmatprep.subr.bf16.mxu0 0
    %2552 = vmatpush1.bf16.msra.mxu0 %v2524
    %2553 = vmatprep.subr.bf16.mxu0 0
    %2554 = vmatpush1.bf16.msra.mxu0 %v2523
    %2555 = vmatprep.subr.bf16.mxu0 0
    %2556 = vmatpush2.bf16.msra.mxu0 0
    %2557 = vmatprep.subr.bf16.mxu0 0
    %2558 = vmatpush2.bf16.msra.mxu0 0
    %2559 = vmatprep.subr.bf16.mxu0 0
    %2560 = vmatpush2.bf16.msra.mxu0 0
    %2561 = vmatprep.subr.bf16.mxu0 0
    %2562 = vmatpush2.bf16.msra.mxu0 0
    %2563 = vmatprep.subr.bf16.mxu0 0
    %2564 = vmatpush2.bf16.msra.mxu0 0
    %2565 = vmatprep.subr.bf16.mxu0 0
    %2566 = vmatpush2.bf16.msra.mxu0 0
    %2567 = vmatprep.subr.bf16.mxu0 0
    %2568 = vmatpush2.bf16.msra.mxu0 0
    %2569 = vmatprep.subr.bf16.mxu0 0
    %2570 = vmatpush2.bf16.msra.mxu0 0
    %2571 = vmatprep.mubr.bf16.mxu0 0
    %2572 = vmatmul.mubr.bf16.gmra.mxu0 %v2104
    %v2573 = vpop.f32.mrf.mxu0
    %v2574 = vadd.f32 %v2218, %v2573
    %v2575 = vpop.f32.mrf.mxu0
    %v2576 = vpop.f32.mrf.mxu0
    %v2577 = vpop.f32.mrf.mxu0
    %2578 = vdwg.mxu0
    %v2595 = vunpack.c.l.b16 %v2171
    %v2596 = vunpack.c.l.b16 %v2172
    %v2597 = vunpack.c.l.b16 %v2173
    %v2598 = vunpack.c.l.b16 %v2174
    %v2599 = vunpack.c.l.b16 %v2175
    %v2600 = vunpack.c.l.b16 %v2176
    %v2601 = vunpack.c.l.b16 %v2177
    %v2602 = vunpack.c.l.b16 %v2178
    %v2603 = vunpack.c.l.b16 %v2179
    %v2604 = vunpack.c.l.b16 %v2180
    %v2605 = vunpack.c.l.b16 %v2181
    %v2606 = vunpack.c.l.b16 %v2182
    %v2607 = vunpack.c.l.b16 %v2183
    %v2608 = vunpack.c.l.b16 %v2184
    %v2609 = vunpack.c.l.b16 %v2185
    %v2610 = vunpack.c.l.b16 %v2186
    %v2611 = vpack.c.b16 %v2596, %v2595
    %v2612 = vpack.c.b16 %v2598, %v2597
    %v2613 = vpack.c.b16 %v2600, %v2599
    %v2614 = vpack.c.b16 %v2602, %v2601
    %v2615 = vpack.c.b16 %v2604, %v2603
    %v2616 = vpack.c.b16 %v2606, %v2605
    %v2617 = vpack.c.b16 %v2608, %v2607
    %v2618 = vpack.c.b16 %v2610, %v2609
    %2627 = vmatprep.subr.bf16.mxu0 0
    %2628 = vmatpush1.bf16.msra.mxu0 %v2618
    %2629 = vmatprep.subr.bf16.mxu0 0
    %2630 = vmatpush1.bf16.msra.mxu0 %v2617
    %2631 = vmatprep.subr.bf16.mxu0 0
    %2632 = vmatpush1.bf16.msra.mxu0 %v2616
    %2633 = vmatprep.subr.bf16.mxu0 0
    %2634 = vmatpush1.bf16.msra.mxu0 %v2615
    %2635 = vmatprep.subr.bf16.mxu0 0
    %2636 = vmatpush1.bf16.msra.mxu0 %v2614
    %2637 = vmatprep.subr.bf16.mxu0 0
    %2638 = vmatpush1.bf16.msra.mxu0 %v2613
    %2639 = vmatprep.subr.bf16.mxu0 0
    %2640 = vmatpush1.bf16.msra.mxu0 %v2612
    %2641 = vmatprep.subr.bf16.mxu0 0
    %2642 = vmatpush1.bf16.msra.mxu0 %v2611
    %2643 = vmatprep.subr.bf16.mxu0 0
    %2644 = vmatpush2.bf16.msra.mxu0 0
    %2645 = vmatprep.subr.bf16.mxu0 0
    %2646 = vmatpush2.bf16.msra.mxu0 0
    %2647 = vmatprep.subr.bf16.mxu0 0
    %2648 = vmatpush2.bf16.msra.mxu0 0
    %2649 = vmatprep.subr.bf16.mxu0 0
    %2650 = vmatpush2.bf16.msra.mxu0 0
    %2651 = vmatprep.subr.bf16.mxu0 0
    %2652 = vmatpush2.bf16.msra.mxu0 0
    %2653 = vmatprep.subr.bf16.mxu0 0
    %2654 = vmatpush2.bf16.msra.mxu0 0
    %2655 = vmatprep.subr.bf16.mxu0 0
    %2656 = vmatpush2.bf16.msra.mxu0 0
    %2657 = vmatprep.subr.bf16.mxu0 0
    %2658 = vmatpush2.bf16.msra.mxu0 0
    %2659 = vmatprep.mubr.bf16.mxu0 0
    %2660 = vmatmul.mubr.bf16.gmra.mxu0 %v2105
    %v2661 = vpop.f32.mrf.mxu0
    %v2662 = vadd.f32 %v2222, %v2661
    %v2663 = vpop.f32.mrf.mxu0
    %v2664 = vpop.f32.mrf.mxu0
    %v2665 = vpop.f32.mrf.mxu0
    %2666 = vdwg.mxu0
    %v2683 = vunpack.c.l.b16 %v2187
    %v2684 = vunpack.c.l.b16 %v2188
    %v2685 = vunpack.c.l.b16 %v2189
    %v2686 = vunpack.c.l.b16 %v2190
    %v2687 = vunpack.c.l.b16 %v2191
    %v2688 = vunpack.c.l.b16 %v2192
    %v2689 = vunpack.c.l.b16 %v2193
    %v2690 = vunpack.c.l.b16 %v2194
    %v2691 = vunpack.c.l.b16 %v2195
    %v2692 = vunpack.c.l.b16 %v2196
    %v2693 = vunpack.c.l.b16 %v2197
    %v2694 = vunpack.c.l.b16 %v2198
    %v2695 = vunpack.c.l.b16 %v2199
    %v2696 = vunpack.c.l.b16 %v2200
    %v2697 = vunpack.c.l.b16 %v2201
    %v2698 = vunpack.c.l.b16 %v2202
    %v2699 = vpack.c.b16 %v2684, %v2683
    %v2700 = vpack.c.b16 %v2686, %v2685
    %v2701 = vpack.c.b16 %v2688, %v2687
    %v2702 = vpack.c.b16 %v2690, %v2689
    %v2703 = vpack.c.b16 %v2692, %v2691
    %v2704 = vpack.c.b16 %v2694, %v2693
    %v2705 = vpack.c.b16 %v2696, %v2695
    %v2706 = vpack.c.b16 %v2698, %v2697
    %2715 = vmatprep.subr.bf16.mxu0 0
    %2716 = vmatpush1.bf16.msra.mxu0 %v2706
    %2717 = vmatprep.subr.bf16.mxu0 0
    %2718 = vmatpush1.bf16.msra.mxu0 %v2705
    %2719 = vmatprep.subr.bf16.mxu0 0
    %2720 = vmatpush1.bf16.msra.mxu0 %v2704
    %2721 = vmatprep.subr.bf16.mxu0 0
    %2722 = vmatpush1.bf16.msra.mxu0 %v2703
    %2723 = vmatprep.subr.bf16.mxu0 0
    %2724 = vmatpush1.bf16.msra.mxu0 %v2702
    %2725 = vmatprep.subr.bf16.mxu0 0
    %2726 = vmatpush1.bf16.msra.mxu0 %v2701
    %2727 = vmatprep.subr.bf16.mxu0 0
    %2728 = vmatpush1.bf16.msra.mxu0 %v2700
    %2729 = vmatprep.subr.bf16.mxu0 0
    %2730 = vmatpush1.bf16.msra.mxu0 %v2699
    %2731 = vmatprep.subr.bf16.mxu0 0
    %2732 = vmatpush2.bf16.msra.mxu0 0
    %2733 = vmatprep.subr.bf16.mxu0 0
    %2734 = vmatpush2.bf16.msra.mxu0 0
    %2735 = vmatprep.subr.bf16.mxu0 0
    %2736 = vmatpush2.bf16.msra.mxu0 0
    %2737 = vmatprep.subr.bf16.mxu0 0
    %2738 = vmatpush2.bf16.msra.mxu0 0
    %2739 = vmatprep.subr.bf16.mxu0 0
    %2740 = vmatpush2.bf16.msra.mxu0 0
    %2741 = vmatprep.subr.bf16.mxu0 0
    %2742 = vmatpush2.bf16.msra.mxu0 0
    %2743 = vmatprep.subr.bf16.mxu0 0
    %2744 = vmatpush2.bf16.msra.mxu0 0
    %2745 = vmatprep.subr.bf16.mxu0 0
    %2746 = vmatpush2.bf16.msra.mxu0 0
    %2747 = vmatprep.mubr.bf16.mxu0 0
    %2748 = vmatmul.mubr.bf16.gmra.mxu0 %v2106
    %v2749 = vpop.f32.mrf.mxu0
    %v2750 = vadd.f32 %v2226, %v2749
    %v2751 = vpop.f32.mrf.mxu0
    %v2752 = vpop.f32.mrf.mxu0
    %v2753 = vpop.f32.mrf.mxu0
    %2754 = vdwg.mxu0
    %v2755 = vmax.f32 %v2310, 0.0
    %v2756 = vmax.f32 %v2398, 0.0
    %v2757 = vmax.f32 %v2486, 0.0
    %v2758 = vmax.f32 %v2574, 0.0
    %v2759 = vmax.f32 %v2662, 0.0
    %v2760 = vmax.f32 %v2750, 0.0
    %v2761 = vlaneseq
    %v2762 = vshrl.u32 %v2761, 7
    %v2763 = vsub.s32 0, %v2762
    %v2764 = vrot.slane %v1520, %v2763
    %v2765 = vlaneseq
    %v2766 = vshrl.u32 %v2765, 7
    %v2767 = vsub.s32 0, %v2766
    %v2768 = vrot.slane %v1521, %v2767
    %v2769 = vlaneseq
    %v2770 = vshrl.u32 %v2769, 7
    %v2771 = vsub.s32 0, %v2770
    %v2772 = vrot.slane %v1522, %v2771
    %v2773 = vlaneseq
    %v2774 = vshrl.u32 %v2773, 7
    %v2775 = vsub.s32 0, %v2774
    %v2776 = vrot.slane %v1523, %v2775
    %v2777 = vlaneseq
    %v2778 = vshrl.u32 %v2777, 7
    %v2779 = vsub.s32 0, %v2778
    %v2780 = vrot.slane %v1524, %v2779
    %v2781 = vlaneseq
    %v2782 = vshrl.u32 %v2781, 7
    %v2783 = vsub.s32 0, %v2782
    %v2784 = vrot.slane %v1525, %v2783
    %v2785 = vmul.f32 %v2755, %v2764
    %v2786 = vmul.f32 %v2756, %v2768
    %v2787 = vmul.f32 %v2757, %v2772
    %v2788 = vmul.f32 %v2758, %v2776
    %v2789 = vmul.f32 %v2759, %v2780
    %v2790 = vmul.f32 %v2760, %v2784
    %vm2791 = vcmask 517120
    %v2792 = vsel %vm2791, %v2785, 0.0
    %2793 = vadd.xlane.f32.xlu0 %v2792
    %v2794 = vpop.xlane.xlu0 %2793
    %v2795 = vsel %vm2791, %v2786, 0.0
    %2796 = vadd.xlane.f32.xlu0 %v2795
    %v2797 = vpop.xlane.xlu0 %2796
    %v2798 = vsel %vm2791, %v2787, 0.0
    %2799 = vadd.xlane.f32.xlu0 %v2798
    %v2800 = vpop.xlane.xlu0 %2799
    %v2801 = vsel %vm2791, %v2788, 0.0
    %2802 = vadd.xlane.f32.xlu0 %v2801
    %v2803 = vpop.xlane.xlu0 %2802
    %v2804 = vsel %vm2791, %v2789, 0.0
    %2805 = vadd.xlane.f32.xlu0 %v2804
    %v2806 = vpop.xlane.xlu0 %2805
    %v2807 = vsel %vm2791, %v2790, 0.0
    %2808 = vadd.xlane.f32.xlu0 %v2807
    %v2809 = vpop.xlane.xlu0 %2808
    %v2816 = vlaneseq
    %v2817 = vand.u32 %v2816, 127
    %v2818 = vlaneseq
    %v2819 = vshrl.u32 %v2818, 7
    %v2820 = vsub.s32 %v2817, %v2819
    %v2821 = vrot.slane %v2794, %v2820
    %v2822 = vlaneseq
    %v2823 = vshrl.u32 %v2822, 7
    %v2824 = vsub.s32 %v2817, %v2823
    %v2825 = vrot.slane %v2797, %v2824
    %v2826 = vlaneseq
    %v2827 = vshrl.u32 %v2826, 7
    %v2828 = vsub.s32 %v2817, %v2827
    %v2829 = vrot.slane %v2800, %v2828
    %v2830 = vlaneseq
    %v2831 = vshrl.u32 %v2830, 7
    %v2832 = vsub.s32 %v2817, %v2831
    %v2833 = vrot.slane %v2803, %v2832
    %v2834 = vlaneseq
    %v2835 = vshrl.u32 %v2834, 7
    %v2836 = vsub.s32 %v2817, %v2835
    %v2837 = vrot.slane %v2806, %v2836
    %v2838 = vlaneseq
    %v2839 = vshrl.u32 %v2838, 7
    %v2840 = vsub.s32 %v2817, %v2839
    %v2841 = vrot.slane %v2809, %v2840
    %vm2842 = vcmask 1041409
    %v2843 = vsel %vm2842, %v2825, %v2821
    %vm2844 = vcmask 1042434
    %v2845 = vsel %vm2844, %v2829, %v2843
    %vm2846 = vcmask 1043459
    %v2847 = vsel %vm2846, %v2833, %v2845
    %vm2848 = vcmask 1044484
    %v2849 = vsel %vm2848, %v2837, %v2847
    %vm2850 = vcmask 1045509
    %v2851 = vsel %vm2850, %v2841, %v2849
    %2853 = vxpose.xlu0.b32.start [1/16] %v2851, 128
    %2854 = vxpose.xlu0.b32.cont [2/16] 0.0, 128
    %2855 = vxpose.xlu0.b32.cont [3/16] 0.0, 128
    %2856 = vxpose.xlu0.b32.cont [4/16] 0.0, 128
    %2857 = vxpose.xlu0.b32.cont [5/16] 0.0, 128
    %2858 = vxpose.xlu0.b32.cont [6/16] 0.0, 128
    %2859 = vxpose.xlu0.b32.cont [7/16] 0.0, 128
    %2860 = vxpose.xlu0.b32.cont [8/16] 0.0, 128
    %2861 = vxpose.xlu0.b32.cont [9/16] 0.0, 128
    %2862 = vxpose.xlu0.b32.cont [10/16] 0.0, 128
    %2863 = vxpose.xlu0.b32.cont [11/16] 0.0, 128
    %2864 = vxpose.xlu0.b32.cont [12/16] 0.0, 128
    %2865 = vxpose.xlu0.b32.cont [13/16] 0.0, 128
    %2866 = vxpose.xlu0.b32.cont [14/16] 0.0, 128
    %2867 = vxpose.xlu0.b32.cont [15/16] 0.0, 128
    %2868 = vxpose.xlu0.b32.end [16/16] 0.0, 128
    %v2869 = vpop.trf.xlu0
    %v2870 = vpop.trf.xlu0
    %v2871 = vpop.trf.xlu0
    %v2872 = vpop.trf.xlu0
    %v2873 = vpop.trf.xlu0
    %v2874 = vpop.trf.xlu0
    %v2875 = vpop.trf.xlu0
    %v2876 = vpop.trf.xlu0
    %v2877 = vpop.trf.xlu0
    %v2878 = vpop.trf.xlu0
    %v2879 = vpop.trf.xlu0
    %v2880 = vpop.trf.xlu0
    %v2881 = vpop.trf.xlu0
    %v2882 = vpop.trf.xlu0
    %v2883 = vpop.trf.xlu0
    %v2884 = vpop.trf.xlu0
    %v2885 = vld [vmem:[%s5 + $0x2] sm:$0x1]
    %v2886 = vlaneseq
    %v2887 = vshrl.u32 %v2886, 7
    %v2888 = vsub.s32 0, %v2887
    %v2889 = vrot.slane %v2885, %v2888
    %v2890 = vadd.f32 %v2869, %v2889
    %v2891 = vsub.f32 0.0, %v2890
    %v2892 = vmul.f32 %v2891, 1.442695
    %v2893 = vpow.pop %v2892
    %v2894 = vadd.f32 %v2893, 1.0
    %v2895 = vrcp.pop %v2894
    %v2896 = vmul.f32 1.0, %v2895
    %vm2897 = vcmask 41984
    %2898 = vst.msk [vmem:[#allocation5] sm:$0x3] %vm2897, %v2896
    // Predicated region
    $region98: #{ml_model7_forward.1} parent=1 // pred_check
      _
    $region99: #{ml_model7_forward.1} parent=1 // pred_check_branch
      %2900 = sbr.rel (0) target = $region101
    $region100: #{ml_model7_forward.1} parent=1 // pred_region
      %s2902 = ssub.s32 32, 32
      %2903 = vsyncadd [#allocation6], %s2902
      %s2905 = sshll.u32 [#allocation5], 4
      %s2906 = int_to_ptr.vmem [resolvable:$true] %s2905
      %2908 = dma.vmem_to_hbm [thread:$0]  %s2906, 32, %s9, [#allocation6]
    $region101: #{ml_model7_forward.1} parent=1 // pred_fallthru
      _
    // Predicated region
    $region102: #{ml_model7_forward.1} parent=1 // pred_check
      _
    $region103: #{ml_model7_forward.1} parent=1 // pred_check_branch
      %2910 = sbr.rel (0) target = $region105
    $region104: #{ml_model7_forward.1} parent=1 // pred_region
      _
    $region105: #{ml_model7_forward.1} parent=1 // pred_fallthru
      _
    // Predicated region
    $region106: #{ml_model7_forward.1} parent=1 // pred_check
      _
    $region107: #{ml_model7_forward.1} parent=1 // pred_check_branch
      %2912 = sbr.rel (0) target = $region109
    $region108: #{ml_model7_forward.1} parent=1 // pred_region
      %2913 = dma.done [#allocation6], 32
    $region109: #{ml_model7_forward.1} parent=1 // pred_fallthru
      _
    // Predicated region
    $region110: #{ml_model7_forward.1} parent=1 // pred_check
      _
    $region111: #{ml_model7_forward.1} parent=1 // pred_check_branch
      %2915 = sbr.rel (0) target = $region113
    $region112: #{ml_model7_forward.1} parent=1 // pred_region
      _
    $region113: #{ml_model7_forward.1} parent=1 // pred_fallthru
      _
    %2916 = vsyncpa [#allocation6], 1
  %2917 = vsyncmov [#allocation4]
  %s2918 = vpop.sfrf %2917
  %p2919 = scmp.eq.s32.totalorder %s2918, 0
  %p2920 = pneg %p2919
  %2922 = shalt.err (%p2920)
  %s2923 = scalar_lea.sflag [#allocation4], 1
  %2924 = vsyncmov %s2923
  %s2925 = vpop.sfrf %2924
  %p2926 = scmp.eq.s32.totalorder %s2925, 0
  %p2927 = pneg %p2926
  %2929 = shalt.err (%p2927)

</llo_original>
